<compile_context>
chip_gen: v6e
topology: v6e:2x2x1
jax: 0.10.0
libtpu: 0.0.40
codegen_flags: <defaults>
</compile_context>

<pallas_src>
import functools
import math

import jax
import jax.numpy as jnp
from jax.experimental import pallas as pl
from jax.experimental.pallas import tpu as pltpu


# Default tiles: multiples of 256 so tiled K/N feed the full 256-wide MXU on
# v6e/v7x (v5e's 128x128 MXU is unaffected).
_TM, _TN, _TK = 256, 512, 512


def _round_up(x, m):
    return ((x + m - 1) // m) * m


@functools.lru_cache(maxsize=None)
def _vmem_cap_bytes():
    # Generation-aware physical VMEM (v5e/v6e: 128 MiB, v7x: 64 MiB per core).
    try:
        cap = getattr(pltpu.get_tpu_info(), "vmem_capacity_bytes", None)
        if cap:
            return int(cap)
    except Exception:
        pass
    return 64 * 1024 * 1024  # conservative fallback (v7x per-core VMEM)


def _vmem_limit(tile_bytes):
    """Derive vmem_limit_bytes from the actual tile working set.

    Double-buffered tiles + compiler scratch headroom, capped at 75% of the
    physical VMEM so the budget scales up on v5e/v6e and stays safe on v7x.
    """
    need = 2 * int(tile_bytes) + 8 * 1024 * 1024
    cap = (3 * _vmem_cap_bytes()) // 4
    return int(min(max(need, 32 * 1024 * 1024), cap))


def _padded_dim(d, default_tile):
    dp = _round_up(d, 128)
    if dp > default_tile:
        dp = _round_up(dp, default_tile)
    return dp


# --------------------------- one-time weight prep ----------------------------

def _prep_dense(p):
    """Pre-cast weight to bf16 and pre-pad to tile multiples (done once)."""
    w, b = p["w"], p["b"]
    K, N = w.shape
    Kp, Np = _padded_dim(K, _TK), _padded_dim(N, _TN)
    return {"w": jnp.pad(w.astype(jnp.bfloat16), ((0, Kp - K), (0, Np - N))),
            "b": jnp.pad(b.astype(jnp.float32), (0, Np - N)).reshape(1, Np)}


def _prep_dense_ln(pd, pln):
    """Dense whose epilogue is residual-add + LayerNorm: pad K only (N = LN axis)."""
    w, b = pd["w"], pd["b"]
    K, N = w.shape
    Kp = _padded_dim(K, _TK)
    return {"w": jnp.pad(w.astype(jnp.bfloat16), ((0, Kp - K), (0, 0))),
            "b": b.astype(jnp.float32).reshape(1, N),
            "g": pln["g"].astype(jnp.float32).reshape(1, N),
            "beta": pln["b"].astype(jnp.float32).reshape(1, N)}


# ----------------------------- tiled linear kernels -------------------------

def _apply_gelu(y):
    # TODO(synk): tanh-approx GELU; HF Electra default is exact erf GELU (~1e-3 diff).
    return 0.5 * y * (1.0 + jnp.tanh(
        0.7978845608028654 * (y + 0.044715 * y * y * y)))


def _linear_kernel_1k(x_ref, w_ref, b_ref, o_ref, *, activation):
    # Single K tile: no accumulator, no pl.when.
    y = jnp.dot(x_ref[...], w_ref[...],
                preferred_element_type=jnp.float32) + b_ref[...]
    if activation == "gelu":
        y = _apply_gelu(y)
    o_ref[...] = y.astype(o_ref.dtype)


def _linear_kernel_mk(x_ref, w_ref, b_ref, o_ref, acc_ref, *, activation):
    k = pl.program_id(2)

    @pl.when(k == 0)
    def _init():
        # Bias folded into the accumulator init (frees the epilogue VPU add).
        acc_ref[...] = jnp.broadcast_to(b_ref[...], acc_ref.shape)

    acc_ref[...] += jnp.dot(x_ref[...], w_ref[...],
                            preferred_element_type=jnp.float32)

    @pl.when(k == pl.num_programs(2) - 1)
    def _finalize():
        y = acc_ref[...]
        if activation == "gelu":
            y = _apply_gelu(y)
        o_ref[...] = y.astype(o_ref.dtype)


def pallas_linear(x, wp, bp, n_out, activation=None, out_dtype=jnp.bfloat16,
                  tm=_TM):
    """act(x @ w + b) with pre-padded bf16 weight wp (Kp, Np), f32 bias bp (1, Np).

    x: (M, K) float. Returns (M, n_out) in out_dtype. Degenerate grid axes are
    collapsed (single K tile -> no accumulator / pl.when) and padding / slicing
    is skipped when shapes are already tile-aligned.
    """
    M, K = x.shape
    Kp, Np = wp.shape
    tm = min(tm, _round_up(M, 8))
    Mp = _round_up(M, tm)
    tk = _TK if Kp > _TK else Kp
    tn = _TN if Np > _TN else Np

    if x.dtype != jnp.bfloat16:
        x = x.astype(jnp.bfloat16)
    if (Mp, Kp) != (M, K):
        x = jnp.pad(x, ((0, Mp - M), (0, Kp - K)))

    gm, gn, gk = Mp // tm, Np // tn, Kp // tk
    o_item = jnp.dtype(out_dtype).itemsize
    tile_bytes = 2 * tm * tk + 2 * tk * tn + 4 * tn + 4 * tm * tn + o_item * tm * tn
    cost = pl.CostEstimate(
        flops=2 * Mp * Np * Kp,
        transcendentals=(Mp * Np) if activation == "gelu" else 0,
        bytes_accessed=2 * (Mp * Kp + Kp * Np) + Mp * Np * o_item)

    if gk == 1:
        out = pl.pallas_call(
            functools.partial(_linear_kernel_1k, activation=activation),
            out_shape=jax.ShapeDtypeStruct((Mp, Np), out_dtype),
            grid=(gm, gn),
            in_specs=[
                pl.BlockSpec((tm, tk), lambda i, j: (i, 0)),
                pl.BlockSpec((tk, tn), lambda i, j: (0, j)),
                pl.BlockSpec((1, tn), lambda i, j: (0, j)),
            ],
            out_specs=pl.BlockSpec((tm, tn), lambda i, j: (i, j)),
            compiler_params=pltpu.CompilerParams(
                dimension_semantics=("parallel", "parallel"),
                vmem_limit_bytes=_vmem_limit(tile_bytes)),
            cost_estimate=cost,
        )(x, wp, bp)
    else:
        # TODO(synk): on v5e/v6e (128 MiB VMEM) a deeper pipeline on the w
        # stream (pipeline_mode=pl.Buffered(3)) would further hide DMA latency.
        out = pl.pallas_call(
            functools.partial(_linear_kernel_mk, activation=activation),
            out_shape=jax.ShapeDtypeStruct((Mp, Np), out_dtype),
            grid=(gm, gn, gk),
            in_specs=[
                pl.BlockSpec((tm, tk), lambda i, j, k: (i, k)),
                pl.BlockSpec((tk, tn), lambda i, j, k: (k, j)),
                pl.BlockSpec((1, tn), lambda i, j, k: (0, j)),
            ],
            out_specs=pl.BlockSpec((tm, tn), lambda i, j, k: (i, j)),
            scratch_shapes=[pltpu.VMEM((tm, tn), jnp.float32)],
            compiler_params=pltpu.CompilerParams(
                dimension_semantics=("parallel", "parallel", "arbitrary"),
                vmem_limit_bytes=_vmem_limit(tile_bytes)),
            cost_estimate=cost,
        )(x, wp, bp)

    if Mp != M or Np != n_out:
        out = out[:M, :n_out]
    return out


def _res_ln_epilogue(y, g, b2, eps, out_dtype):
    mean = jnp.mean(y, axis=-1, keepdims=True)
    c = y - mean
    var = jnp.mean(c * c, axis=-1, keepdims=True)
    return (c * jax.lax.rsqrt(var + eps) * g + b2).astype(out_dtype)


def _linear_res_ln_kernel_1k(x_ref, w_ref, b_ref, r_ref, g_ref, b2_ref, o_ref,
                             *, eps):
    y = (jnp.dot(x_ref[...], w_ref[...], preferred_element_type=jnp.float32)
         + b_ref[...] + r_ref[...].astype(jnp.float32))
    o_ref[...] = _res_ln_epilogue(y, g_ref[...], b2_ref[...], eps, o_ref.dtype)


def _linear_res_ln_kernel_mk(x_ref, w_ref, b_ref, r_ref, g_ref, b2_ref, o_ref,
                             acc_ref, *, eps):
    k = pl.program_id(1)

    @pl.when(k == 0)
    def _init():
        # residual + bias folded into the accumulator init
        acc_ref[...] = r_ref[...].astype(jnp.float32) + b_ref[...]

    acc_ref[...] += jnp.dot(x_ref[...], w_ref[...],
                            preferred_element_type=jnp.float32)

    @pl.when(k == pl.num_programs(1) - 1)
    def _finalize():
        o_ref[...] = _res_ln_epilogue(acc_ref[...], g_ref[...], b2_ref[...],
                                      eps, o_ref.dtype)


def pallas_linear_residual_ln(x, wp, b_row, residual, g_row, beta_row,
                              eps=1e-12, out_dtype=jnp.bfloat16, tm=_TM):
    """LayerNorm(x @ w + b + residual) fused into the matmul epilogue.

    N (the LayerNorm axis) is kept whole so the statistics are exact; weight wp
    is pre-padded in K only. Output is bf16 by default (stats stay f32).
    """
    # TODO(synk): LayerNorm eps=1e-12 everywhere (HF Electra value); a PyTorch
    # nn.TransformerDecoder-style block would use 1e-5.
    M, K = x.shape
    Kp, N = wp.shape
    tm = min(tm, _round_up(M, 8))
    Mp = _round_up(M, tm)
    tk = _TK if Kp > _TK else Kp

    if x.dtype != jnp.bfloat16:
        x = x.astype(jnp.bfloat16)
    if (Mp, Kp) != (M, K):
        x = jnp.pad(x, ((0, Mp - M), (0, Kp - K)))
    if Mp != M:
        residual = jnp.pad(residual, ((0, Mp - M), (0, 0)))

    gm, gk = Mp // tm, Kp // tk
    r_item = jnp.dtype(residual.dtype).itemsize
    o_item = jnp.dtype(out_dtype).itemsize
    tile_bytes = (2 * tm * tk + 2 * tk * N + 12 * N
                  + (4 + r_item + o_item) * tm * N)
    cost = pl.CostEstimate(
        flops=2 * Mp * N * Kp + 8 * Mp * N,
        transcendentals=Mp,
        bytes_accessed=2 * (Mp * Kp + Kp * N) + (4 + r_item + o_item) * Mp * N)

    if gk == 1:
        out = pl.pallas_call(
            functools.partial(_linear_res_ln_kernel_1k, eps=eps),
            out_shape=jax.ShapeDtypeStruct((Mp, N), out_dtype),
            grid=(gm,),
            in_specs=[
                pl.BlockSpec((tm, tk), lambda i: (i, 0)),
                pl.BlockSpec((tk, N), lambda i: (0, 0)),
                pl.BlockSpec((1, N), lambda i: (0, 0)),
                pl.BlockSpec((tm, N), lambda i: (i, 0)),
                pl.BlockSpec((1, N), lambda i: (0, 0)),
                pl.BlockSpec((1, N), lambda i: (0, 0)),
            ],
            out_specs=pl.BlockSpec((tm, N), lambda i: (i, 0)),
            compiler_params=pltpu.CompilerParams(
                dimension_semantics=("parallel",),
                vmem_limit_bytes=_vmem_limit(tile_bytes)),
            cost_estimate=cost,
        )(x, wp, b_row, residual, g_row, beta_row)
    else:
        out = pl.pallas_call(
            functools.partial(_linear_res_ln_kernel_mk, eps=eps),
            out_shape=jax.ShapeDtypeStruct((Mp, N), out_dtype),
            grid=(gm, gk),
            in_specs=[
                pl.BlockSpec((tm, tk), lambda i, k: (i, k)),
                pl.BlockSpec((tk, N), lambda i, k: (k, 0)),
                pl.BlockSpec((1, N), lambda i, k: (0, 0)),
                pl.BlockSpec((tm, N), lambda i, k: (i, 0)),
                pl.BlockSpec((1, N), lambda i, k: (0, 0)),
                pl.BlockSpec((1, N), lambda i, k: (0, 0)),
            ],
            out_specs=pl.BlockSpec((tm, N), lambda i, k: (i, 0)),
            scratch_shapes=[pltpu.VMEM((tm, N), jnp.float32)],
            compiler_params=pltpu.CompilerParams(
                dimension_semantics=("parallel", "arbitrary"),
                vmem_limit_bytes=_vmem_limit(tile_bytes)),
            cost_estimate=cost,
        )(x, wp, b_row, residual, g_row, beta_row)

    return out[:M] if Mp != M else out


# ------------------------------ LayerNorm kernel -----------------------------

def _layernorm_kernel(x_ref, g_ref, b_ref, o_ref, *, eps):
    x = x_ref[...].astype(jnp.float32)
    mean = jnp.mean(x, axis=-1, keepdims=True)
    c = x - mean
    var = jnp.mean(c * c, axis=-1, keepdims=True)
    o_ref[...] = (c * jax.lax.rsqrt(var + eps) * g_ref[...]
                  + b_ref[...]).astype(o_ref.dtype)


def pallas_layernorm(x, g_row, b_row, eps=1e-12, out_dtype=jnp.bfloat16, tm=_TM):
    """Row-tiled plain LayerNorm; x: (M, H). g_row/b_row: prepped (1, H) f32."""
    M, H = x.shape
    tm = min(tm, _round_up(M, 8))
    Mp = _round_up(M, tm)
    if Mp != M:
        x = jnp.pad(x, ((0, Mp - M), (0, 0)))
    out = pl.pallas_call(
        functools.partial(_layernorm_kernel, eps=eps),
        out_shape=jax.ShapeDtypeStruct((Mp, H), out_dtype),
        grid=(Mp // tm,),
        in_specs=[
            pl.BlockSpec((tm, H), lambda i: (i, 0)),
            pl.BlockSpec((1, H), lambda i: (0, 0)),
            pl.BlockSpec((1, H), lambda i: (0, 0)),
        ],
        out_specs=pl.BlockSpec((tm, H), lambda i: (i, 0)),
        compiler_params=pltpu.CompilerParams(
            dimension_semantics=("parallel",),
            vmem_limit_bytes=_vmem_limit(8 * tm * H)),
    )(x, g_row, b_row)
    return out[:M] if Mp != M else out


# ------------------------------ attention kernels ----------------------------
# One batch per grid step; all heads handled inside the kernel on the packed
# (L, H) layout. Per-head outputs are stored directly into per-head lane slices
# of the output block (no concatenate; one head's score tile live at a time).
# TODO(synk): for realistic head_dim (64/128) and long Lk, switch to a
#             head-major (B, nh, L, d) layout with d padded to 128 lanes and an
#             Lq/KV-tiled online-softmax (flash) grid; not needed at these sizes.

def _attn_heads(q, k, v, bias, o_ref, *, num_heads, scale):
    # q: (Lq, H) bf16, k/v: (Lk, H) bf16, bias: f32 broadcastable to (Lq, Lk) or None
    H = q.shape[-1]
    d = H // num_heads
    for h in range(num_heads):
        qh = q[:, h * d:(h + 1) * d]
        kh = k[:, h * d:(h + 1) * d]
        vh = v[:, h * d:(h + 1) * d]
        s = jax.lax.dot_general(qh, kh, (((1,), (1,)), ((), ())),
                                preferred_element_type=jnp.float32) * scale
        if bias is not None:
            s = s + bias
        m = jnp.max(s, axis=-1, keepdims=True)
        p = jnp.exp(s - m)
        denom = jnp.sum(p, axis=-1, keepdims=True)
        ctx = jnp.dot(p.astype(jnp.bfloat16), vh,
                      preferred_element_type=jnp.float32)
        # TODO(synk): pl.reciprocal(approx=True) -> ~1e-3-level relative error.
        o_ref[0, :, h * d:(h + 1) * d] = (
            ctx * pl.reciprocal(denom, approx=True)).astype(o_ref.dtype)


def _enc_self_attn_kernel(qkv_ref, o_ref, *, num_heads, scale):
    # Encoder was called without an attention mask -> no bias at all.
    x = qkv_ref[0]                               # (L, 3H) bf16
    H = x.shape[-1] // 3
    _attn_heads(x[:, :H], x[:, H:2 * H], x[:, 2 * H:], None, o_ref,
                num_heads=num_heads, scale=scale)


def _dec_self_attn_kernel(qkv_ref, kbias_ref, o_ref, *, num_heads, scale):
    x = qkv_ref[0]                               # (L, 3H) bf16
    L = x.shape[0]
    H = x.shape[-1] // 3
    row = jax.lax.broadcasted_iota(jnp.int32, (L, L), 0)
    col = jax.lax.broadcasted_iota(jnp.int32, (L, L), 1)
    causal = jnp.where(row >= col, 0.0, -1e9).astype(jnp.float32)
    bias = jnp.minimum(causal, kbias_ref[0])     # combined mask, never < -1e9
    _attn_heads(x[:, :H], x[:, H:2 * H], x[:, 2 * H:], bias, o_ref,
                num_heads=num_heads, scale=scale)


def _cross_attn_kernel(q_ref, kv_ref, kbias_ref, o_ref, *, num_heads, scale):
    q = q_ref[0]                                 # (Lq, H) bf16
    kv = kv_ref[0]                               # (Lk, 2H) bf16
    H = q.shape[-1]
    _attn_heads(q, kv[:, :H], kv[:, H:], kbias_ref[0], o_ref,
                num_heads=num_heads, scale=scale)


def pallas_encoder_self_attention(qkv, num_heads, scale):
    B, L, H3 = qkv.shape
    H = H3 // 3
    return pl.pallas_call(
        functools.partial(_enc_self_attn_kernel, num_heads=num_heads, scale=scale),
        out_shape=jax.ShapeDtypeStruct((B, L, H), jnp.bfloat16),
        grid=(B,),
        in_specs=[pl.BlockSpec((1, L, H3), lambda b: (b, 0, 0))],
        out_specs=pl.BlockSpec((1, L, H), lambda b: (b, 0, 0)),
        compiler_params=pltpu.CompilerParams(
            dimension_semantics=("parallel",),
            vmem_limit_bytes=_vmem_limit(2 * L * (H3 + H) + 4 * L * L)),
    )(qkv)


def pallas_decoder_self_attention(qkv, key_bias, num_heads, scale):
    B, L, H3 = qkv.shape
    H = H3 // 3
    return pl.pallas_call(
        functools.partial(_dec_self_attn_kernel, num_heads=num_heads, scale=scale),
        out_shape=jax.ShapeDtypeStruct((B, L, H), jnp.bfloat16),
        grid=(B,),
        in_specs=[pl.BlockSpec((1, L, H3), lambda b: (b, 0, 0)),
                  pl.BlockSpec((1, 1, L), lambda b: (b, 0, 0))],
        out_specs=pl.BlockSpec((1, L, H), lambda b: (b, 0, 0)),
        compiler_params=pltpu.CompilerParams(
            dimension_semantics=("parallel",),
            vmem_limit_bytes=_vmem_limit(2 * L * (H3 + H) + 8 * L * L)),
    )(qkv, key_bias)


def pallas_cross_attention(q, kv, key_bias, num_heads, scale):
    B, Lq, H = q.shape
    Lk = kv.shape[1]
    return pl.pallas_call(
        functools.partial(_cross_attn_kernel, num_heads=num_heads, scale=scale),
        out_shape=jax.ShapeDtypeStruct((B, Lq, H), jnp.bfloat16),
        grid=(B,),
        in_specs=[pl.BlockSpec((1, Lq, H), lambda b: (b, 0, 0)),
                  pl.BlockSpec((1, Lk, 2 * H), lambda b: (b, 0, 0)),
                  pl.BlockSpec((1, 1, Lk), lambda b: (b, 0, 0))],
        out_specs=pl.BlockSpec((1, Lq, H), lambda b: (b, 0, 0)),
        compiler_params=pltpu.CompilerParams(
            dimension_semantics=("parallel",),
            vmem_limit_bytes=_vmem_limit(2 * (Lq + 3 * Lk) * H + 4 * Lq * Lk)),
    )(q, kv, key_bias)


# ------------------------------- model pieces -------------------------------

def electra_encoder(enc_ids, params, cfg):
    B, L = enc_ids.shape
    E, He = cfg["embedding_size"], cfg["enc_hidden"]
    nh = cfg["num_heads"]
    scale = 1.0 / math.sqrt(He // nh)

    # Electra embeddings: word + position + token_type, then LayerNorm.
    word = params["word_emb"][enc_ids]                       # (B, L, E)  XLA gather
    pos = params["pos_emb"][:L][None, :, :]
    tok = params["tok_type_emb"][0][None, None, :]
    emb = (word + pos + tok).reshape(B * L, E)
    emb = pallas_layernorm(emb, params["emb_ln"]["g"], params["emb_ln"]["b"])

    # ElectraModel.embeddings_project (embedding_size != hidden_size)
    x = pallas_linear(emb, params["enc_emb_proj"]["w"],
                      params["enc_emb_proj"]["b"], He)       # (B*L, He) bf16

    for lp in params["enc_layers"]:
        qkv = pallas_linear(x, lp["qkv"]["w"], lp["qkv"]["b"], 3 * He
                            ).reshape(B, L, 3 * He)
        ctx = pallas_encoder_self_attention(qkv, nh, scale).reshape(B * L, He)
        # o-projection with fused residual-add + LayerNorm epilogue (bf16 out)
        x = pallas_linear_residual_ln(ctx, lp["o_ln"]["w"], lp["o_ln"]["b"], x,
                                      lp["o_ln"]["g"], lp["o_ln"]["beta"])
        ff = pallas_linear(x, lp["ffn1"]["w"], lp["ffn1"]["b"], cfg["ffn"],
                           activation="gelu")
        x = pallas_linear_residual_ln(ff, lp["ffn2_ln"]["w"], lp["ffn2_ln"]["b"], x,
                                      lp["ffn2_ln"]["g"], lp["ffn2_ln"]["beta"])
    return x                                                  # (B*L, He) bf16


def decoders(enc_ids, enc_flat, dec_ids, dec_emb_flat, params, cfg):
    B, Ld = dec_ids.shape
    Le = enc_ids.shape[1]
    Hd = cfg["dec_hidden"]
    nh = cfg["num_heads"]
    scale = 1.0 / math.sqrt(Hd // nh)

    # TODO(synk): exact Decoders positional-encoding scheme is not in the source
    # provided; a learned positional embedding added to dec_embeddings is assumed.
    pos = params["dec_pos_emb"][:Ld][None, :, :]
    x = (dec_emb_flat.reshape(B, Ld, Hd) + pos).reshape(B * Ld, Hd
                                                        ).astype(jnp.bfloat16)

    # Key-padding biases only: O(B*L); the causal mask is built in-kernel.
    dec_kbias = jnp.where(dec_ids != cfg["padding_idx"], 0.0, -1e9
                          ).astype(jnp.float32)[:, None, :]            # (B,1,Ld)
    enc_kbias = jnp.where(enc_ids != cfg["padding_idx"], 0.0, -1e9
                          ).astype(jnp.float32)[:, None, :]            # (B,1,Le)

    for lp in params["dec_layers"]:
        qkv = pallas_linear(x, lp["self_qkv"]["w"], lp["self_qkv"]["b"], 3 * Hd
                            ).reshape(B, Ld, 3 * Hd)
        ctx = pallas_decoder_self_attention(qkv, dec_kbias, nh, scale
                                            ).reshape(B * Ld, Hd)
        x = pallas_linear_residual_ln(ctx, lp["self_o_ln"]["w"],
                                      lp["self_o_ln"]["b"], x,
                                      lp["self_o_ln"]["g"], lp["self_o_ln"]["beta"])

        q = pallas_linear(x, lp["cross_q"]["w"], lp["cross_q"]["b"], Hd
                          ).reshape(B, Ld, Hd)
        kv = pallas_linear(enc_flat, lp["cross_kv"]["w"], lp["cross_kv"]["b"],
                           2 * Hd).reshape(B, Le, 2 * Hd)
        ctx = pallas_cross_attention(q, kv, enc_kbias, nh, scale
                                     ).reshape(B * Ld, Hd)
        x = pallas_linear_residual_ln(ctx, lp["cross_o_ln"]["w"],
                                      lp["cross_o_ln"]["b"], x,
                                      lp["cross_o_ln"]["g"], lp["cross_o_ln"]["beta"])

        ff = pallas_linear(x, lp["ffn1"]["w"], lp["ffn1"]["b"], cfg["ffn"],
                           activation="gelu")
        x = pallas_linear_residual_ln(ff, lp["ffn2_ln"]["w"], lp["ffn2_ln"]["b"], x,
                                      lp["ffn2_ln"]["g"], lp["ffn2_ln"]["beta"])
    return x                                                   # (B*Ld, Hd) bf16


def pronunciation2spelling(params, enc_ids, dec_ids, cfg):
    B, Ld = dec_ids.shape
    E, Hd = cfg["embedding_size"], cfg["dec_hidden"]
    # shared input word embedding (encoders.get_input_embeddings())
    dec_emb = params["word_emb"][dec_ids].reshape(B * Ld, E)
    # module-level embedding_projection (embedding_size != dec hidden_size)
    dec_emb = pallas_linear(dec_emb, params["embedding_projection"]["w"],
                            params["embedding_projection"]["b"], Hd,
                            out_dtype=jnp.float32)
    enc_flat = electra_encoder(enc_ids, params, cfg)           # (B*Le, He) bf16
    dec_out = decoders(enc_ids, enc_flat, dec_ids, dec_emb, params, cfg)
    # vocab head: N padded to a lane-dense multiple of 128 inside pallas_linear
    logits = pallas_linear(dec_out, params["dense"]["w"], params["dense"]["b"],
                           cfg["trg_vocab"], out_dtype=jnp.float32)
    return logits.reshape(B, Ld, cfg["trg_vocab"])


# ------------------------------- param init ---------------------------------

def init_params(key, cfg):
    """Raw (PyTorch-like) f32 parameters."""
    E, He, Hd, F = (cfg["embedding_size"], cfg["enc_hidden"],
                    cfg["dec_hidden"], cfg["ffn"])
    keys = iter(jax.random.split(key, 512))

    def dense(din, dout):
        return {"w": 0.02 * jax.random.normal(next(keys), (din, dout), jnp.float32),
                "b": jnp.zeros((dout,), jnp.float32)}

    def ln(d):
        return {"g": jnp.ones((d,), jnp.float32), "b": jnp.zeros((d,), jnp.float32)}

    def self_attn_block(h):
        # fused QKV weights (equivalent to 3 separate nn.Linear layers)
        return {"qkv": dense(h, 3 * h), "o": dense(h, h)}

    def cross_attn_block(hq, hkv, h):
        # fused KV weights (q keeps its own input dim)
        return {"q": dense(hq, h), "kv": dense(hkv, 2 * h), "o": dense(h, h)}

    return {
        "word_emb": 0.02 * jax.random.normal(next(keys), (cfg["enc_vocab"], E), jnp.float32),
        "pos_emb": 0.02 * jax.random.normal(next(keys), (cfg["max_pos"], E), jnp.float32),
        "tok_type_emb": 0.02 * jax.random.normal(next(keys), (2, E), jnp.float32),
        "emb_ln": ln(E),
        "enc_emb_proj": dense(E, He),          # inside ElectraModel
        "embedding_projection": dense(E, Hd),  # module-level projection
        "dec_pos_emb": 0.02 * jax.random.normal(next(keys), (cfg["max_pos"], Hd), jnp.float32),
        "enc_layers": [
            {"attn": self_attn_block(He), "ln1": ln(He),
             "ffn1": dense(He, F), "ffn2": dense(F, He), "ln2": ln(He)}
            for _ in range(cfg["enc_layers"])],
        "dec_layers": [
            {"self_attn": self_attn_block(Hd), "ln1": ln(Hd),
             "cross_attn": cross_attn_block(Hd, He, Hd), "ln2": ln(Hd),
             "ffn1": dense(Hd, F), "ffn2": dense(F, Hd), "ln3": ln(Hd)}
            for _ in range(cfg["dec_layers"])],
        "dense": dense(Hd, cfg["trg_vocab"]),
    }


def prepare_params(raw, cfg):
    """One-time kernel-ready prep: bf16 cast + tile padding for every weight,
    (1, N) f32 rows for biases / LN params. Done once, outside the forward."""
    del cfg

    def row(v):
        return v.astype(jnp.float32).reshape(1, -1)

    def enc_layer(lp):
        return {"qkv": _prep_dense(lp["attn"]["qkv"]),
                "o_ln": _prep_dense_ln(lp["attn"]["o"], lp["ln1"]),
                "ffn1": _prep_dense(lp["ffn1"]),
                "ffn2_ln": _prep_dense_ln(lp["ffn2"], lp["ln2"])}

    def dec_layer(lp):
        return {"self_qkv": _prep_dense(lp["self_attn"]["qkv"]),
                "self_o_ln": _prep_dense_ln(lp["self_attn"]["o"], lp["ln1"]),
                "cross_q": _prep_dense(lp["cross_attn"]["q"]),
                "cross_kv": _prep_dense(lp["cross_attn"]["kv"]),
                "cross_o_ln": _prep_dense_ln(lp["cross_attn"]["o"], lp["ln2"]),
                "ffn1": _prep_dense(lp["ffn1"]),
                "ffn2_ln": _prep_dense_ln(lp["ffn2"], lp["ln3"])}

    return {
        "word_emb": raw["word_emb"],
        "pos_emb": raw["pos_emb"],
        "tok_type_emb": raw["tok_type_emb"],
        "emb_ln": {"g": row(raw["emb_ln"]["g"]), "b": row(raw["emb_ln"]["b"])},
        "enc_emb_proj": _prep_dense(raw["enc_emb_proj"]),
        "embedding_projection": _prep_dense(raw["embedding_projection"]),
        "dec_pos_emb": raw["dec_pos_emb"],
        "enc_layers": [enc_layer(lp) for lp in raw["enc_layers"]],
        "dec_layers": [dec_layer(lp) for lp in raw["dec_layers"]],
        "dense": _prep_dense(raw["dense"]),
    }


# ---------------------------------- main -------------------------------------

if __name__ == "__main__":
    cfg = dict(
        enc_vocab=32, trg_vocab=40,
        embedding_size=16, enc_hidden=32, dec_hidden=32,
        num_heads=2, ffn=64, enc_layers=2, dec_layers=2,
        max_pos=32, padding_idx=0,
    )
    B, Le, Ld = 2, 8, 8

    key = jax.random.PRNGKey(0)
    pkey, ekey, dkey = jax.random.split(key, 3)
    raw_params = init_params(pkey, cfg)
    params = prepare_params(raw_params, cfg)   # one-time bf16 cast + tile padding

    enc_ids = jax.random.randint(ekey, (B, Le), 1, cfg["enc_vocab"], dtype=jnp.int32)
    dec_ids = jax.random.randint(dkey, (B, Ld), 1, cfg["enc_vocab"], dtype=jnp.int32)
    # add some trailing padding to exercise the decoder masks
    enc_ids = enc_ids.at[1, 6:].set(cfg["padding_idx"])
    dec_ids = dec_ids.at[1, 6:].set(cfg["padding_idx"])

    fwd = jax.jit(lambda p, e, d: pronunciation2spelling(p, e, d, cfg))
    out = jax.block_until_ready(fwd(params, enc_ids, dec_ids))

    assert out.shape == (B, Ld, cfg["trg_vocab"]), out.shape
    assert out.dtype == jnp.float32
    assert bool(jnp.all(jnp.isfinite(out)))
    print("KERNEL_OK")
</pallas_src>

<mosaic_0001>
module attributes {stable_mosaic.version = 11 : i64} {
  func.func @_linear_kernel_1k(%arg0: i32, %arg1: i32, %arg2: memref<16x128xbf16, #tpu.memory_space<vmem>>, %arg3: memref<128x128xbf16, #tpu.memory_space<vmem>>, %arg4: memref<1x128xf32, #tpu.memory_space<vmem>>, %arg5: memref<16x128xbf16, #tpu.memory_space<vmem>>) attributes {dimension_semantics = [#tpu.dimension_semantics<parallel>, #tpu.dimension_semantics<parallel>], iteration_bounds = array<i64: 1, 1>, scalar_prefetch = 0 : i64, scratch_operands = 0 : i64, tpu.core_type = #tpu.core_type<tc>, window_params = [{transform_indices = @transform_0, window_bounds = array<i64: 16, 128>}, {transform_indices = @transform_1, window_bounds = array<i64: 128, 128>}, {transform_indices = @transform_2, window_bounds = array<i64: 1, 128>}, {transform_indices = @transform_3, window_bounds = array<i64: 16, 128>}]} {
    %c0 = arith.constant 0 : index
    %c0_0 = arith.constant 0 : index
    %0 = vector.load %arg2[%c0, %c0_0] : memref<16x128xbf16, #tpu.memory_space<vmem>>, vector<16x128xbf16>
    %c0_1 = arith.constant 0 : index
    %c0_2 = arith.constant 0 : index
    %1 = vector.load %arg3[%c0_1, %c0_2] : memref<128x128xbf16, #tpu.memory_space<vmem>>, vector<128x128xbf16>
    %cst = arith.constant dense<0.000000e+00> : vector<16x128xf32>
    %2 = tpu.matmul %0, %1, %cst {dimension_numbers = #tpu.dot_dimension_numbers<[1], [0], [0], [1], [0, 0, 1, 1], [], []>} : vector<16x128xbf16>, vector<128x128xbf16>, vector<16x128xf32> -> vector<16x128xf32>
    %c0_3 = arith.constant 0 : index
    %c0_4 = arith.constant 0 : index
    %3 = vector.load %arg4[%c0_3, %c0_4] : memref<1x128xf32, #tpu.memory_space<vmem>>, vector<1x128xf32>
    %4 = vector.broadcast %3 : vector<1x128xf32> to vector<16x128xf32>
    %5 = arith.addf %2, %4 : vector<16x128xf32>
    %6 = arith.truncf %5 : vector<16x128xf32> to vector<16x128xbf16>
    %c0_5 = arith.constant 0 : index
    %c0_6 = arith.constant 0 : index
    %7 = vector.load %arg5[%c0_5, %c0_6] : memref<16x128xbf16, #tpu.memory_space<vmem>>, vector<16x128xbf16>
    tpu.vector_store %arg5[%c0_5, %c0_6], %6 {strides = array<i32>} : memref<16x128xbf16, #tpu.memory_space<vmem>>, vector<16x128xbf16>,
    return
  }
  func.func @transform_0(%arg0: i32, %arg1: i32) -> (i32, i32) {
    %c0_i32 = arith.constant 0 : i32
    %c0_i32_0 = arith.constant 0 : i32
    return %arg0, %c0_i32 : i32, i32
  }
  func.func @transform_1(%arg0: i32, %arg1: i32) -> (i32, i32) {
    %c0_i32 = arith.constant 0 : i32
    %c0_i32_0 = arith.constant 0 : i32
    return %c0_i32, %arg1 : i32, i32
  }
  func.func @transform_2(%arg0: i32, %arg1: i32) -> (i32, i32) {
    %c0_i32 = arith.constant 0 : i32
    %c0_i32_0 = arith.constant 0 : i32
    return %c0_i32, %arg1 : i32, i32
  }
  func.func @transform_3(%arg0: i32, %arg1: i32) -> (i32, i32) {
    %c0_i32 = arith.constant 0 : i32
    return %arg0, %arg1 : i32, i32
  }
}

module attributes {stable_mosaic.version = 11 : i64} {
  func.func @_layernorm_kernel(%arg0: i32, %arg1: memref<16x16xf32, #tpu.memory_space<vmem>>, %arg2: memref<1x16xf32, #tpu.memory_space<vmem>>, %arg3: memref<1x16xf32, #tpu.memory_space<vmem>>, %arg4: memref<16x16xbf16, #tpu.memory_space<vmem>>) attributes {dimension_semantics = [#tpu.dimension_semantics<parallel>], iteration_bounds = array<i64: 1>, scalar_prefetch = 0 : i64, scratch_operands = 0 : i64, tpu.core_type = #tpu.core_type<tc>, window_params = [{transform_indices = @transform_0, window_bounds = array<i64: 16, 16>}, {pipeline_mode = #tpu.pipeline_mode<synchronous>, transform_indices = @transform_1, window_bounds = array<i64: 1, 16>}, {pipeline_mode = #tpu.pipeline_mode<synchronous>, transform_indices = @transform_2, window_bounds = array<i64: 1, 16>}, {transform_indices = @transform_3, window_bounds = array<i64: 16, 16>}]} {
    %c0 = arith.constant 0 : index
    %c0_0 = arith.constant 0 : index
    %0 = vector.load %arg1[%c0, %c0_0] : memref<16x16xf32, #tpu.memory_space<vmem>>, vector<16x16xf32>
    %cst = arith.constant dense<0.000000e+00> : vector<16xf32>
    %1 = vector.multi_reduction <add>, %0, %cst [1] : vector<16x16xf32> to vector<16xf32>
    %2 = vector.shape_cast %1 : vector<16xf32> to vector<16x1xf32>
    %cst_1 = arith.constant 1.600000e+01 : f32
    %3 = vector.broadcast %cst_1 : f32 to vector<16x1xf32>
    %4 = arith.divf %2, %3 : vector<16x1xf32>
    %5 = vector.broadcast %4 : vector<16x1xf32> to vector<16x16xf32>
    %6 = arith.subf %0, %5 : vector<16x16xf32>
    %7 = arith.mulf %6, %6 : vector<16x16xf32>
    %cst_2 = arith.constant dense<0.000000e+00> : vector<16xf32>
    %8 = vector.multi_reduction <add>, %7, %cst_2 [1] : vector<16x16xf32> to vector<16xf32>
    %9 = vector.shape_cast %8 : vector<16xf32> to vector<16x1xf32>
    %cst_3 = arith.constant 1.600000e+01 : f32
    %10 = vector.broadcast %cst_3 : f32 to vector<16x1xf32>
    %11 = arith.divf %9, %10 : vector<16x1xf32>
    %cst_4 = arith.constant 9.99999996E-13 : f32
    %12 = vector.broadcast %cst_4 : f32 to vector<16x1xf32>
    %13 = arith.addf %11, %12 : vector<16x1xf32>
    %14 = math.rsqrt %13 : vector<16x1xf32>
    %15 = vector.broadcast %14 : vector<16x1xf32> to vector<16x16xf32>
    %16 = arith.mulf %6, %15 : vector<16x16xf32>
    %c0_5 = arith.constant 0 : index
    %c0_6 = arith.constant 0 : index
    %17 = vector.load %arg2[%c0_5, %c0_6] : memref<1x16xf32, #tpu.memory_space<vmem>>, vector<1x16xf32>
    %18 = vector.broadcast %17 : vector<1x16xf32> to vector<16x16xf32>
    %19 = arith.mulf %16, %18 : vector<16x16xf32>
    %c0_7 = arith.constant 0 : index
    %c0_8 = arith.constant 0 : index
    %20 = vector.load %arg3[%c0_7, %c0_8] : memref<1x16xf32, #tpu.memory_space<vmem>>, vector<1x16xf32>
    %21 = vector.broadcast %20 : vector<1x16xf32> to vector<16x16xf32>
    %22 = arith.addf %19, %21 : vector<16x16xf32>
    %23 = arith.truncf %22 : vector<16x16xf32> to vector<16x16xbf16>
    %c0_9 = arith.constant 0 : index
    %c0_10 = arith.constant 0 : index
    %24 = vector.load %arg4[%c0_9, %c0_10] : memref<16x16xbf16, #tpu.memory_space<vmem>>, vector<16x16xbf16>
    tpu.vector_store %arg4[%c0_9, %c0_10], %23 {strides = array<i32>} : memref<16x16xbf16, #tpu.memory_space<vmem>>, vector<16x16xbf16>,
    return
  }
  func.func @transform_0(%arg0: i32) -> (i32, i32) {
    %c0_i32 = arith.constant 0 : i32
    %c0_i32_0 = arith.constant 0 : i32
    return %arg0, %c0_i32 : i32, i32
  }
  func.func @transform_1(%arg0: i32) -> (i32, i32) {
    %c0_i32 = arith.constant 0 : i32
    %c0_i32_0 = arith.constant 0 : i32
    %c0_i32_1 = arith.constant 0 : i32
    return %c0_i32, %c0_i32_0 : i32, i32
  }
  func.func @transform_2(%arg0: i32) -> (i32, i32) {
    %c0_i32 = arith.constant 0 : i32
    %c0_i32_0 = arith.constant 0 : i32
    %c0_i32_1 = arith.constant 0 : i32
    return %c0_i32, %c0_i32_0 : i32, i32
  }
  func.func @transform_3(%arg0: i32) -> (i32, i32) {
    %c0_i32 = arith.constant 0 : i32
    %c0_i32_0 = arith.constant 0 : i32
    return %arg0, %c0_i32 : i32, i32
  }
}

module attributes {stable_mosaic.version = 11 : i64} {
  func.func @_enc_self_attn_kernel(%arg0: i32, %arg1: memref<1x8x96xbf16, #tpu.memory_space<vmem>>, %arg2: memref<1x8x32xbf16, #tpu.memory_space<vmem>>) attributes {dimension_semantics = [#tpu.dimension_semantics<parallel>], iteration_bounds = array<i64: 2>, scalar_prefetch = 0 : i64, scratch_operands = 0 : i64, tpu.core_type = #tpu.core_type<tc>, window_params = [{transform_indices = @transform_0, window_bounds = array<i64: 1, 8, 96>}, {transform_indices = @transform_1, window_bounds = array<i64: 1, 8, 32>}]} {
    %c0 = arith.constant 0 : index
    %c0_0 = arith.constant 0 : index
    %c0_1 = arith.constant 0 : index
    %0 = vector.load %arg1[%c0, %c0_0, %c0_1] : memref<1x8x96xbf16, #tpu.memory_space<vmem>>, vector<1x8x96xbf16>
    %1 = vector.shape_cast %0 : vector<1x8x96xbf16> to vector<8x96xbf16>
    %2 = vector.extract_strided_slice %1 {offsets = [0, 0], sizes = [8, 32], strides = [1, 1]} : vector<8x96xbf16> to vector<8x32xbf16>
    %3 = vector.extract_strided_slice %1 {offsets = [0, 32], sizes = [8, 32], strides = [1, 1]} : vector<8x96xbf16> to vector<8x32xbf16>
    %4 = vector.extract_strided_slice %1 {offsets = [0, 64], sizes = [8, 32], strides = [1, 1]} : vector<8x96xbf16> to vector<8x32xbf16>
    %5 = vector.extract_strided_slice %2 {offsets = [0, 0], sizes = [8, 16], strides = [1, 1]} : vector<8x32xbf16> to vector<8x16xbf16>
    %6 = vector.extract_strided_slice %3 {offsets = [0, 0], sizes = [8, 16], strides = [1, 1]} : vector<8x32xbf16> to vector<8x16xbf16>
    %7 = vector.extract_strided_slice %4 {offsets = [0, 0], sizes = [8, 16], strides = [1, 1]} : vector<8x32xbf16> to vector<8x16xbf16>
    %cst = arith.constant dense<0.000000e+00> : vector<8x8xf32>
    %8 = tpu.matmul %5, %6, %cst {dimension_numbers = #tpu.dot_dimension_numbers<[1], [1], [0], [0], [0, 0, 1, 0], [], []>} : vector<8x16xbf16>, vector<8x16xbf16>, vector<8x8xf32> -> vector<8x8xf32>
    %cst_2 = arith.constant 2.500000e-01 : f32
    %9 = vector.broadcast %cst_2 : f32 to vector<8x8xf32>
    %10 = arith.mulf %8, %9 : vector<8x8xf32>
    %cst_3 = arith.constant dense<0xFF800000> : vector<8xf32>
    %11 = vector.multi_reduction <maximumf>, %10, %cst_3 [1] : vector<8x8xf32> to vector<8xf32>
    %12 = vector.shape_cast %11 : vector<8xf32> to vector<8x1xf32>
    %13 = vector.broadcast %12 : vector<8x1xf32> to vector<8x8xf32>
    %14 = arith.subf %10, %13 : vector<8x8xf32>
    %15 = math.exp %14 : vector<8x8xf32>
    %cst_4 = arith.constant dense<0.000000e+00> : vector<8xf32>
    %16 = vector.multi_reduction <add>, %15, %cst_4 [1] : vector<8x8xf32> to vector<8xf32>
    %17 = vector.shape_cast %16 : vector<8xf32> to vector<8x1xf32>
    %18 = arith.truncf %15 : vector<8x8xf32> to vector<8x8xbf16>
    %cst_5 = arith.constant dense<0.000000e+00> : vector<8x16xf32>
    %19 = tpu.matmul %18, %7, %cst_5 {dimension_numbers = #tpu.dot_dimension_numbers<[1], [0], [0], [1], [0, 0, 1, 1], [], []>} : vector<8x8xbf16>, vector<8x16xbf16>, vector<8x16xf32> -> vector<8x16xf32>
    %20 = tpu.reciprocal %17 {approx = true} : vector<8x1xf32> -> vector<8x1xf32>
    %21 = vector.broadcast %20 : vector<8x1xf32> to vector<8x16xf32>
    %22 = arith.mulf %19, %21 : vector<8x16xf32>
    %23 = arith.truncf %22 : vector<8x16xf32> to vector<8x16xbf16>
    %c0_6 = arith.constant 0 : index
    %c0_7 = arith.constant 0 : index
    %c0_8 = arith.constant 0 : index
    %24 = vector.load %arg2[%c0_6, %c0_7, %c0_8] : memref<1x8x32xbf16, #tpu.memory_space<vmem>>, vector<1x8x16xbf16>
    %25 = vector.shape_cast %24 : vector<1x8x16xbf16> to vector<8x16xbf16>
    %26 = vector.shape_cast %23 : vector<8x16xbf16> to vector<1x8x16xbf16>
    tpu.vector_store %arg2[%c0_6, %c0_7, %c0_8], %26 {strides = array<i32>} : memref<1x8x32xbf16, #tpu.memory_space<vmem>>, vector<1x8x16xbf16>,
    %27 = vector.extract_strided_slice %2 {offsets = [0, 16], sizes = [8, 16], strides = [1, 1]} : vector<8x32xbf16> to vector<8x16xbf16>
    %28 = vector.extract_strided_slice %3 {offsets = [0, 16], sizes = [8, 16], strides = [1, 1]} : vector<8x32xbf16> to vector<8x16xbf16>
    %29 = vector.extract_strided_slice %4 {offsets = [0, 16], sizes = [8, 16], strides = [1, 1]} : vector<8x32xbf16> to vector<8x16xbf16>
    %cst_9 = arith.constant dense<0.000000e+00> : vector<8x8xf32>
    %30 = tpu.matmul %27, %28, %cst_9 {dimension_numbers = #tpu.dot_dimension_numbers<[1], [1], [0], [0], [0, 0, 1, 0], [], []>} : vector<8x16xbf16>, vector<8x16xbf16>, vector<8x8xf32> -> vector<8x8xf32>
    %cst_10 = arith.constant 2.500000e-01 : f32
    %31 = vector.broadcast %cst_10 : f32 to vector<8x8xf32>
    %32 = arith.mulf %30, %31 : vector<8x8xf32>
    %cst_11 = arith.constant dense<0xFF800000> : vector<8xf32>
    %33 = vector.multi_reduction <maximumf>, %32, %cst_11 [1] : vector<8x8xf32> to vector<8xf32>
    %34 = vector.shape_cast %33 : vector<8xf32> to vector<8x1xf32>
    %35 = vector.broadcast %34 : vector<8x1xf32> to vector<8x8xf32>
    %36 = arith.subf %32, %35 : vector<8x8xf32>
    %37 = math.exp %36 : vector<8x8xf32>
    %cst_12 = arith.constant dense<0.000000e+00> : vector<8xf32>
    %38 = vector.multi_reduction <add>, %37, %cst_12 [1] : vector<8x8xf32> to vector<8xf32>
    %39 = vector.shape_cast %38 : vector<8xf32> to vector<8x1xf32>
    %40 = arith.truncf %37 : vector<8x8xf32> to vector<8x8xbf16>
    %cst_13 = arith.constant dense<0.000000e+00> : vector<8x16xf32>
    %41 = tpu.matmul %40, %29, %cst_13 {dimension_numbers = #tpu.dot_dimension_numbers<[1], [0], [0], [1], [0, 0, 1, 1], [], []>} : vector<8x8xbf16>, vector<8x16xbf16>, vector<8x16xf32> -> vector<8x16xf32>
    %42 = tpu.reciprocal %39 {approx = true} : vector<8x1xf32> -> vector<8x1xf32>
    %43 = vector.broadcast %42 : vector<8x1xf32> to vector<8x16xf32>
    %44 = arith.mulf %41, %43 : vector<8x16xf32>
    %45 = arith.truncf %44 : vector<8x16xf32> to vector<8x16xbf16>
    %c0_14 = arith.constant 0 : index
    %c0_15 = arith.constant 0 : index
    %c16 = arith.constant 16 : index
    %46 = vector.load %arg2[%c0_14, %c0_15, %c16] : memref<1x8x32xbf16, #tpu.memory_space<vmem>>, vector<1x8x16xbf16>
    %47 = vector.shape_cast %46 : vector<1x8x16xbf16> to vector<8x16xbf16>
    %48 = vector.shape_cast %45 : vector<8x16xbf16> to vector<1x8x16xbf16>
    tpu.vector_store %arg2[%c0_14, %c0_15, %c16], %48 {strides = array<i32>} : memref<1x8x32xbf16, #tpu.memory_space<vmem>>, vector<1x8x16xbf16>,
    return
  }
  func.func @transform_0(%arg0: i32) -> (i32, i32, i32) {
    %c0_i32 = arith.constant 0 : i32
    %c0_i32_0 = arith.constant 0 : i32
    %c0_i32_1 = arith.constant 0 : i32
    return %arg0, %c0_i32, %c0_i32_0 : i32, i32, i32
  }
  func.func @transform_1(%arg0: i32) -> (i32, i32, i32) {
    %c0_i32 = arith.constant 0 : i32
    %c0_i32_0 = arith.constant 0 : i32
    %c0_i32_1 = arith.constant 0 : i32
    return %arg0, %c0_i32, %c0_i32_0 : i32, i32, i32
  }
}

module attributes {stable_mosaic.version = 11 : i64} {
  func.func @_linear_res_ln_kernel_1k(%arg0: i32, %arg1: memref<16x128xbf16, #tpu.memory_space<vmem>>, %arg2: memref<128x32xbf16, #tpu.memory_space<vmem>>, %arg3: memref<1x32xf32, #tpu.memory_space<vmem>>, %arg4: memref<16x32xbf16, #tpu.memory_space<vmem>>, %arg5: memref<1x32xf32, #tpu.memory_space<vmem>>, %arg6: memref<1x32xf32, #tpu.memory_space<vmem>>, %arg7: memref<16x32xbf16, #tpu.memory_space<vmem>>) attributes {dimension_semantics = [#tpu.dimension_semantics<parallel>], iteration_bounds = array<i64: 1>, scalar_prefetch = 0 : i64, scratch_operands = 0 : i64, tpu.core_type = #tpu.core_type<tc>, window_params = [{transform_indices = @transform_0, window_bounds = array<i64: 16, 128>}, {pipeline_mode = #tpu.pipeline_mode<synchronous>, transform_indices = @transform_1, window_bounds = array<i64: 128, 32>}, {pipeline_mode = #tpu.pipeline_mode<synchronous>, transform_indices = @transform_2, window_bounds = array<i64: 1, 32>}, {transform_indices = @transform_3, window_bounds = array<i64: 16, 32>}, {pipeline_mode = #tpu.pipeline_mode<synchronous>, transform_indices = @transform_4, window_bounds = array<i64: 1, 32>}, {pipeline_mode = #tpu.pipeline_mode<synchronous>, transform_indices = @transform_5, window_bounds = array<i64: 1, 32>}, {transform_indices = @transform_6, window_bounds = array<i64: 16, 32>}]} {
    %c0 = arith.constant 0 : index
    %c0_0 = arith.constant 0 : index
    %0 = vector.load %arg1[%c0, %c0_0] : memref<16x128xbf16, #tpu.memory_space<vmem>>, vector<16x128xbf16>
    %c0_1 = arith.constant 0 : index
    %c0_2 = arith.constant 0 : index
    %1 = vector.load %arg2[%c0_1, %c0_2] : memref<128x32xbf16, #tpu.memory_space<vmem>>, vector<128x32xbf16>
    %cst = arith.constant dense<0.000000e+00> : vector<16x32xf32>
    %2 = tpu.matmul %0, %1, %cst {dimension_numbers = #tpu.dot_dimension_numbers<[1], [0], [0], [1], [0, 0, 1, 1], [], []>} : vector<16x128xbf16>, vector<128x32xbf16>, vector<16x32xf32> -> vector<16x32xf32>
    %c0_3 = arith.constant 0 : index
    %c0_4 = arith.constant 0 : index
    %3 = vector.load %arg3[%c0_3, %c0_4] : memref<1x32xf32, #tpu.memory_space<vmem>>, vector<1x32xf32>
    %4 = vector.broadcast %3 : vector<1x32xf32> to vector<16x32xf32>
    %5 = arith.addf %2, %4 : vector<16x32xf32>
    %c0_5 = arith.constant 0 : index
    %c0_6 = arith.constant 0 : index
    %6 = vector.load %arg4[%c0_5, %c0_6] : memref<16x32xbf16, #tpu.memory_space<vmem>>, vector<16x32xbf16>
    %7 = arith.extf %6 : vector<16x32xbf16> to vector<16x32xf32>
    %8 = arith.addf %5, %7 : vector<16x32xf32>
    %c0_7 = arith.constant 0 : index
    %c0_8 = arith.constant 0 : index
    %9 = vector.load %arg5[%c0_7, %c0_8] : memref<1x32xf32, #tpu.memory_space<vmem>>, vector<1x32xf32>
    %c0_9 = arith.constant 0 : index
    %c0_10 = arith.constant 0 : index
    %10 = vector.load %arg6[%c0_9, %c0_10] : memref<1x32xf32, #tpu.memory_space<vmem>>, vector<1x32xf32>
    %cst_11 = arith.constant dense<0.000000e+00> : vector<16xf32>
    %11 = vector.multi_reduction <add>, %8, %cst_11 [1] : vector<16x32xf32> to vector<16xf32>
    %12 = vector.shape_cast %11 : vector<16xf32> to vector<16x1xf32>
    %cst_12 = arith.constant 3.200000e+01 : f32
    %13 = vector.broadcast %cst_12 : f32 to vector<16x1xf32>
    %14 = arith.divf %12, %13 : vector<16x1xf32>
    %15 = vector.broadcast %14 : vector<16x1xf32> to vector<16x32xf32>
    %16 = arith.subf %8, %15 : vector<16x32xf32>
    %17 = arith.mulf %16, %16 : vector<16x32xf32>
    %cst_13 = arith.constant dense<0.000000e+00> : vector<16xf32>
    %18 = vector.multi_reduction <add>, %17, %cst_13 [1] : vector<16x32xf32> to vector<16xf32>
    %19 = vector.shape_cast %18 : vector<16xf32> to vector<16x1xf32>
    %cst_14 = arith.constant 3.200000e+01 : f32
    %20 = vector.broadcast %cst_14 : f32 to vector<16x1xf32>
    %21 = arith.divf %19, %20 : vector<16x1xf32>
    %cst_15 = arith.constant 9.99999996E-13 : f32
    %22 = vector.broadcast %cst_15 : f32 to vector<16x1xf32>
    %23 = arith.addf %21, %22 : vector<16x1xf32>
    %24 = math.rsqrt %23 : vector<16x1xf32>
    %25 = vector.broadcast %24 : vector<16x1xf32> to vector<16x32xf32>
    %26 = arith.mulf %16, %25 : vector<16x32xf32>
    %27 = vector.broadcast %9 : vector<1x32xf32> to vector<16x32xf32>
    %28 = arith.mulf %26, %27 : vector<16x32xf32>
    %29 = vector.broadcast %10 : vector<1x32xf32> to vector<16x32xf32>
    %30 = arith.addf %28, %29 : vector<16x32xf32>
    %31 = arith.truncf %30 : vector<16x32xf32> to vector<16x32xbf16>
    %c0_16 = arith.constant 0 : index
    %c0_17 = arith.constant 0 : index
    %32 = vector.load %arg7[%c0_16, %c0_17] : memref<16x32xbf16, #tpu.memory_space<vmem>>, vector<16x32xbf16>
    tpu.vector_store %arg7[%c0_16, %c0_17], %31 {strides = array<i32>} : memref<16x32xbf16, #tpu.memory_space<vmem>>, vector<16x32xbf16>,
    return
  }
  func.func @transform_0(%arg0: i32) -> (i32, i32) {
    %c0_i32 = arith.constant 0 : i32
    %c0_i32_0 = arith.constant 0 : i32
    return %arg0, %c0_i32 : i32, i32
  }
  func.func @transform_1(%arg0: i32) -> (i32, i32) {
    %c0_i32 = arith.constant 0 : i32
    %c0_i32_0 = arith.constant 0 : i32
    %c0_i32_1 = arith.constant 0 : i32
    return %c0_i32, %c0_i32_0 : i32, i32
  }
  func.func @transform_2(%arg0: i32) -> (i32, i32) {
    %c0_i32 = arith.constant 0 : i32
    %c0_i32_0 = arith.constant 0 : i32
    %c0_i32_1 = arith.constant 0 : i32
    return %c0_i32, %c0_i32_0 : i32, i32
  }
  func.func @transform_3(%arg0: i32) -> (i32, i32) {
    %c0_i32 = arith.constant 0 : i32
    %c0_i32_0 = arith.constant 0 : i32
    return %arg0, %c0_i32 : i32, i32
  }
  func.func @transform_4(%arg0: i32) -> (i32, i32) {
    %c0_i32 = arith.constant 0 : i32
    %c0_i32_0 = arith.constant 0 : i32
    %c0_i32_1 = arith.constant 0 : i32
    return %c0_i32, %c0_i32_0 : i32, i32
  }
  func.func @transform_5(%arg0: i32) -> (i32, i32) {
    %c0_i32 = arith.constant 0 : i32
    %c0_i32_0 = arith.constant 0 : i32
    %c0_i32_1 = arith.constant 0 : i32
    return %c0_i32, %c0_i32_0 : i32, i32
  }
  func.func @transform_6(%arg0: i32) -> (i32, i32) {
    %c0_i32 = arith.constant 0 : i32
    %c0_i32_0 = arith.constant 0 : i32
    return %arg0, %c0_i32 : i32, i32
  }
}

module attributes {stable_mosaic.version = 11 : i64} {
  func.func @_linear_kernel_1k(%arg0: i32, %arg1: i32, %arg2: memref<16x128xbf16, #tpu.memory_space<vmem>>, %arg3: memref<128x128xbf16, #tpu.memory_space<vmem>>, %arg4: memref<1x128xf32, #tpu.memory_space<vmem>>, %arg5: memref<16x128xf32, #tpu.memory_space<vmem>>) attributes {dimension_semantics = [#tpu.dimension_semantics<parallel>, #tpu.dimension_semantics<parallel>], iteration_bounds = array<i64: 1, 1>, scalar_prefetch = 0 : i64, scratch_operands = 0 : i64, tpu.core_type = #tpu.core_type<tc>, window_params = [{transform_indices = @transform_0, window_bounds = array<i64: 16, 128>}, {transform_indices = @transform_1, window_bounds = array<i64: 128, 128>}, {transform_indices = @transform_2, window_bounds = array<i64: 1, 128>}, {transform_indices = @transform_3, window_bounds = array<i64: 16, 128>}]} {
    %c0 = arith.constant 0 : index
    %c0_0 = arith.constant 0 : index
    %0 = vector.load %arg2[%c0, %c0_0] : memref<16x128xbf16, #tpu.memory_space<vmem>>, vector<16x128xbf16>
    %c0_1 = arith.constant 0 : index
    %c0_2 = arith.constant 0 : index
    %1 = vector.load %arg3[%c0_1, %c0_2] : memref<128x128xbf16, #tpu.memory_space<vmem>>, vector<128x128xbf16>
    %cst = arith.constant dense<0.000000e+00> : vector<16x128xf32>
    %2 = tpu.matmul %0, %1, %cst {dimension_numbers = #tpu.dot_dimension_numbers<[1], [0], [0], [1], [0, 0, 1, 1], [], []>} : vector<16x128xbf16>, vector<128x128xbf16>, vector<16x128xf32> -> vector<16x128xf32>
    %c0_3 = arith.constant 0 : index
    %c0_4 = arith.constant 0 : index
    %3 = vector.load %arg4[%c0_3, %c0_4] : memref<1x128xf32, #tpu.memory_space<vmem>>, vector<1x128xf32>
    %4 = vector.broadcast %3 : vector<1x128xf32> to vector<16x128xf32>
    %5 = arith.addf %2, %4 : vector<16x128xf32>
    %c0_5 = arith.constant 0 : index
    %c0_6 = arith.constant 0 : index
    %6 = vector.load %arg5[%c0_5, %c0_6] : memref<16x128xf32, #tpu.memory_space<vmem>>, vector<16x128xf32>
    tpu.vector_store %arg5[%c0_5, %c0_6], %5 {strides = array<i32>} : memref<16x128xf32, #tpu.memory_space<vmem>>, vector<16x128xf32>,
    return
  }
  func.func @transform_0(%arg0: i32, %arg1: i32) -> (i32, i32) {
    %c0_i32 = arith.constant 0 : i32
    %c0_i32_0 = arith.constant 0 : i32
    return %arg0, %c0_i32 : i32, i32
  }
  func.func @transform_1(%arg0: i32, %arg1: i32) -> (i32, i32) {
    %c0_i32 = arith.constant 0 : i32
    %c0_i32_0 = arith.constant 0 : i32
    return %c0_i32, %arg1 : i32, i32
  }
  func.func @transform_2(%arg0: i32, %arg1: i32) -> (i32, i32) {
    %c0_i32 = arith.constant 0 : i32
    %c0_i32_0 = arith.constant 0 : i32
    return %c0_i32, %arg1 : i32, i32
  }
  func.func @transform_3(%arg0: i32, %arg1: i32) -> (i32, i32) {
    %c0_i32 = arith.constant 0 : i32
    return %arg0, %arg1 : i32, i32
  }
}

module attributes {stable_mosaic.version = 11 : i64} {
  func.func @_linear_kernel_1k(%arg0: i32, %arg1: i32, %arg2: memref<16x128xbf16, #tpu.memory_space<vmem>>, %arg3: memref<128x128xbf16, #tpu.memory_space<vmem>>, %arg4: memref<1x128xf32, #tpu.memory_space<vmem>>, %arg5: memref<16x128xbf16, #tpu.memory_space<vmem>>) attributes {dimension_semantics = [#tpu.dimension_semantics<parallel>, #tpu.dimension_semantics<parallel>], iteration_bounds = array<i64: 1, 1>, scalar_prefetch = 0 : i64, scratch_operands = 0 : i64, tpu.core_type = #tpu.core_type<tc>, window_params = [{transform_indices = @transform_0, window_bounds = array<i64: 16, 128>}, {transform_indices = @transform_1, window_bounds = array<i64: 128, 128>}, {transform_indices = @transform_2, window_bounds = array<i64: 1, 128>}, {transform_indices = @transform_3, window_bounds = array<i64: 16, 128>}]} {
    %c0 = arith.constant 0 : index
    %c0_0 = arith.constant 0 : index
    %0 = vector.load %arg2[%c0, %c0_0] : memref<16x128xbf16, #tpu.memory_space<vmem>>, vector<16x128xbf16>
    %c0_1 = arith.constant 0 : index
    %c0_2 = arith.constant 0 : index
    %1 = vector.load %arg3[%c0_1, %c0_2] : memref<128x128xbf16, #tpu.memory_space<vmem>>, vector<128x128xbf16>
    %cst = arith.constant dense<0.000000e+00> : vector<16x128xf32>
    %2 = tpu.matmul %0, %1, %cst {dimension_numbers = #tpu.dot_dimension_numbers<[1], [0], [0], [1], [0, 0, 1, 1], [], []>} : vector<16x128xbf16>, vector<128x128xbf16>, vector<16x128xf32> -> vector<16x128xf32>
    %c0_3 = arith.constant 0 : index
    %c0_4 = arith.constant 0 : index
    %3 = vector.load %arg4[%c0_3, %c0_4] : memref<1x128xf32, #tpu.memory_space<vmem>>, vector<1x128xf32>
    %4 = vector.broadcast %3 : vector<1x128xf32> to vector<16x128xf32>
    %5 = arith.addf %2, %4 : vector<16x128xf32>
    %cst_5 = arith.constant 5.000000e-01 : f32
    %6 = vector.broadcast %cst_5 : f32 to vector<16x128xf32>
    %7 = arith.mulf %6, %5 : vector<16x128xf32>
    %cst_6 = arith.constant 4.471500e-02 : f32
    %8 = vector.broadcast %cst_6 : f32 to vector<16x128xf32>
    %9 = arith.mulf %8, %5 : vector<16x128xf32>
    %10 = arith.mulf %9, %5 : vector<16x128xf32>
    %11 = arith.mulf %10, %5 : vector<16x128xf32>
    %12 = arith.addf %5, %11 : vector<16x128xf32>
    %cst_7 = arith.constant 0.797884583 : f32
    %13 = vector.broadcast %cst_7 : f32 to vector<16x128xf32>
    %14 = arith.mulf %13, %12 : vector<16x128xf32>
    %15 = math.tanh %14 : vector<16x128xf32>
    %cst_8 = arith.constant 1.000000e+00 : f32
    %16 = vector.broadcast %cst_8 : f32 to vector<16x128xf32>
    %17 = arith.addf %16, %15 : vector<16x128xf32>
    %18 = arith.mulf %7, %17 : vector<16x128xf32>
    %19 = arith.truncf %18 : vector<16x128xf32> to vector<16x128xbf16>
    %c0_9 = arith.constant 0 : index
    %c0_10 = arith.constant 0 : index
    %20 = vector.load %arg5[%c0_9, %c0_10] : memref<16x128xbf16, #tpu.memory_space<vmem>>, vector<16x128xbf16>
    tpu.vector_store %arg5[%c0_9, %c0_10], %19 {strides = array<i32>} : memref<16x128xbf16, #tpu.memory_space<vmem>>, vector<16x128xbf16>,
    return
  }
  func.func @transform_0(%arg0: i32, %arg1: i32) -> (i32, i32) {
    %c0_i32 = arith.constant 0 : i32
    %c0_i32_0 = arith.constant 0 : i32
    return %arg0, %c0_i32 : i32, i32
  }
  func.func @transform_1(%arg0: i32, %arg1: i32) -> (i32, i32) {
    %c0_i32 = arith.constant 0 : i32
    %c0_i32_0 = arith.constant 0 : i32
    return %c0_i32, %arg1 : i32, i32
  }
  func.func @transform_2(%arg0: i32, %arg1: i32) -> (i32, i32) {
    %c0_i32 = arith.constant 0 : i32
    %c0_i32_0 = arith.constant 0 : i32
    return %c0_i32, %arg1 : i32, i32
  }
  func.func @transform_3(%arg0: i32, %arg1: i32) -> (i32, i32) {
    %c0_i32 = arith.constant 0 : i32
    return %arg0, %arg1 : i32, i32
  }
}

module attributes {stable_mosaic.version = 11 : i64} {
  func.func @_dec_self_attn_kernel(%arg0: i32, %arg1: memref<1x8x96xbf16, #tpu.memory_space<vmem>>, %arg2: memref<1x1x8xf32, #tpu.memory_space<vmem>>, %arg3: memref<1x8x32xbf16, #tpu.memory_space<vmem>>) attributes {dimension_semantics = [#tpu.dimension_semantics<parallel>], iteration_bounds = array<i64: 2>, scalar_prefetch = 0 : i64, scratch_operands = 0 : i64, tpu.core_type = #tpu.core_type<tc>, window_params = [{transform_indices = @transform_0, window_bounds = array<i64: 1, 8, 96>}, {transform_indices = @transform_1, window_bounds = array<i64: 1, 1, 8>}, {transform_indices = @transform_2, window_bounds = array<i64: 1, 8, 32>}]} {
    %c0 = arith.constant 0 : index
    %c0_0 = arith.constant 0 : index
    %c0_1 = arith.constant 0 : index
    %0 = vector.load %arg1[%c0, %c0_0, %c0_1] : memref<1x8x96xbf16, #tpu.memory_space<vmem>>, vector<1x8x96xbf16>
    %1 = vector.shape_cast %0 : vector<1x8x96xbf16> to vector<8x96xbf16>
    %2 = tpu.iota {dimensions = array<i32: 0>} : vector<8x8xi32>
    %3 = tpu.iota {dimensions = array<i32: 1>} : vector<8x8xi32>
    %4 = arith.cmpi sge, %2, %3 : vector<8x8xi32>
    %cst = arith.constant 0.000000e+00 : f32
    %cst_2 = arith.constant -1.000000e+09 : f32
    %5 = vector.broadcast %cst : f32 to vector<8x8xf32>
    %6 = vector.broadcast %cst_2 : f32 to vector<8x8xf32>
    %7 = arith.select %4, %5, %6 : vector<8x8xi1>, vector<8x8xf32>
    %c0_3 = arith.constant 0 : index
    %c0_4 = arith.constant 0 : index
    %c0_5 = arith.constant 0 : index
    %8 = vector.load %arg2[%c0_3, %c0_4, %c0_5] : memref<1x1x8xf32, #tpu.memory_space<vmem>>, vector<1x1x8xf32>
    %9 = vector.shape_cast %8 : vector<1x1x8xf32> to vector<1x8xf32>
    %10 = vector.broadcast %9 : vector<1x8xf32> to vector<8x8xf32>
    %11 = arith.minimumf %7, %10 : vector<8x8xf32>
    %12 = vector.extract_strided_slice %1 {offsets = [0, 0], sizes = [8, 32], strides = [1, 1]} : vector<8x96xbf16> to vector<8x32xbf16>
    %13 = vector.extract_strided_slice %1 {offsets = [0, 32], sizes = [8, 32], strides = [1, 1]} : vector<8x96xbf16> to vector<8x32xbf16>
    %14 = vector.extract_strided_slice %1 {offsets = [0, 64], sizes = [8, 32], strides = [1, 1]} : vector<8x96xbf16> to vector<8x32xbf16>
    %15 = vector.extract_strided_slice %12 {offsets = [0, 0], sizes = [8, 16], strides = [1, 1]} : vector<8x32xbf16> to vector<8x16xbf16>
    %16 = vector.extract_strided_slice %13 {offsets = [0, 0], sizes = [8, 16], strides = [1, 1]} : vector<8x32xbf16> to vector<8x16xbf16>
    %17 = vector.extract_strided_slice %14 {offsets = [0, 0], sizes = [8, 16], strides = [1, 1]} : vector<8x32xbf16> to vector<8x16xbf16>
    %cst_6 = arith.constant dense<0.000000e+00> : vector<8x8xf32>
    %18 = tpu.matmul %15, %16, %cst_6 {dimension_numbers = #tpu.dot_dimension_numbers<[1], [1], [0], [0], [0, 0, 1, 0], [], []>} : vector<8x16xbf16>, vector<8x16xbf16>, vector<8x8xf32> -> vector<8x8xf32>
    %cst_7 = arith.constant 2.500000e-01 : f32
    %19 = vector.broadcast %cst_7 : f32 to vector<8x8xf32>
    %20 = arith.mulf %18, %19 : vector<8x8xf32>
    %21 = arith.addf %20, %11 : vector<8x8xf32>
    %cst_8 = arith.constant dense<0xFF800000> : vector<8xf32>
    %22 = vector.multi_reduction <maximumf>, %21, %cst_8 [1] : vector<8x8xf32> to vector<8xf32>
    %23 = vector.shape_cast %22 : vector<8xf32> to vector<8x1xf32>
    %24 = vector.broadcast %23 : vector<8x1xf32> to vector<8x8xf32>
    %25 = arith.subf %21, %24 : vector<8x8xf32>
    %26 = math.exp %25 : vector<8x8xf32>
    %cst_9 = arith.constant dense<0.000000e+00> : vector<8xf32>
    %27 = vector.multi_reduction <add>, %26, %cst_9 [1] : vector<8x8xf32> to vector<8xf32>
    %28 = vector.shape_cast %27 : vector<8xf32> to vector<8x1xf32>
    %29 = arith.truncf %26 : vector<8x8xf32> to vector<8x8xbf16>
    %cst_10 = arith.constant dense<0.000000e+00> : vector<8x16xf32>
    %30 = tpu.matmul %29, %17, %cst_10 {dimension_numbers = #tpu.dot_dimension_numbers<[1], [0], [0], [1], [0, 0, 1, 1], [], []>} : vector<8x8xbf16>, vector<8x16xbf16>, vector<8x16xf32> -> vector<8x16xf32>
    %31 = tpu.reciprocal %28 {approx = true} : vector<8x1xf32> -> vector<8x1xf32>
    %32 = vector.broadcast %31 : vector<8x1xf32> to vector<8x16xf32>
    %33 = arith.mulf %30, %32 : vector<8x16xf32>
    %34 = arith.truncf %33 : vector<8x16xf32> to vector<8x16xbf16>
    %c0_11 = arith.constant 0 : index
    %c0_12 = arith.constant 0 : index
    %c0_13 = arith.constant 0 : index
    %35 = vector.load %arg3[%c0_11, %c0_12, %c0_13] : memref<1x8x32xbf16, #tpu.memory_space<vmem>>, vector<1x8x16xbf16>
    %36 = vector.shape_cast %35 : vector<1x8x16xbf16> to vector<8x16xbf16>
    %37 = vector.shape_cast %34 : vector<8x16xbf16> to vector<1x8x16xbf16>
    tpu.vector_store %arg3[%c0_11, %c0_12, %c0_13], %37 {strides = array<i32>} : memref<1x8x32xbf16, #tpu.memory_space<vmem>>, vector<1x8x16xbf16>,
    %38 = vector.extract_strided_slice %12 {offsets = [0, 16], sizes = [8, 16], strides = [1, 1]} : vector<8x32xbf16> to vector<8x16xbf16>
    %39 = vector.extract_strided_slice %13 {offsets = [0, 16], sizes = [8, 16], strides = [1, 1]} : vector<8x32xbf16> to vector<8x16xbf16>
    %40 = vector.extract_strided_slice %14 {offsets = [0, 16], sizes = [8, 16], strides = [1, 1]} : vector<8x32xbf16> to vector<8x16xbf16>
    %cst_14 = arith.constant dense<0.000000e+00> : vector<8x8xf32>
    %41 = tpu.matmul %38, %39, %cst_14 {dimension_numbers = #tpu.dot_dimension_numbers<[1], [1], [0], [0], [0, 0, 1, 0], [], []>} : vector<8x16xbf16>, vector<8x16xbf16>, vector<8x8xf32> -> vector<8x8xf32>
    %cst_15 = arith.constant 2.500000e-01 : f32
    %42 = vector.broadcast %cst_15 : f32 to vector<8x8xf32>
    %43 = arith.mulf %41, %42 : vector<8x8xf32>
    %44 = arith.addf %43, %11 : vector<8x8xf32>
    %cst_16 = arith.constant dense<0xFF800000> : vector<8xf32>
    %45 = vector.multi_reduction <maximumf>, %44, %cst_16 [1] : vector<8x8xf32> to vector<8xf32>
    %46 = vector.shape_cast %45 : vector<8xf32> to vector<8x1xf32>
    %47 = vector.broadcast %46 : vector<8x1xf32> to vector<8x8xf32>
    %48 = arith.subf %44, %47 : vector<8x8xf32>
    %49 = math.exp %48 : vector<8x8xf32>
    %cst_17 = arith.constant dense<0.000000e+00> : vector<8xf32>
    %50 = vector.multi_reduction <add>, %49, %cst_17 [1] : vector<8x8xf32> to vector<8xf32>
    %51 = vector.shape_cast %50 : vector<8xf32> to vector<8x1xf32>
    %52 = arith.truncf %49 : vector<8x8xf32> to vector<8x8xbf16>
    %cst_18 = arith.constant dense<0.000000e+00> : vector<8x16xf32>
    %53 = tpu.matmul %52, %40, %cst_18 {dimension_numbers = #tpu.dot_dimension_numbers<[1], [0], [0], [1], [0, 0, 1, 1], [], []>} : vector<8x8xbf16>, vector<8x16xbf16>, vector<8x16xf32> -> vector<8x16xf32>
    %54 = tpu.reciprocal %51 {approx = true} : vector<8x1xf32> -> vector<8x1xf32>
    %55 = vector.broadcast %54 : vector<8x1xf32> to vector<8x16xf32>
    %56 = arith.mulf %53, %55 : vector<8x16xf32>
    %57 = arith.truncf %56 : vector<8x16xf32> to vector<8x16xbf16>
    %c0_19 = arith.constant 0 : index
    %c0_20 = arith.constant 0 : index
    %c16 = arith.constant 16 : index
    %58 = vector.load %arg3[%c0_19, %c0_20, %c16] : memref<1x8x32xbf16, #tpu.memory_space<vmem>>, vector<1x8x16xbf16>
    %59 = vector.shape_cast %58 : vector<1x8x16xbf16> to vector<8x16xbf16>
    %60 = vector.shape_cast %57 : vector<8x16xbf16> to vector<1x8x16xbf16>
    tpu.vector_store %arg3[%c0_19, %c0_20, %c16], %60 {strides = array<i32>} : memref<1x8x32xbf16, #tpu.memory_space<vmem>>, vector<1x8x16xbf16>,
    return
  }
  func.func @transform_0(%arg0: i32) -> (i32, i32, i32) {
    %c0_i32 = arith.constant 0 : i32
    %c0_i32_0 = arith.constant 0 : i32
    %c0_i32_1 = arith.constant 0 : i32
    return %arg0, %c0_i32, %c0_i32_0 : i32, i32, i32
  }
  func.func @transform_1(%arg0: i32) -> (i32, i32, i32) {
    %c0_i32 = arith.constant 0 : i32
    %c0_i32_0 = arith.constant 0 : i32
    %c0_i32_1 = arith.constant 0 : i32
    return %arg0, %c0_i32, %c0_i32_0 : i32, i32, i32
  }
  func.func @transform_2(%arg0: i32) -> (i32, i32, i32) {
    %c0_i32 = arith.constant 0 : i32
    %c0_i32_0 = arith.constant 0 : i32
    %c0_i32_1 = arith.constant 0 : i32
    return %arg0, %c0_i32, %c0_i32_0 : i32, i32, i32
  }
}

module attributes {stable_mosaic.version = 11 : i64} {
  func.func @_cross_attn_kernel(%arg0: i32, %arg1: memref<1x8x32xbf16, #tpu.memory_space<vmem>>, %arg2: memref<1x8x64xbf16, #tpu.memory_space<vmem>>, %arg3: memref<1x1x8xf32, #tpu.memory_space<vmem>>, %arg4: memref<1x8x32xbf16, #tpu.memory_space<vmem>>) attributes {dimension_semantics = [#tpu.dimension_semantics<parallel>], iteration_bounds = array<i64: 2>, scalar_prefetch = 0 : i64, scratch_operands = 0 : i64, tpu.core_type = #tpu.core_type<tc>, window_params = [{transform_indices = @transform_0, window_bounds = array<i64: 1, 8, 32>}, {transform_indices = @transform_1, window_bounds = array<i64: 1, 8, 64>}, {transform_indices = @transform_2, window_bounds = array<i64: 1, 1, 8>}, {transform_indices = @transform_3, window_bounds = array<i64: 1, 8, 32>}]} {
    %c0 = arith.constant 0 : index
    %c0_0 = arith.constant 0 : index
    %c0_1 = arith.constant 0 : index
    %0 = vector.load %arg1[%c0, %c0_0, %c0_1] : memref<1x8x32xbf16, #tpu.memory_space<vmem>>, vector<1x8x32xbf16>
    %1 = vector.shape_cast %0 : vector<1x8x32xbf16> to vector<8x32xbf16>
    %c0_2 = arith.constant 0 : index
    %c0_3 = arith.constant 0 : index
    %c0_4 = arith.constant 0 : index
    %2 = vector.load %arg2[%c0_2, %c0_3, %c0_4] : memref<1x8x64xbf16, #tpu.memory_space<vmem>>, vector<1x8x64xbf16>
    %3 = vector.shape_cast %2 : vector<1x8x64xbf16> to vector<8x64xbf16>
    %4 = vector.extract_strided_slice %3 {offsets = [0, 0], sizes = [8, 32], strides = [1, 1]} : vector<8x64xbf16> to vector<8x32xbf16>
    %5 = vector.extract_strided_slice %3 {offsets = [0, 32], sizes = [8, 32], strides = [1, 1]} : vector<8x64xbf16> to vector<8x32xbf16>
    %c0_5 = arith.constant 0 : index
    %c0_6 = arith.constant 0 : index
    %c0_7 = arith.constant 0 : index
    %6 = vector.load %arg3[%c0_5, %c0_6, %c0_7] : memref<1x1x8xf32, #tpu.memory_space<vmem>>, vector<1x1x8xf32>
    %7 = vector.shape_cast %6 : vector<1x1x8xf32> to vector<1x8xf32>
    %8 = vector.extract_strided_slice %1 {offsets = [0, 0], sizes = [8, 16], strides = [1, 1]} : vector<8x32xbf16> to vector<8x16xbf16>
    %9 = vector.extract_strided_slice %4 {offsets = [0, 0], sizes = [8, 16], strides = [1, 1]} : vector<8x32xbf16> to vector<8x16xbf16>
    %10 = vector.extract_strided_slice %5 {offsets = [0, 0], sizes = [8, 16], strides = [1, 1]} : vector<8x32xbf16> to vector<8x16xbf16>
    %cst = arith.constant dense<0.000000e+00> : vector<8x8xf32>
    %11 = tpu.matmul %8, %9, %cst {dimension_numbers = #tpu.dot_dimension_numbers<[1], [1], [0], [0], [0, 0, 1, 0], [], []>} : vector<8x16xbf16>, vector<8x16xbf16>, vector<8x8xf32> -> vector<8x8xf32>
    %cst_8 = arith.constant 2.500000e-01 : f32
    %12 = vector.broadcast %cst_8 : f32 to vector<8x8xf32>
    %13 = arith.mulf %11, %12 : vector<8x8xf32>
    %14 = vector.broadcast %7 : vector<1x8xf32> to vector<8x8xf32>
    %15 = arith.addf %13, %14 : vector<8x8xf32>
    %cst_9 = arith.constant dense<0xFF800000> : vector<8xf32>
    %16 = vector.multi_reduction <maximumf>, %15, %cst_9 [1] : vector<8x8xf32> to vector<8xf32>
    %17 = vector.shape_cast %16 : vector<8xf32> to vector<8x1xf32>
    %18 = vector.broadcast %17 : vector<8x1xf32> to vector<8x8xf32>
    %19 = arith.subf %15, %18 : vector<8x8xf32>
    %20 = math.exp %19 : vector<8x8xf32>
    %cst_10 = arith.constant dense<0.000000e+00> : vector<8xf32>
    %21 = vector.multi_reduction <add>, %20, %cst_10 [1] : vector<8x8xf32> to vector<8xf32>
    %22 = vector.shape_cast %21 : vector<8xf32> to vector<8x1xf32>
    %23 = arith.truncf %20 : vector<8x8xf32> to vector<8x8xbf16>
    %cst_11 = arith.constant dense<0.000000e+00> : vector<8x16xf32>
    %24 = tpu.matmul %23, %10, %cst_11 {dimension_numbers = #tpu.dot_dimension_numbers<[1], [0], [0], [1], [0, 0, 1, 1], [], []>} : vector<8x8xbf16>, vector<8x16xbf16>, vector<8x16xf32> -> vector<8x16xf32>
    %25 = tpu.reciprocal %22 {approx = true} : vector<8x1xf32> -> vector<8x1xf32>
    %26 = vector.broadcast %25 : vector<8x1xf32> to vector<8x16xf32>
    %27 = arith.mulf %24, %26 : vector<8x16xf32>
    %28 = arith.truncf %27 : vector<8x16xf32> to vector<8x16xbf16>
    %c0_12 = arith.constant 0 : index
    %c0_13 = arith.constant 0 : index
    %c0_14 = arith.constant 0 : index
    %29 = vector.load %arg4[%c0_12, %c0_13, %c0_14] : memref<1x8x32xbf16, #tpu.memory_space<vmem>>, vector<1x8x16xbf16>
    %30 = vector.shape_cast %29 : vector<1x8x16xbf16> to vector<8x16xbf16>
    %31 = vector.shape_cast %28 : vector<8x16xbf16> to vector<1x8x16xbf16>
    tpu.vector_store %arg4[%c0_12, %c0_13, %c0_14], %31 {strides = array<i32>} : memref<1x8x32xbf16, #tpu.memory_space<vmem>>, vector<1x8x16xbf16>,
    %32 = vector.extract_strided_slice %1 {offsets = [0, 16], sizes = [8, 16], strides = [1, 1]} : vector<8x32xbf16> to vector<8x16xbf16>
    %33 = vector.extract_strided_slice %4 {offsets = [0, 16], sizes = [8, 16], strides = [1, 1]} : vector<8x32xbf16> to vector<8x16xbf16>
    %34 = vector.extract_strided_slice %5 {offsets = [0, 16], sizes = [8, 16], strides = [1, 1]} : vector<8x32xbf16> to vector<8x16xbf16>
    %cst_15 = arith.constant dense<0.000000e+00> : vector<8x8xf32>
    %35 = tpu.matmul %32, %33, %cst_15 {dimension_numbers = #tpu.dot_dimension_numbers<[1], [1], [0], [0], [0, 0, 1, 0], [], []>} : vector<8x16xbf16>, vector<8x16xbf16>, vector<8x8xf32> -> vector<8x8xf32>
    %cst_16 = arith.constant 2.500000e-01 : f32
    %36 = vector.broadcast %cst_16 : f32 to vector<8x8xf32>
    %37 = arith.mulf %35, %36 : vector<8x8xf32>
    %38 = vector.broadcast %7 : vector<1x8xf32> to vector<8x8xf32>
    %39 = arith.addf %37, %38 : vector<8x8xf32>
    %cst_17 = arith.constant dense<0xFF800000> : vector<8xf32>
    %40 = vector.multi_reduction <maximumf>, %39, %cst_17 [1] : vector<8x8xf32> to vector<8xf32>
    %41 = vector.shape_cast %40 : vector<8xf32> to vector<8x1xf32>
    %42 = vector.broadcast %41 : vector<8x1xf32> to vector<8x8xf32>
    %43 = arith.subf %39, %42 : vector<8x8xf32>
    %44 = math.exp %43 : vector<8x8xf32>
    %cst_18 = arith.constant dense<0.000000e+00> : vector<8xf32>
    %45 = vector.multi_reduction <add>, %44, %cst_18 [1] : vector<8x8xf32> to vector<8xf32>
    %46 = vector.shape_cast %45 : vector<8xf32> to vector<8x1xf32>
    %47 = arith.truncf %44 : vector<8x8xf32> to vector<8x8xbf16>
    %cst_19 = arith.constant dense<0.000000e+00> : vector<8x16xf32>
    %48 = tpu.matmul %47, %34, %cst_19 {dimension_numbers = #tpu.dot_dimension_numbers<[1], [0], [0], [1], [0, 0, 1, 1], [], []>} : vector<8x8xbf16>, vector<8x16xbf16>, vector<8x16xf32> -> vector<8x16xf32>
    %49 = tpu.reciprocal %46 {approx = true} : vector<8x1xf32> -> vector<8x1xf32>
    %50 = vector.broadcast %49 : vector<8x1xf32> to vector<8x16xf32>
    %51 = arith.mulf %48, %50 : vector<8x16xf32>
    %52 = arith.truncf %51 : vector<8x16xf32> to vector<8x16xbf16>
    %c0_20 = arith.constant 0 : index
    %c0_21 = arith.constant 0 : index
    %c16 = arith.constant 16 : index
    %53 = vector.load %arg4[%c0_20, %c0_21, %c16] : memref<1x8x32xbf16, #tpu.memory_space<vmem>>, vector<1x8x16xbf16>
    %54 = vector.shape_cast %53 : vector<1x8x16xbf16> to vector<8x16xbf16>
    %55 = vector.shape_cast %52 : vector<8x16xbf16> to vector<1x8x16xbf16>
    tpu.vector_store %arg4[%c0_20, %c0_21, %c16], %55 {strides = array<i32>} : memref<1x8x32xbf16, #tpu.memory_space<vmem>>, vector<1x8x16xbf16>,
    return
  }
  func.func @transform_0(%arg0: i32) -> (i32, i32, i32) {
    %c0_i32 = arith.constant 0 : i32
    %c0_i32_0 = arith.constant 0 : i32
    %c0_i32_1 = arith.constant 0 : i32
    return %arg0, %c0_i32, %c0_i32_0 : i32, i32, i32
  }
  func.func @transform_1(%arg0: i32) -> (i32, i32, i32) {
    %c0_i32 = arith.constant 0 : i32
    %c0_i32_0 = arith.constant 0 : i32
    %c0_i32_1 = arith.constant 0 : i32
    return %arg0, %c0_i32, %c0_i32_0 : i32, i32, i32
  }
  func.func @transform_2(%arg0: i32) -> (i32, i32, i32) {
    %c0_i32 = arith.constant 0 : i32
    %c0_i32_0 = arith.constant 0 : i32
    %c0_i32_1 = arith.constant 0 : i32
    return %arg0, %c0_i32, %c0_i32_0 : i32, i32, i32
  }
  func.func @transform_3(%arg0: i32) -> (i32, i32, i32) {
    %c0_i32 = arith.constant 0 : i32
    %c0_i32_0 = arith.constant 0 : i32
    %c0_i32_1 = arith.constant 0 : i32
    return %arg0, %c0_i32, %c0_i32_0 : i32, i32, i32
  }
}

</mosaic_0001>

<llo_original>
// kernel: _lambda_.36
$region0: #{_lambda_.36}
  #allocation0 [shape = 'u32[]', space=smem, size = 0x4, offset = 0x4, fixed_abs, tag = 'smem constant byte address 0x4 - core index']
  #allocation1 [shape = 'u32[144,128]{1,0:T(1,128)}', space=vmem, size = 0x12000, scoped, tag = 'internal scratch']
  %s0 = inlined_call_operand.vmem [shape: bf16[2,8,96], index: 0, kind: input, shape index: {}]
  %s1 = inlined_call_operand.vmem [shape: bf16[2,8,32], index: 1, kind: output, shape index: {}]
  %s2 = sld [smem:[#allocation0]]
  $region37: #{_lambda_.36} parent=0
    _
  %s4 = ssub.s32 1, %s2
  %s5 = scalar_select 0, %s4, %s2
  loop: start=0, step=1, limit=4
  $region2: #{_lambda_.36} parent=0 // loop_pre_header
    _
  $region3: #{_lambda_.36} parent=0 // loop_header
    %s7 = sphi 0, %s11
    %p8 = scmp.ge.s32.totalorder %s7, 4
    %s17 = sphi 0, %s19
    %s20 = sphi 0, %s17
    %s21 = sphi 0, %s20
    %s37 = sphi 0, %s21
    %s43 = sphi 0, %s45
    %s46 = sphi 0, %s43
    %s47 = sphi 0, %s46
    %s63 = sphi 0, %s47
  $region4: #{_lambda_.36} parent=0 // loop_header_branch
    %10 = sbr.rel (%p8) target = $region8
  $region5: #{_lambda_.36} parent=0 // loop_body
    %s12 = ssub.s32 %s7, 1
    %s13 = ssub.s32 %s7, 2
    %s14 = sadd.s32 %s7, 1
    %s15 = ssub.s32 %s7, %s14
    %p16 = scmp.eq.s32.totalorder %s15, 0
    %s18 = sadd.s32 %s17, 1
    %s19 = scalar_select %p16, %s17, %s18
    %p22 = pneg %p16
    %p23 = scmp.eq.s32.totalorder %s7, 1
    %p24 = por %p22, %p23
    %p25 = scmp.ne.s32.totalorder %s17, %s20
    %p26 = scmp.eq.s32.totalorder %s7, 0
    %p27 = por %p25, %p26
    %p28 = scmp.ne.s32.totalorder %s17, %s20
    %p29 = scmp.eq.s32.totalorder %s12, 1
    %p30 = por %p28, %p29
    %p31 = scmp.ne.s32.totalorder %s20, %s21
    %p32 = scmp.eq.s32.totalorder %s12, 0
    %p33 = por %p31, %p32
    %p34 = scmp.ne.s32.totalorder %s20, %s21
    %p35 = scmp.eq.s32.totalorder %s13, 1
    %p36 = por %p34, %p35
    %p38 = scmp.ne.s32.totalorder %s21, %s37
    %p39 = scmp.eq.s32.totalorder %s13, 0
    %p40 = por %p38, %p39
    %s41 = ssub.s32 %s7, %s14
    %p42 = scmp.eq.s32.totalorder %s41, 0
    %s44 = sadd.s32 %s43, 1
    %s45 = scalar_select %p42, %s43, %s44
    %p48 = pneg %p42
    %p49 = scmp.eq.s32.totalorder %s7, 1
    %p50 = por %p48, %p49
    %p51 = scmp.ne.s32.totalorder %s43, %s46
    %p52 = scmp.eq.s32.totalorder %s7, 0
    %p53 = por %p51, %p52
    %p54 = scmp.ne.s32.totalorder %s43, %s46
    %p55 = scmp.eq.s32.totalorder %s12, 1
    %p56 = por %p54, %p55
    %p57 = scmp.ne.s32.totalorder %s46, %s47
    %p58 = scmp.eq.s32.totalorder %s12, 0
    %p59 = por %p57, %p58
    %p60 = scmp.ne.s32.totalorder %s46, %s47
    %p61 = scmp.eq.s32.totalorder %s13, 1
    %p62 = por %p60, %p61
    %p64 = scmp.ne.s32.totalorder %s47, %s63
    %p65 = scmp.eq.s32.totalorder %s13, 0
    %p66 = por %p64, %p65
    %p67 = scmp.le.s32.totalorder 1, %s7
    %p68 = scmp.lt.s32.totalorder %s7, 3
    %p69 = pnand %p67, %p68
    %p70 = pneg %p69
    // Predicated region
    $region9: #{_lambda_.36} parent=5 // pred_check
      _
    $region10: #{_lambda_.36} parent=5 // pred_check_branch
      %72 = sbr.rel (%p69) target = $region12
    $region11: #{_lambda_.36} parent=5 // pred_region
      %s73 = ssub.s32 %s7, 1
    $region12: #{_lambda_.36} parent=5 // pred_fallthru
      _
    %p74 = scmp.lt.s32.totalorder %s7, 2
    // Predicated region
    $region13: #{_lambda_.36} parent=5 // pred_check
      %p75 = pneg %p74
    $region14: #{_lambda_.36} parent=5 // pred_check_branch
      %77 = sbr.rel (%p75) target = $region16
    $region15: #{_lambda_.36} parent=5 // pred_region
      // Predicated region
      $region17: #{_lambda_.36} parent=15 // pred_check
        %p78 = pneg %p27
      $region18: #{_lambda_.36} parent=15 // pred_check_branch
        %80 = sbr.rel (%p78) target = $region20
      $region19: #{_lambda_.36} parent=15 // pred_region
        %p81 = scmp.lt.s32.totalorder %s7, 1
        %s82 = scalar_select %p81, %s7, 1
        %s83 = smul.addr %s82, 4
        %s84 = scalar_lea.vmem %s0, %s83
      $region20: #{_lambda_.36} parent=15 // pred_fallthru
        _
    $region16: #{_lambda_.36} parent=5 // pred_fallthru
      _
    %p85 = scmp.le.s32.totalorder 1, %s7
    %p86 = scmp.lt.s32.totalorder %s7, 3
    %p87 = pnand %p85, %p86
    %p88 = pneg %p87
    // Predicated region
    $region21: #{_lambda_.36} parent=5 // pred_check
      _
    $region22: #{_lambda_.36} parent=5 // pred_check_branch
      %90 = sbr.rel (%p87) target = $region24
    $region23: #{_lambda_.36} parent=5 // pred_region
      %s91 = ssub.s32 %s7, 1
      %p92 = scmp.lt.s32.totalorder %s12, 1
      %s93 = scalar_select %p92, %s12, 1
      %s94 = smul.addr %s93, 4
      %s95 = scalar_lea.vmem %s0, %s94
      %p96 = pneg %p33
      %p97 = pneg %p30
      %p98 = pneg %p59
      %p99 = pneg %p56
      %p100 = scmp.lt.s32.totalorder %s12, 1
      %s101 = scalar_select %p100, %s12, 1
      %s102 = smul.addr %s101, 4
      %s103 = scalar_lea.vmem %s1, %s102
      %p104 = scmp.lt.s32.totalorder %s12, 1
      %s105 = scalar_select %p104, %s12, 1
      %s106 = smul.addr %s105, 4
      %s107 = scalar_lea.vmem %s0, %s106
      %p108 = scmp.lt.s32.totalorder %s12, 1
      %s109 = scalar_select %p108, %s12, 1
      %s110 = smul.addr %s109, 4
      %s111 = scalar_lea.vmem %s1, %s110
      %v113 = vld [vmem:[%s107] sm:$0xf]
      %v115 = vunpack.c.l.b16 %v113
      %v116 = vpack.c.b16 %v115, %v115
      %117 = vrot.lane.b32.xlu0 %v116, 96
      %v118 = vpop.permute.xlu0 %117
      %vm119 = vcmask 130048
      %v121 = vsel %vm119, %v113, 0
      %v124 = vsel %vm119, %v118, 0
      %126 = vmatprep.subr.bf16.mxu0 0
      %127 = vmatpush1.bf16.xpose.msra.mxu0 0
      %128 = vmatprep.subr.bf16.mxu0 0
      %129 = vmatpush1.bf16.xpose.msra.mxu0 0
      %130 = vmatprep.subr.bf16.mxu0 0
      %131 = vmatpush1.bf16.xpose.msra.mxu0 0
      %132 = vmatprep.subr.bf16.mxu0 0
      %133 = vmatpush1.bf16.xpose.msra.mxu0 0
      %134 = vmatprep.subr.bf16.mxu0 0
      %135 = vmatpush1.bf16.xpose.msra.mxu0 0
      %136 = vmatprep.subr.bf16.mxu0 0
      %137 = vmatpush1.bf16.xpose.msra.mxu0 0
      %138 = vmatprep.subr.bf16.mxu0 0
      %139 = vmatpush1.bf16.xpose.msra.mxu0 0
      %140 = vmatprep.subr.bf16.mxu0 0
      %141 = vmatpush1.bf16.xpose.msra.mxu0 %v124
      %142 = vmatprep.subr.bf16.mxu0 0
      %143 = vmatpush2.bf16.xpose.msra.mxu0 0
      %144 = vmatprep.subr.bf16.mxu0 0
      %145 = vmatpush2.bf16.xpose.msra.mxu0 0
      %146 = vmatprep.subr.bf16.mxu0 0
      %147 = vmatpush2.bf16.xpose.msra.mxu0 0
      %148 = vmatprep.subr.bf16.mxu0 0
      %149 = vmatpush2.bf16.xpose.msra.mxu0 0
      %150 = vmatprep.subr.bf16.mxu0 0
      %151 = vmatpush2.bf16.xpose.msra.mxu0 0
      %152 = vmatprep.subr.bf16.mxu0 0
      %153 = vmatpush2.bf16.xpose.msra.mxu0 0
      %154 = vmatprep.subr.bf16.mxu0 0
      %155 = vmatpush2.bf16.xpose.msra.mxu0 0
      %156 = vmatprep.subr.bf16.mxu0 0
      %157 = vmatpush2.bf16.xpose.msra.mxu0 0
      %158 = vmatprep.mubr.bf16.mxu0 0
      %159 = vmatmul.mubr.bf16.gmra.mxu0 %v121
      %v160 = vpop.f32.mrf.mxu0
      %v161 = vadd.f32 0.0, %v160
      %v162 = vpop.f32.mrf.mxu0
      %v163 = vpop.f32.mrf.mxu0
      %v164 = vpop.f32.mrf.mxu0
      %165 = vdwg.mxu0
      %v166 = vmul.f32 %v161, 0.25
      %vm167 = vcmask 64512
      %v168 = vsel %vm167, %v166, -inf
      %169 = vmax.xlane.f32.xlu0 %v168
      %v170 = vpop.xlane.xlu0 %169
      %v171 = vsub.f32 %v166, %v170
      %v172 = vmul.f32 %v171, 1.442695
      %v173 = vpow.pop %v172
      %v174 = vsel %vm167, %v173, 0.0
      %175 = vadd.xlane.f32.xlu0 %v174
      %v176 = vpop.xlane.xlu0 %175
      %v177 = vpack.c.bf16 %v173, %v173
      %178 = vrot.lane.b32.xlu0 %v116, 64
      %v179 = vpop.permute.xlu0 %178
      %v181 = vsel %vm167, %v177, 0
      %vm183 = vcmask 1043456
      %v185 = vsel %vm183, %v179, 0
      %187 = vmatprep.subr.bf16.mxu0 0
      %188 = vmatpush1.bf16.msra.mxu0 0
      %189 = vmatprep.subr.bf16.mxu0 0
      %190 = vmatpush1.bf16.msra.mxu0 0
      %191 = vmatprep.subr.bf16.mxu0 0
      %192 = vmatpush1.bf16.msra.mxu0 0
      %193 = vmatprep.subr.bf16.mxu0 0
      %194 = vmatpush1.bf16.msra.mxu0 0
      %195 = vmatprep.subr.bf16.mxu0 0
      %196 = vmatpush1.bf16.msra.mxu0 0
      %197 = vmatprep.subr.bf16.mxu0 0
      %198 = vmatpush1.bf16.msra.mxu0 0
      %199 = vmatprep.subr.bf16.mxu0 0
      %200 = vmatpush1.bf16.msra.mxu0 0
      %201 = vmatprep.subr.bf16.mxu0 0
      %202 = vmatpush1.bf16.msra.mxu0 %v185
      %203 = vmatprep.subr.bf16.mxu0 0
      %204 = vmatpush2.bf16.msra.mxu0 0
      %205 = vmatprep.subr.bf16.mxu0 0
      %206 = vmatpush2.bf16.msra.mxu0 0
      %207 = vmatprep.subr.bf16.mxu0 0
      %208 = vmatpush2.bf16.msra.mxu0 0
      %209 = vmatprep.subr.bf16.mxu0 0
      %210 = vmatpush2.bf16.msra.mxu0 0
      %211 = vmatprep.subr.bf16.mxu0 0
      %212 = vmatpush2.bf16.msra.mxu0 0
      %213 = vmatprep.subr.bf16.mxu0 0
      %214 = vmatpush2.bf16.msra.mxu0 0
      %215 = vmatprep.subr.bf16.mxu0 0
      %216 = vmatpush2.bf16.msra.mxu0 0
      %217 = vmatprep.subr.bf16.mxu0 0
      %218 = vmatpush2.bf16.msra.mxu0 0
      %219 = vmatprep.mubr.bf16.mxu0 0
      %220 = vmatmul.mubr.bf16.gmra.mxu0 %v181
      %v221 = vpop.f32.mrf.mxu0
      %v222 = vadd.f32 0.0, %v221
      %v223 = vpop.f32.mrf.mxu0
      %v224 = vpop.f32.mrf.mxu0
      %v225 = vpop.f32.mrf.mxu0
      %226 = vdwg.mxu0
      %v227 = vrcp.pop %v176
      %v228 = vmul.f32 %v222, %v227
      %v229 = vpack.c.bf16 %v228, %v228
      %vm230 = vcmask 125952
      %231 = vst.msk [vmem:[%s111] sm:$0xf] %vm230, %v229
      %232 = vrot.lane.b32.xlu0 %v116, 112
      %v233 = vpop.permute.xlu0 %232
      %234 = vrot.lane.b32.xlu0 %v116, 80
      %v235 = vpop.permute.xlu0 %234
      %v237 = vsel %vm119, %v233, 0
      %v240 = vsel %vm119, %v235, 0
      %242 = vmatprep.subr.bf16.mxu0 0
      %243 = vmatpush1.bf16.xpose.msra.mxu0 0
      %244 = vmatprep.subr.bf16.mxu0 0
      %245 = vmatpush1.bf16.xpose.msra.mxu0 0
      %246 = vmatprep.subr.bf16.mxu0 0
      %247 = vmatpush1.bf16.xpose.msra.mxu0 0
      %248 = vmatprep.subr.bf16.mxu0 0
      %249 = vmatpush1.bf16.xpose.msra.mxu0 0
      %250 = vmatprep.subr.bf16.mxu0 0
      %251 = vmatpush1.bf16.xpose.msra.mxu0 0
      %252 = vmatprep.subr.bf16.mxu0 0
      %253 = vmatpush1.bf16.xpose.msra.mxu0 0
      %254 = vmatprep.subr.bf16.mxu0 0
      %255 = vmatpush1.bf16.xpose.msra.mxu0 0
      %256 = vmatprep.subr.bf16.mxu0 0
      %257 = vmatpush1.bf16.xpose.msra.mxu0 %v240
      %258 = vmatprep.subr.bf16.mxu0 0
      %259 = vmatpush2.bf16.xpose.msra.mxu0 0
      %260 = vmatprep.subr.bf16.mxu0 0
      %261 = vmatpush2.bf16.xpose.msra.mxu0 0
      %262 = vmatprep.subr.bf16.mxu0 0
      %263 = vmatpush2.bf16.xpose.msra.mxu0 0
      %264 = vmatprep.subr.bf16.mxu0 0
      %265 = vmatpush2.bf16.xpose.msra.mxu0 0
      %266 = vmatprep.subr.bf16.mxu0 0
      %267 = vmatpush2.bf16.xpose.msra.mxu0 0
      %268 = vmatprep.subr.bf16.mxu0 0
      %269 = vmatpush2.bf16.xpose.msra.mxu0 0
      %270 = vmatprep.subr.bf16.mxu0 0
      %271 = vmatpush2.bf16.xpose.msra.mxu0 0
      %272 = vmatprep.subr.bf16.mxu0 0
      %273 = vmatpush2.bf16.xpose.msra.mxu0 0
      %274 = vmatprep.mubr.bf16.mxu0 0
      %275 = vmatmul.mubr.bf16.gmra.mxu0 %v237
      %v276 = vpop.f32.mrf.mxu0
      %v277 = vadd.f32 0.0, %v276
      %v278 = vpop.f32.mrf.mxu0
      %v279 = vpop.f32.mrf.mxu0
      %v280 = vpop.f32.mrf.mxu0
      %281 = vdwg.mxu0
      %v282 = vmul.f32 %v277, 0.25
      %v283 = vsel %vm167, %v282, -inf
      %284 = vmax.xlane.f32.xlu0 %v283
      %v285 = vpop.xlane.xlu0 %284
      %v286 = vsub.f32 %v282, %v285
      %v287 = vmul.f32 %v286, 1.442695
      %v288 = vpow.pop %v287
      %v289 = vsel %vm167, %v288, 0.0
      %290 = vadd.xlane.f32.xlu0 %v289
      %v291 = vpop.xlane.xlu0 %290
      %v292 = vpack.c.bf16 %v288, %v288
      %293 = vrot.lane.b32.xlu0 %v116, 48
      %v294 = vpop.permute.xlu0 %293
      %v296 = vsel %vm167, %v292, 0
      %v299 = vsel %vm183, %v294, 0
      %301 = vmatprep.subr.bf16.mxu0 0
      %302 = vmatpush1.bf16.msra.mxu0 0
      %303 = vmatprep.subr.bf16.mxu0 0
      %304 = vmatpush1.bf16.msra.mxu0 0
      %305 = vmatprep.subr.bf16.mxu0 0
      %306 = vmatpush1.bf16.msra.mxu0 0
      %307 = vmatprep.subr.bf16.mxu0 0
      %308 = vmatpush1.bf16.msra.mxu0 0
      %309 = vmatprep.subr.bf16.mxu0 0
      %310 = vmatpush1.bf16.msra.mxu0 0
      %311 = vmatprep.subr.bf16.mxu0 0
      %312 = vmatpush1.bf16.msra.mxu0 0
      %313 = vmatprep.subr.bf16.mxu0 0
      %314 = vmatpush1.bf16.msra.mxu0 0
      %315 = vmatprep.subr.bf16.mxu0 0
      %316 = vmatpush1.bf16.msra.mxu0 %v299
      %317 = vmatprep.subr.bf16.mxu0 0
      %318 = vmatpush2.bf16.msra.mxu0 0
      %319 = vmatprep.subr.bf16.mxu0 0
      %320 = vmatpush2.bf16.msra.mxu0 0
      %321 = vmatprep.subr.bf16.mxu0 0
      %322 = vmatpush2.bf16.msra.mxu0 0
      %323 = vmatprep.subr.bf16.mxu0 0
      %324 = vmatpush2.bf16.msra.mxu0 0
      %325 = vmatprep.subr.bf16.mxu0 0
      %326 = vmatpush2.bf16.msra.mxu0 0
      %327 = vmatprep.subr.bf16.mxu0 0
      %328 = vmatpush2.bf16.msra.mxu0 0
      %329 = vmatprep.subr.bf16.mxu0 0
      %330 = vmatpush2.bf16.msra.mxu0 0
      %331 = vmatprep.subr.bf16.mxu0 0
      %332 = vmatpush2.bf16.msra.mxu0 0
      %333 = vmatprep.mubr.bf16.mxu0 0
      %334 = vmatmul.mubr.bf16.gmra.mxu0 %v296
      %v335 = vpop.f32.mrf.mxu0
      %v336 = vadd.f32 0.0, %v335
      %v337 = vpop.f32.mrf.mxu0
      %v338 = vpop.f32.mrf.mxu0
      %v339 = vpop.f32.mrf.mxu0
      %340 = vdwg.mxu0
      %v341 = vrcp.pop %v291
      %v342 = vmul.f32 %v336, %v341
      %v343 = vpack.c.bf16 %v342, %v342
      %v345 = vunpack.c.l.b16 %v343
      %v346 = vpack.c.b16 %v345, %v345
      %347 = vrot.lane.b32.xlu0 %v346, 16
      %v348 = vpop.permute.xlu0 %347
      %vm350 = vcmask 257152
      %351 = vst.msk [vmem:[%s111] sm:$0xf] %vm350, %v348
      %p352 = scmp.lt.s32.totalorder %s12, 1
      %s353 = scalar_select %p352, %s12, 1
      %s354 = smul.addr %s353, 4
      %s355 = scalar_lea.vmem %s1, %s354
      // Predicated region
      $region25: #{_lambda_.36} parent=23 // pred_check
        %p356 = pneg %p56
      $region26: #{_lambda_.36} parent=23 // pred_check_branch
        %358 = sbr.rel (%p356) target = $region28
      $region27: #{_lambda_.36} parent=23 // pred_region
        _
      $region28: #{_lambda_.36} parent=23 // pred_fallthru
        _
    $region24: #{_lambda_.36} parent=5 // pred_fallthru
      _
    %p359 = scmp.le.s32.totalorder 2, %s7
    // Predicated region
    $region29: #{_lambda_.36} parent=5 // pred_check
      %p360 = pneg %p359
    $region30: #{_lambda_.36} parent=5 // pred_check_branch
      %362 = sbr.rel (%p360) target = $region32
    $region31: #{_lambda_.36} parent=5 // pred_region
      %s363 = ssub.s32 %s7, 2
      // Predicated region
      $region33: #{_lambda_.36} parent=31 // pred_check
        %p364 = pneg %p62
      $region34: #{_lambda_.36} parent=31 // pred_check_branch
        %366 = sbr.rel (%p364) target = $region36
      $region35: #{_lambda_.36} parent=31 // pred_region
        %p367 = scmp.lt.s32.totalorder %s13, 1
        %s368 = scalar_select %p367, %s13, 1
        %s369 = smul.addr %s368, 4
        %s370 = scalar_lea.vmem %s1, %s369
      $region36: #{_lambda_.36} parent=31 // pred_fallthru
        _
    $region32: #{_lambda_.36} parent=5 // pred_fallthru
      _
  $region6: #{_lambda_.36} parent=0 // loop_footer
    %s11 = sadd.s32 1, %s7
  $region7: #{_lambda_.36} parent=0 // loop_footer_branch
    %6 = sbr.rel target = $region3
  $region8: #{_lambda_.36} parent=0 // loop_exit
    _

// kernel: _lambda_.34
$region0: #{_lambda_.34}
  #allocation0 [shape = 'u32[]', space=smem, size = 0x4, offset = 0x4, fixed_abs, tag = 'smem constant byte address 0x4 - core index']
  #allocation1 [shape = 'u32[144,128]{1,0:T(1,128)}', space=vmem, size = 0x12000, scoped, tag = 'internal scratch']
  %s0 = inlined_call_operand.vmem [shape: bf16[16,128], index: 0, kind: input, shape index: {}]
  %s1 = inlined_call_operand.vmem [shape: bf16[128,128], index: 1, kind: input, shape index: {}]
  %s2 = inlined_call_operand.vmem [shape: f32[1,128], index: 2, kind: input, shape index: {}]
  %s3 = inlined_call_operand.vmem [shape: bf16[16,128], index: 3, kind: output, shape index: {}]
  %s4 = sld [smem:[#allocation0]]
  $region22: #{_lambda_.34} parent=0
    _
  %s6 = ssub.s32 1, %s4
  %s7 = scalar_select 0, %s6, %s4
  // Predicated region
  $region2: #{_lambda_.34} parent=0 // pred_check
    _
  $region3: #{_lambda_.34} parent=0 // pred_check_branch
    %9 = sbr.rel (0) target = $region5
  $region4: #{_lambda_.34} parent=0 // pred_region
    _
  $region5: #{_lambda_.34} parent=0 // pred_fallthru
    _
  // Predicated region
  $region6: #{_lambda_.34} parent=0 // pred_check
    _
  $region7: #{_lambda_.34} parent=0 // pred_check_branch
    %11 = sbr.rel (0) target = $region9
  $region8: #{_lambda_.34} parent=0 // pred_region
    _
  $region9: #{_lambda_.34} parent=0 // pred_fallthru
    _
  // Predicated region
  $region10: #{_lambda_.34} parent=0 // pred_check
    _
  $region11: #{_lambda_.34} parent=0 // pred_check_branch
    %13 = sbr.rel (0) target = $region13
  $region12: #{_lambda_.34} parent=0 // pred_region
    _
  $region13: #{_lambda_.34} parent=0 // pred_fallthru
    _
  %v15 = vld [vmem:[%s0] sm:$0xf]
  %v16 = vld [vmem:[%s0 + $0x4] sm:$0xf]
  %v17 = vld [vmem:[%s1] sm:$0xf]
  %v18 = vld [vmem:[%s1 + $0x4] sm:$0xf]
  %v19 = vld [vmem:[%s1 + $0x8] sm:$0xf]
  %v20 = vld [vmem:[%s1 + $0xc] sm:$0xf]
  %v21 = vld [vmem:[%s1 + $0x10] sm:$0xf]
  %v22 = vld [vmem:[%s1 + $0x14] sm:$0xf]
  %v23 = vld [vmem:[%s1 + $0x18] sm:$0xf]
  %v24 = vld [vmem:[%s1 + $0x1c] sm:$0xf]
  %v25 = vld [vmem:[%s1 + $0x20] sm:$0xf]
  %v26 = vld [vmem:[%s1 + $0x24] sm:$0xf]
  %v27 = vld [vmem:[%s1 + $0x28] sm:$0xf]
  %v28 = vld [vmem:[%s1 + $0x2c] sm:$0xf]
  %v29 = vld [vmem:[%s1 + $0x30] sm:$0xf]
  %v30 = vld [vmem:[%s1 + $0x34] sm:$0xf]
  %v31 = vld [vmem:[%s1 + $0x38] sm:$0xf]
  %v32 = vld [vmem:[%s1 + $0x3c] sm:$0xf]
  %v33 = vld [vmem:[%s2] sm:$0x1]
  %v35 = vlaneseq
  %v36 = vshrl.u32 %v35, 7
  %v37 = vsub.s32 0, %v36
  %v38 = vrot.slane %v33, %v37
  %v42 = vunpack.c.l.b16 %v15
  %v43 = vunpack.c.l.b16 %v16
  %v44 = vpack.c.b16 %v43, %v42
  %v62 = vunpack.c.l.b16 %v17
  %v63 = vunpack.c.l.b16 %v18
  %v64 = vunpack.c.l.b16 %v19
  %v65 = vunpack.c.l.b16 %v20
  %v66 = vunpack.c.l.b16 %v21
  %v67 = vunpack.c.l.b16 %v22
  %v68 = vunpack.c.l.b16 %v23
  %v69 = vunpack.c.l.b16 %v24
  %v70 = vunpack.c.l.b16 %v25
  %v71 = vunpack.c.l.b16 %v26
  %v72 = vunpack.c.l.b16 %v27
  %v73 = vunpack.c.l.b16 %v28
  %v74 = vunpack.c.l.b16 %v29
  %v75 = vunpack.c.l.b16 %v30
  %v76 = vunpack.c.l.b16 %v31
  %v77 = vunpack.c.l.b16 %v32
  %v78 = vpack.c.b16 %v63, %v62
  %v79 = vpack.c.b16 %v65, %v64
  %v80 = vpack.c.b16 %v67, %v66
  %v81 = vpack.c.b16 %v69, %v68
  %v82 = vpack.c.b16 %v71, %v70
  %v83 = vpack.c.b16 %v73, %v72
  %v84 = vpack.c.b16 %v75, %v74
  %v85 = vpack.c.b16 %v77, %v76
  %94 = vmatprep.subr.bf16.mxu0 0
  %95 = vmatpush1.bf16.msra.mxu0 %v85
  %96 = vmatprep.subr.bf16.mxu0 0
  %97 = vmatpush1.bf16.msra.mxu0 %v84
  %98 = vmatprep.subr.bf16.mxu0 0
  %99 = vmatpush1.bf16.msra.mxu0 %v83
  %100 = vmatprep.subr.bf16.mxu0 0
  %101 = vmatpush1.bf16.msra.mxu0 %v82
  %102 = vmatprep.subr.bf16.mxu0 0
  %103 = vmatpush1.bf16.msra.mxu0 %v81
  %104 = vmatprep.subr.bf16.mxu0 0
  %105 = vmatpush1.bf16.msra.mxu0 %v80
  %106 = vmatprep.subr.bf16.mxu0 0
  %107 = vmatpush1.bf16.msra.mxu0 %v79
  %108 = vmatprep.subr.bf16.mxu0 0
  %109 = vmatpush1.bf16.msra.mxu0 %v78
  %110 = vmatprep.subr.bf16.mxu0 0
  %111 = vmatpush2.bf16.msra.mxu0 0
  %112 = vmatprep.subr.bf16.mxu0 0
  %113 = vmatpush2.bf16.msra.mxu0 0
  %114 = vmatprep.subr.bf16.mxu0 0
  %115 = vmatpush2.bf16.msra.mxu0 0
  %116 = vmatprep.subr.bf16.mxu0 0
  %117 = vmatpush2.bf16.msra.mxu0 0
  %118 = vmatprep.subr.bf16.mxu0 0
  %119 = vmatpush2.bf16.msra.mxu0 0
  %120 = vmatprep.subr.bf16.mxu0 0
  %121 = vmatpush2.bf16.msra.mxu0 0
  %122 = vmatprep.subr.bf16.mxu0 0
  %123 = vmatpush2.bf16.msra.mxu0 0
  %124 = vmatprep.subr.bf16.mxu0 0
  %125 = vmatpush2.bf16.msra.mxu0 0
  %126 = vmatprep.mubr.bf16.mxu0 0
  %127 = vmatmul.mubr.bf16.gmra.mxu0 %v44
  %v128 = vpop.f32.mrf.mxu0
  %v129 = vadd.f32 %v38, %v128
  %v130 = vpop.f32.mrf.mxu0
  %v131 = vpop.f32.mrf.mxu0
  %v132 = vadd.f32 %v38, %v131
  %v133 = vpop.f32.mrf.mxu0
  %134 = vdwg.mxu0
  %v135 = vpack.c.bf16 %v132, %v129
  %v137 = vunpack.c.l.b16 %v135
  %v138 = vunpack.c.h.b16 %v135
  %v139 = vpack.c.b16 %v137, %v137
  %v140 = vpack.c.b16 %v138, %v138
  %143 = vst [vmem:[%s3] sm:$0xf] %v139
  %144 = vst [vmem:[%s3 + $0x4] sm:$0xf] %v140
  // Predicated region
  $region14: #{_lambda_.34} parent=0 // pred_check
    _
  $region15: #{_lambda_.34} parent=0 // pred_check_branch
    %146 = sbr.rel (0) target = $region17
  $region16: #{_lambda_.34} parent=0 // pred_region
    _
  $region17: #{_lambda_.34} parent=0 // pred_fallthru
    _
  // Predicated region
  $region18: #{_lambda_.34} parent=0 // pred_check
    _
  $region19: #{_lambda_.34} parent=0 // pred_check_branch
    %148 = sbr.rel (0) target = $region21
  $region20: #{_lambda_.34} parent=0 // pred_region
    _
  $region21: #{_lambda_.34} parent=0 // pred_fallthru
    _

// kernel: _lambda_.33
$region0: #{_lambda_.33}
  #allocation0 [shape = 'u32[]', space=smem, size = 0x4, offset = 0x4, fixed_abs, tag = 'smem constant byte address 0x4 - core index']
  #allocation1 [shape = 'u32[144,128]{1,0:T(1,128)}', space=vmem, size = 0x12000, scoped, tag = 'internal scratch']
  %s0 = inlined_call_operand.vmem [shape: f32[16,16], index: 0, kind: input, shape index: {}]
  %s1 = inlined_call_operand.vmem [shape: f32[1,16], index: 1, kind: input, shape index: {}]
  %s2 = inlined_call_operand.vmem [shape: f32[1,16], index: 2, kind: input, shape index: {}]
  %s3 = inlined_call_operand.vmem [shape: bf16[16,16], index: 3, kind: output, shape index: {}]
  %s4 = sld [smem:[#allocation0]]
  $region22: #{_lambda_.33} parent=0
    _
  %s6 = ssub.s32 1, %s4
  %s7 = scalar_select 0, %s6, %s4
  // Predicated region
  $region2: #{_lambda_.33} parent=0 // pred_check
    _
  $region3: #{_lambda_.33} parent=0 // pred_check_branch
    %9 = sbr.rel (0) target = $region5
  $region4: #{_lambda_.33} parent=0 // pred_region
    _
  $region5: #{_lambda_.33} parent=0 // pred_fallthru
    _
  // Predicated region
  $region6: #{_lambda_.33} parent=0 // pred_check
    _
  $region7: #{_lambda_.33} parent=0 // pred_check_branch
    %11 = sbr.rel (0) target = $region9
  $region8: #{_lambda_.33} parent=0 // pred_region
    _
  $region9: #{_lambda_.33} parent=0 // pred_fallthru
    _
  // Predicated region
  $region10: #{_lambda_.33} parent=0 // pred_check
    _
  $region11: #{_lambda_.33} parent=0 // pred_check_branch
    %13 = sbr.rel (0) target = $region13
  $region12: #{_lambda_.33} parent=0 // pred_region
    _
  $region13: #{_lambda_.33} parent=0 // pred_fallthru
    _
  %v14 = vld [vmem:[%s0] sm:$0xff]
  %v15 = vld [vmem:[%s0 + $0x8] sm:$0xff]
  %vm16 = vcmask 130048
  %v17 = vsel %vm16, %v14, 0.0
  %18 = vadd.xlane.f32.xlu0 %v17
  %v19 = vpop.xlane.xlu0 %18
  %v20 = vsel %vm16, %v15, 0.0
  %21 = vadd.xlane.f32.xlu0 %v20
  %v22 = vpop.xlane.xlu0 %21
  %v23 = vrcp.pop 16.0
  %v24 = vmul.f32 %v19, %v23
  %v25 = vmul.f32 %v22, %v23
  %v26 = vsub.f32 %v14, %v24
  %v27 = vsub.f32 %v15, %v25
  %v28 = vmul.f32 %v26, %v26
  %v29 = vmul.f32 %v27, %v27
  %v30 = vsel %vm16, %v28, 0.0
  %31 = vadd.xlane.f32.xlu0 %v30
  %v32 = vpop.xlane.xlu0 %31
  %v33 = vsel %vm16, %v29, 0.0
  %34 = vadd.xlane.f32.xlu0 %v33
  %v35 = vpop.xlane.xlu0 %34
  %v36 = vmul.f32 %v32, %v23
  %v37 = vmul.f32 %v35, %v23
  %v38 = vadd.f32 %v36, 1e-12
  %v39 = vadd.f32 %v37, 1e-12
  %v40 = vrsqrt.pop %v38
  %v41 = vrsqrt.pop %v39
  %v42 = vmul.f32 %v26, %v40
  %v43 = vmul.f32 %v27, %v41
  %v44 = vld [vmem:[%s1] sm:$0x1]
  %v46 = vlaneseq
  %v47 = vshrl.u32 %v46, 7
  %v48 = vsub.s32 0, %v47
  %v49 = vrot.slane %v44, %v48
  %v51 = vmul.f32 %v42, %v49
  %v52 = vmul.f32 %v43, %v49
  %v53 = vld [vmem:[%s2] sm:$0x1]
  %v55 = vlaneseq
  %v56 = vshrl.u32 %v55, 7
  %v57 = vsub.s32 0, %v56
  %v58 = vrot.slane %v53, %v57
  %v60 = vadd.f32 %v51, %v58
  %v61 = vadd.f32 %v52, %v58
  %v62 = vpack.c.bf16 %v61, %v60
  %v64 = vunpack.c.l.b16 %v62
  %v65 = vunpack.c.h.b16 %v62
  %v66 = vpack.c.b16 %v64, %v64
  %v67 = vpack.c.b16 %v65, %v65
  %vm70 = vcmask 125952
  %71 = vst.msk [vmem:[%s3] sm:$0xf] %vm70, %v66
  %72 = vst.msk [vmem:[%s3 + $0x4] sm:$0xf] %vm70, %v67
  // Predicated region
  $region14: #{_lambda_.33} parent=0 // pred_check
    _
  $region15: #{_lambda_.33} parent=0 // pred_check_branch
    %74 = sbr.rel (0) target = $region17
  $region16: #{_lambda_.33} parent=0 // pred_region
    _
  $region17: #{_lambda_.33} parent=0 // pred_fallthru
    _
  // Predicated region
  $region18: #{_lambda_.33} parent=0 // pred_check
    _
  $region19: #{_lambda_.33} parent=0 // pred_check_branch
    %76 = sbr.rel (0) target = $region21
  $region20: #{_lambda_.33} parent=0 // pred_region
    _
  $region21: #{_lambda_.33} parent=0 // pred_fallthru
    _

// kernel: _lambda_.37
$region0: #{_lambda_.37}
  #allocation0 [shape = 'u32[]', space=smem, size = 0x4, offset = 0x4, fixed_abs, tag = 'smem constant byte address 0x4 - core index']
  #allocation1 [shape = 'u32[144,128]{1,0:T(1,128)}', space=vmem, size = 0x12000, scoped, tag = 'internal scratch']
  %s0 = inlined_call_operand.vmem [shape: bf16[16,128], index: 0, kind: input, shape index: {}]
  %s1 = inlined_call_operand.vmem [shape: bf16[128,32], index: 1, kind: input, shape index: {}]
  %s2 = inlined_call_operand.vmem [shape: f32[1,32], index: 2, kind: input, shape index: {}]
  %s3 = inlined_call_operand.vmem [shape: bf16[16,32], index: 3, kind: input, shape index: {}]
  %s4 = inlined_call_operand.vmem [shape: f32[1,32], index: 4, kind: input, shape index: {}]
  %s5 = inlined_call_operand.vmem [shape: f32[1,32], index: 5, kind: input, shape index: {}]
  %s6 = inlined_call_operand.vmem [shape: bf16[16,32], index: 6, kind: output, shape index: {}]
  %s7 = sld [smem:[#allocation0]]
  $region34: #{_lambda_.37} parent=0
    _
  %s9 = ssub.s32 1, %s7
  %s10 = scalar_select 0, %s9, %s7
  // Predicated region
  $region2: #{_lambda_.37} parent=0 // pred_check
    _
  $region3: #{_lambda_.37} parent=0 // pred_check_branch
    %12 = sbr.rel (0) target = $region5
  $region4: #{_lambda_.37} parent=0 // pred_region
    _
  $region5: #{_lambda_.37} parent=0 // pred_fallthru
    _
  // Predicated region
  $region6: #{_lambda_.37} parent=0 // pred_check
    _
  $region7: #{_lambda_.37} parent=0 // pred_check_branch
    %14 = sbr.rel (0) target = $region9
  $region8: #{_lambda_.37} parent=0 // pred_region
    _
  $region9: #{_lambda_.37} parent=0 // pred_fallthru
    _
  // Predicated region
  $region10: #{_lambda_.37} parent=0 // pred_check
    _
  $region11: #{_lambda_.37} parent=0 // pred_check_branch
    %16 = sbr.rel (0) target = $region13
  $region12: #{_lambda_.37} parent=0 // pred_region
    _
  $region13: #{_lambda_.37} parent=0 // pred_fallthru
    _
  // Predicated region
  $region14: #{_lambda_.37} parent=0 // pred_check
    _
  $region15: #{_lambda_.37} parent=0 // pred_check_branch
    %18 = sbr.rel (0) target = $region17
  $region16: #{_lambda_.37} parent=0 // pred_region
    _
  $region17: #{_lambda_.37} parent=0 // pred_fallthru
    _
  // Predicated region
  $region18: #{_lambda_.37} parent=0 // pred_check
    _
  $region19: #{_lambda_.37} parent=0 // pred_check_branch
    %20 = sbr.rel (0) target = $region21
  $region20: #{_lambda_.37} parent=0 // pred_region
    _
  $region21: #{_lambda_.37} parent=0 // pred_fallthru
    _
  // Predicated region
  $region22: #{_lambda_.37} parent=0 // pred_check
    _
  $region23: #{_lambda_.37} parent=0 // pred_check_branch
    %22 = sbr.rel (0) target = $region25
  $region24: #{_lambda_.37} parent=0 // pred_region
    _
  $region25: #{_lambda_.37} parent=0 // pred_fallthru
    _
  %v24 = vld [vmem:[%s0] sm:$0xf]
  %v25 = vld [vmem:[%s0 + $0x4] sm:$0xf]
  %v26 = vld [vmem:[%s1] sm:$0xf]
  %v27 = vld [vmem:[%s1 + $0x4] sm:$0xf]
  %v28 = vld [vmem:[%s1 + $0x8] sm:$0xf]
  %v29 = vld [vmem:[%s1 + $0xc] sm:$0xf]
  %v30 = vld [vmem:[%s1 + $0x10] sm:$0xf]
  %v31 = vld [vmem:[%s1 + $0x14] sm:$0xf]
  %v32 = vld [vmem:[%s1 + $0x18] sm:$0xf]
  %v33 = vld [vmem:[%s1 + $0x1c] sm:$0xf]
  %v34 = vld [vmem:[%s1 + $0x20] sm:$0xf]
  %v35 = vld [vmem:[%s1 + $0x24] sm:$0xf]
  %v36 = vld [vmem:[%s1 + $0x28] sm:$0xf]
  %v37 = vld [vmem:[%s1 + $0x2c] sm:$0xf]
  %v38 = vld [vmem:[%s1 + $0x30] sm:$0xf]
  %v39 = vld [vmem:[%s1 + $0x34] sm:$0xf]
  %v40 = vld [vmem:[%s1 + $0x38] sm:$0xf]
  %v41 = vld [vmem:[%s1 + $0x3c] sm:$0xf]
  %v42 = vld [vmem:[%s2] sm:$0x1]
  %v44 = vlaneseq
  %v45 = vshrl.u32 %v44, 7
  %v46 = vsub.s32 0, %v45
  %v47 = vrot.slane %v42, %v46
  %v51 = vunpack.c.l.b16 %v24
  %v52 = vunpack.c.l.b16 %v25
  %v53 = vpack.c.b16 %v52, %v51
  %v71 = vunpack.c.l.b16 %v26
  %v72 = vunpack.c.l.b16 %v27
  %v73 = vunpack.c.l.b16 %v28
  %v74 = vunpack.c.l.b16 %v29
  %v75 = vunpack.c.l.b16 %v30
  %v76 = vunpack.c.l.b16 %v31
  %v77 = vunpack.c.l.b16 %v32
  %v78 = vunpack.c.l.b16 %v33
  %v79 = vunpack.c.l.b16 %v34
  %v80 = vunpack.c.l.b16 %v35
  %v81 = vunpack.c.l.b16 %v36
  %v82 = vunpack.c.l.b16 %v37
  %v83 = vunpack.c.l.b16 %v38
  %v84 = vunpack.c.l.b16 %v39
  %v85 = vunpack.c.l.b16 %v40
  %v86 = vunpack.c.l.b16 %v41
  %v87 = vpack.c.b16 %v72, %v71
  %v88 = vpack.c.b16 %v74, %v73
  %v89 = vpack.c.b16 %v76, %v75
  %v90 = vpack.c.b16 %v78, %v77
  %v91 = vpack.c.b16 %v80, %v79
  %v92 = vpack.c.b16 %v82, %v81
  %v93 = vpack.c.b16 %v84, %v83
  %v94 = vpack.c.b16 %v86, %v85
  %103 = vmatprep.subr.bf16.mxu0 0
  %104 = vmatpush1.bf16.msra.mxu0 %v94
  %105 = vmatprep.subr.bf16.mxu0 0
  %106 = vmatpush1.bf16.msra.mxu0 %v93
  %107 = vmatprep.subr.bf16.mxu0 0
  %108 = vmatpush1.bf16.msra.mxu0 %v92
  %109 = vmatprep.subr.bf16.mxu0 0
  %110 = vmatpush1.bf16.msra.mxu0 %v91
  %111 = vmatprep.subr.bf16.mxu0 0
  %112 = vmatpush1.bf16.msra.mxu0 %v90
  %113 = vmatprep.subr.bf16.mxu0 0
  %114 = vmatpush1.bf16.msra.mxu0 %v89
  %115 = vmatprep.subr.bf16.mxu0 0
  %116 = vmatpush1.bf16.msra.mxu0 %v88
  %117 = vmatprep.subr.bf16.mxu0 0
  %118 = vmatpush1.bf16.msra.mxu0 %v87
  %119 = vmatprep.subr.bf16.mxu0 0
  %120 = vmatpush2.bf16.msra.mxu0 0
  %121 = vmatprep.subr.bf16.mxu0 0
  %122 = vmatpush2.bf16.msra.mxu0 0
  %123 = vmatprep.subr.bf16.mxu0 0
  %124 = vmatpush2.bf16.msra.mxu0 0
  %125 = vmatprep.subr.bf16.mxu0 0
  %126 = vmatpush2.bf16.msra.mxu0 0
  %127 = vmatprep.subr.bf16.mxu0 0
  %128 = vmatpush2.bf16.msra.mxu0 0
  %129 = vmatprep.subr.bf16.mxu0 0
  %130 = vmatpush2.bf16.msra.mxu0 0
  %131 = vmatprep.subr.bf16.mxu0 0
  %132 = vmatpush2.bf16.msra.mxu0 0
  %133 = vmatprep.subr.bf16.mxu0 0
  %134 = vmatpush2.bf16.msra.mxu0 0
  %135 = vmatprep.mubr.bf16.mxu0 0
  %136 = vmatmul.mubr.bf16.gmra.mxu0 %v53
  %v137 = vpop.f32.mrf.mxu0
  %v138 = vadd.f32 %v47, %v137
  %v139 = vpop.f32.mrf.mxu0
  %v140 = vpop.f32.mrf.mxu0
  %v141 = vadd.f32 %v47, %v140
  %v142 = vpop.f32.mrf.mxu0
  %143 = vdwg.mxu0
  %v144 = vld [vmem:[%s3] sm:$0xf]
  %v145 = vld [vmem:[%s3 + $0x4] sm:$0xf]
  %v146 = vunpack.c.l.bf16 %v144
  %v147 = vunpack.c.l.bf16 %v145
  %v148 = vadd.f32 %v138, %v146
  %v149 = vadd.f32 %v141, %v147
  %v150 = vld [vmem:[%s4] sm:$0x1]
  %v151 = vld [vmem:[%s5] sm:$0x1]
  %vm152 = vcmask 261120
  %v153 = vsel %vm152, %v148, 0.0
  %154 = vadd.xlane.f32.xlu0 %v153
  %v155 = vpop.xlane.xlu0 %154
  %v156 = vsel %vm152, %v149, 0.0
  %157 = vadd.xlane.f32.xlu0 %v156
  %v158 = vpop.xlane.xlu0 %157
  %v159 = vrcp.pop 32.0
  %v160 = vmul.f32 %v155, %v159
  %v161 = vmul.f32 %v158, %v159
  %v162 = vsub.f32 %v148, %v160
  %v163 = vsub.f32 %v149, %v161
  %v164 = vmul.f32 %v162, %v162
  %v165 = vmul.f32 %v163, %v163
  %v166 = vsel %vm152, %v164, 0.0
  %167 = vadd.xlane.f32.xlu0 %v166
  %v168 = vpop.xlane.xlu0 %167
  %v169 = vsel %vm152, %v165, 0.0
  %170 = vadd.xlane.f32.xlu0 %v169
  %v171 = vpop.xlane.xlu0 %170
  %v172 = vmul.f32 %v168, %v159
  %v173 = vmul.f32 %v171, %v159
  %v174 = vadd.f32 %v172, 1e-12
  %v175 = vadd.f32 %v173, 1e-12
  %v176 = vrsqrt.pop %v174
  %v177 = vrsqrt.pop %v175
  %v178 = vmul.f32 %v162, %v176
  %v179 = vmul.f32 %v163, %v177
  %v181 = vlaneseq
  %v182 = vshrl.u32 %v181, 7
  %v183 = vsub.s32 0, %v182
  %v184 = vrot.slane %v150, %v183
  %v186 = vmul.f32 %v178, %v184
  %v187 = vmul.f32 %v179, %v184
  %v189 = vlaneseq
  %v190 = vshrl.u32 %v189, 7
  %v191 = vsub.s32 0, %v190
  %v192 = vrot.slane %v151, %v191
  %v194 = vadd.f32 %v186, %v192
  %v195 = vadd.f32 %v187, %v192
  %v196 = vpack.c.bf16 %v195, %v194
  %v198 = vunpack.c.l.b16 %v196
  %v199 = vunpack.c.h.b16 %v196
  %v200 = vpack.c.b16 %v198, %v198
  %v201 = vpack.c.b16 %v199, %v199
  %vm204 = vcmask 257024
  %205 = vst.msk [vmem:[%s6] sm:$0xf] %vm204, %v200
  %206 = vst.msk [vmem:[%s6 + $0x4] sm:$0xf] %vm204, %v201
  // Predicated region
  $region26: #{_lambda_.37} parent=0 // pred_check
    _
  $region27: #{_lambda_.37} parent=0 // pred_check_branch
    %208 = sbr.rel (0) target = $region29
  $region28: #{_lambda_.37} parent=0 // pred_region
    _
  $region29: #{_lambda_.37} parent=0 // pred_fallthru
    _
  // Predicated region
  $region30: #{_lambda_.37} parent=0 // pred_check
    _
  $region31: #{_lambda_.37} parent=0 // pred_check_branch
    %210 = sbr.rel (0) target = $region33
  $region32: #{_lambda_.37} parent=0 // pred_region
    _
  $region33: #{_lambda_.37} parent=0 // pred_fallthru
    _

// kernel: _lambda_.32
$region0: #{_lambda_.32}
  #allocation0 [shape = 'u32[]', space=smem, size = 0x4, offset = 0x4, fixed_abs, tag = 'smem constant byte address 0x4 - core index']
  #allocation1 [shape = 'u32[144,128]{1,0:T(1,128)}', space=vmem, size = 0x12000, scoped, tag = 'internal scratch']
  %s0 = inlined_call_operand.vmem [shape: bf16[16,128], index: 0, kind: input, shape index: {}]
  %s1 = inlined_call_operand.vmem [shape: bf16[128,128], index: 1, kind: input, shape index: {}]
  %s2 = inlined_call_operand.vmem [shape: f32[1,128], index: 2, kind: input, shape index: {}]
  %s3 = inlined_call_operand.vmem [shape: f32[16,128], index: 3, kind: output, shape index: {}]
  %s4 = sld [smem:[#allocation0]]
  $region22: #{_lambda_.32} parent=0
    _
  %s6 = ssub.s32 1, %s4
  %s7 = scalar_select 0, %s6, %s4
  // Predicated region
  $region2: #{_lambda_.32} parent=0 // pred_check
    _
  $region3: #{_lambda_.32} parent=0 // pred_check_branch
    %9 = sbr.rel (0) target = $region5
  $region4: #{_lambda_.32} parent=0 // pred_region
    _
  $region5: #{_lambda_.32} parent=0 // pred_fallthru
    _
  // Predicated region
  $region6: #{_lambda_.32} parent=0 // pred_check
    _
  $region7: #{_lambda_.32} parent=0 // pred_check_branch
    %11 = sbr.rel (0) target = $region9
  $region8: #{_lambda_.32} parent=0 // pred_region
    _
  $region9: #{_lambda_.32} parent=0 // pred_fallthru
    _
  // Predicated region
  $region10: #{_lambda_.32} parent=0 // pred_check
    _
  $region11: #{_lambda_.32} parent=0 // pred_check_branch
    %13 = sbr.rel (0) target = $region13
  $region12: #{_lambda_.32} parent=0 // pred_region
    _
  $region13: #{_lambda_.32} parent=0 // pred_fallthru
    _
  %v15 = vld [vmem:[%s0] sm:$0xf]
  %v16 = vld [vmem:[%s0 + $0x4] sm:$0xf]
  %v17 = vld [vmem:[%s1] sm:$0xf]
  %v18 = vld [vmem:[%s1 + $0x4] sm:$0xf]
  %v19 = vld [vmem:[%s1 + $0x8] sm:$0xf]
  %v20 = vld [vmem:[%s1 + $0xc] sm:$0xf]
  %v21 = vld [vmem:[%s1 + $0x10] sm:$0xf]
  %v22 = vld [vmem:[%s1 + $0x14] sm:$0xf]
  %v23 = vld [vmem:[%s1 + $0x18] sm:$0xf]
  %v24 = vld [vmem:[%s1 + $0x1c] sm:$0xf]
  %v25 = vld [vmem:[%s1 + $0x20] sm:$0xf]
  %v26 = vld [vmem:[%s1 + $0x24] sm:$0xf]
  %v27 = vld [vmem:[%s1 + $0x28] sm:$0xf]
  %v28 = vld [vmem:[%s1 + $0x2c] sm:$0xf]
  %v29 = vld [vmem:[%s1 + $0x30] sm:$0xf]
  %v30 = vld [vmem:[%s1 + $0x34] sm:$0xf]
  %v31 = vld [vmem:[%s1 + $0x38] sm:$0xf]
  %v32 = vld [vmem:[%s1 + $0x3c] sm:$0xf]
  %v33 = vld [vmem:[%s2] sm:$0x1]
  %v35 = vlaneseq
  %v36 = vshrl.u32 %v35, 7
  %v37 = vsub.s32 0, %v36
  %v38 = vrot.slane %v33, %v37
  %v42 = vunpack.c.l.b16 %v15
  %v43 = vunpack.c.l.b16 %v16
  %v44 = vpack.c.b16 %v43, %v42
  %v62 = vunpack.c.l.b16 %v17
  %v63 = vunpack.c.l.b16 %v18
  %v64 = vunpack.c.l.b16 %v19
  %v65 = vunpack.c.l.b16 %v20
  %v66 = vunpack.c.l.b16 %v21
  %v67 = vunpack.c.l.b16 %v22
  %v68 = vunpack.c.l.b16 %v23
  %v69 = vunpack.c.l.b16 %v24
  %v70 = vunpack.c.l.b16 %v25
  %v71 = vunpack.c.l.b16 %v26
  %v72 = vunpack.c.l.b16 %v27
  %v73 = vunpack.c.l.b16 %v28
  %v74 = vunpack.c.l.b16 %v29
  %v75 = vunpack.c.l.b16 %v30
  %v76 = vunpack.c.l.b16 %v31
  %v77 = vunpack.c.l.b16 %v32
  %v78 = vpack.c.b16 %v63, %v62
  %v79 = vpack.c.b16 %v65, %v64
  %v80 = vpack.c.b16 %v67, %v66
  %v81 = vpack.c.b16 %v69, %v68
  %v82 = vpack.c.b16 %v71, %v70
  %v83 = vpack.c.b16 %v73, %v72
  %v84 = vpack.c.b16 %v75, %v74
  %v85 = vpack.c.b16 %v77, %v76
  %94 = vmatprep.subr.bf16.mxu0 0
  %95 = vmatpush1.bf16.msra.mxu0 %v85
  %96 = vmatprep.subr.bf16.mxu0 0
  %97 = vmatpush1.bf16.msra.mxu0 %v84
  %98 = vmatprep.subr.bf16.mxu0 0
  %99 = vmatpush1.bf16.msra.mxu0 %v83
  %100 = vmatprep.subr.bf16.mxu0 0
  %101 = vmatpush1.bf16.msra.mxu0 %v82
  %102 = vmatprep.subr.bf16.mxu0 0
  %103 = vmatpush1.bf16.msra.mxu0 %v81
  %104 = vmatprep.subr.bf16.mxu0 0
  %105 = vmatpush1.bf16.msra.mxu0 %v80
  %106 = vmatprep.subr.bf16.mxu0 0
  %107 = vmatpush1.bf16.msra.mxu0 %v79
  %108 = vmatprep.subr.bf16.mxu0 0
  %109 = vmatpush1.bf16.msra.mxu0 %v78
  %110 = vmatprep.subr.bf16.mxu0 0
  %111 = vmatpush2.bf16.msra.mxu0 0
  %112 = vmatprep.subr.bf16.mxu0 0
  %113 = vmatpush2.bf16.msra.mxu0 0
  %114 = vmatprep.subr.bf16.mxu0 0
  %115 = vmatpush2.bf16.msra.mxu0 0
  %116 = vmatprep.subr.bf16.mxu0 0
  %117 = vmatpush2.bf16.msra.mxu0 0
  %118 = vmatprep.subr.bf16.mxu0 0
  %119 = vmatpush2.bf16.msra.mxu0 0
  %120 = vmatprep.subr.bf16.mxu0 0
  %121 = vmatpush2.bf16.msra.mxu0 0
  %122 = vmatprep.subr.bf16.mxu0 0
  %123 = vmatpush2.bf16.msra.mxu0 0
  %124 = vmatprep.subr.bf16.mxu0 0
  %125 = vmatpush2.bf16.msra.mxu0 0
  %126 = vmatprep.mubr.bf16.mxu0 0
  %127 = vmatmul.mubr.bf16.gmra.mxu0 %v44
  %v128 = vpop.f32.mrf.mxu0
  %v129 = vadd.f32 %v38, %v128
  %v130 = vpop.f32.mrf.mxu0
  %v131 = vpop.f32.mrf.mxu0
  %v132 = vadd.f32 %v38, %v131
  %v133 = vpop.f32.mrf.mxu0
  %134 = vdwg.mxu0
  %135 = vst [vmem:[%s3] sm:$0xff] %v129
  %136 = vst [vmem:[%s3 + $0x8] sm:$0xff] %v132
  // Predicated region
  $region14: #{_lambda_.32} parent=0 // pred_check
    _
  $region15: #{_lambda_.32} parent=0 // pred_check_branch
    %138 = sbr.rel (0) target = $region17
  $region16: #{_lambda_.32} parent=0 // pred_region
    _
  $region17: #{_lambda_.32} parent=0 // pred_fallthru
    _
  // Predicated region
  $region18: #{_lambda_.32} parent=0 // pred_check
    _
  $region19: #{_lambda_.32} parent=0 // pred_check_branch
    %140 = sbr.rel (0) target = $region21
  $region20: #{_lambda_.32} parent=0 // pred_region
    _
  $region21: #{_lambda_.32} parent=0 // pred_fallthru
    _

// kernel: _lambda_.38
$region0: #{_lambda_.38}
  #allocation0 [shape = 'u32[]', space=smem, size = 0x4, offset = 0x4, fixed_abs, tag = 'smem constant byte address 0x4 - core index']
  #allocation1 [shape = 'u32[144,128]{1,0:T(1,128)}', space=vmem, size = 0x12000, scoped, tag = 'internal scratch']
  %s0 = inlined_call_operand.vmem [shape: bf16[16,128], index: 0, kind: input, shape index: {}]
  %s1 = inlined_call_operand.vmem [shape: bf16[128,128], index: 1, kind: input, shape index: {}]
  %s2 = inlined_call_operand.vmem [shape: f32[1,128], index: 2, kind: input, shape index: {}]
  %s3 = inlined_call_operand.vmem [shape: bf16[16,128], index: 3, kind: output, shape index: {}]
  %s4 = sld [smem:[#allocation0]]
  $region22: #{_lambda_.38} parent=0
    _
  %s6 = ssub.s32 1, %s4
  %s7 = scalar_select 0, %s6, %s4
  // Predicated region
  $region2: #{_lambda_.38} parent=0 // pred_check
    _
  $region3: #{_lambda_.38} parent=0 // pred_check_branch
    %9 = sbr.rel (0) target = $region5
  $region4: #{_lambda_.38} parent=0 // pred_region
    _
  $region5: #{_lambda_.38} parent=0 // pred_fallthru
    _
  // Predicated region
  $region6: #{_lambda_.38} parent=0 // pred_check
    _
  $region7: #{_lambda_.38} parent=0 // pred_check_branch
    %11 = sbr.rel (0) target = $region9
  $region8: #{_lambda_.38} parent=0 // pred_region
    _
  $region9: #{_lambda_.38} parent=0 // pred_fallthru
    _
  // Predicated region
  $region10: #{_lambda_.38} parent=0 // pred_check
    _
  $region11: #{_lambda_.38} parent=0 // pred_check_branch
    %13 = sbr.rel (0) target = $region13
  $region12: #{_lambda_.38} parent=0 // pred_region
    _
  $region13: #{_lambda_.38} parent=0 // pred_fallthru
    _
  %v15 = vld [vmem:[%s0] sm:$0xf]
  %v16 = vld [vmem:[%s0 + $0x4] sm:$0xf]
  %v17 = vld [vmem:[%s1] sm:$0xf]
  %v18 = vld [vmem:[%s1 + $0x4] sm:$0xf]
  %v19 = vld [vmem:[%s1 + $0x8] sm:$0xf]
  %v20 = vld [vmem:[%s1 + $0xc] sm:$0xf]
  %v21 = vld [vmem:[%s1 + $0x10] sm:$0xf]
  %v22 = vld [vmem:[%s1 + $0x14] sm:$0xf]
  %v23 = vld [vmem:[%s1 + $0x18] sm:$0xf]
  %v24 = vld [vmem:[%s1 + $0x1c] sm:$0xf]
  %v25 = vld [vmem:[%s1 + $0x20] sm:$0xf]
  %v26 = vld [vmem:[%s1 + $0x24] sm:$0xf]
  %v27 = vld [vmem:[%s1 + $0x28] sm:$0xf]
  %v28 = vld [vmem:[%s1 + $0x2c] sm:$0xf]
  %v29 = vld [vmem:[%s1 + $0x30] sm:$0xf]
  %v30 = vld [vmem:[%s1 + $0x34] sm:$0xf]
  %v31 = vld [vmem:[%s1 + $0x38] sm:$0xf]
  %v32 = vld [vmem:[%s1 + $0x3c] sm:$0xf]
  %v33 = vld [vmem:[%s2] sm:$0x1]
  %v35 = vlaneseq
  %v36 = vshrl.u32 %v35, 7
  %v37 = vsub.s32 0, %v36
  %v38 = vrot.slane %v33, %v37
  %v42 = vunpack.c.l.b16 %v15
  %v43 = vunpack.c.l.b16 %v16
  %v44 = vpack.c.b16 %v43, %v42
  %v62 = vunpack.c.l.b16 %v17
  %v63 = vunpack.c.l.b16 %v18
  %v64 = vunpack.c.l.b16 %v19
  %v65 = vunpack.c.l.b16 %v20
  %v66 = vunpack.c.l.b16 %v21
  %v67 = vunpack.c.l.b16 %v22
  %v68 = vunpack.c.l.b16 %v23
  %v69 = vunpack.c.l.b16 %v24
  %v70 = vunpack.c.l.b16 %v25
  %v71 = vunpack.c.l.b16 %v26
  %v72 = vunpack.c.l.b16 %v27
  %v73 = vunpack.c.l.b16 %v28
  %v74 = vunpack.c.l.b16 %v29
  %v75 = vunpack.c.l.b16 %v30
  %v76 = vunpack.c.l.b16 %v31
  %v77 = vunpack.c.l.b16 %v32
  %v78 = vpack.c.b16 %v63, %v62
  %v79 = vpack.c.b16 %v65, %v64
  %v80 = vpack.c.b16 %v67, %v66
  %v81 = vpack.c.b16 %v69, %v68
  %v82 = vpack.c.b16 %v71, %v70
  %v83 = vpack.c.b16 %v73, %v72
  %v84 = vpack.c.b16 %v75, %v74
  %v85 = vpack.c.b16 %v77, %v76
  %94 = vmatprep.subr.bf16.mxu0 0
  %95 = vmatpush1.bf16.msra.mxu0 %v85
  %96 = vmatprep.subr.bf16.mxu0 0
  %97 = vmatpush1.bf16.msra.mxu0 %v84
  %98 = vmatprep.subr.bf16.mxu0 0
  %99 = vmatpush1.bf16.msra.mxu0 %v83
  %100 = vmatprep.subr.bf16.mxu0 0
  %101 = vmatpush1.bf16.msra.mxu0 %v82
  %102 = vmatprep.subr.bf16.mxu0 0
  %103 = vmatpush1.bf16.msra.mxu0 %v81
  %104 = vmatprep.subr.bf16.mxu0 0
  %105 = vmatpush1.bf16.msra.mxu0 %v80
  %106 = vmatprep.subr.bf16.mxu0 0
  %107 = vmatpush1.bf16.msra.mxu0 %v79
  %108 = vmatprep.subr.bf16.mxu0 0
  %109 = vmatpush1.bf16.msra.mxu0 %v78
  %110 = vmatprep.subr.bf16.mxu0 0
  %111 = vmatpush2.bf16.msra.mxu0 0
  %112 = vmatprep.subr.bf16.mxu0 0
  %113 = vmatpush2.bf16.msra.mxu0 0
  %114 = vmatprep.subr.bf16.mxu0 0
  %115 = vmatpush2.bf16.msra.mxu0 0
  %116 = vmatprep.subr.bf16.mxu0 0
  %117 = vmatpush2.bf16.msra.mxu0 0
  %118 = vmatprep.subr.bf16.mxu0 0
  %119 = vmatpush2.bf16.msra.mxu0 0
  %120 = vmatprep.subr.bf16.mxu0 0
  %121 = vmatpush2.bf16.msra.mxu0 0
  %122 = vmatprep.subr.bf16.mxu0 0
  %123 = vmatpush2.bf16.msra.mxu0 0
  %124 = vmatprep.subr.bf16.mxu0 0
  %125 = vmatpush2.bf16.msra.mxu0 0
  %126 = vmatprep.mubr.bf16.mxu0 0
  %127 = vmatmul.mubr.bf16.gmra.mxu0 %v44
  %v128 = vpop.f32.mrf.mxu0
  %v129 = vadd.f32 %v38, %v128
  %v130 = vpop.f32.mrf.mxu0
  %v131 = vpop.f32.mrf.mxu0
  %v132 = vadd.f32 %v38, %v131
  %v133 = vpop.f32.mrf.mxu0
  %134 = vdwg.mxu0
  %v135 = vmul.f32 %v129, 0.5
  %v136 = vmul.f32 %v132, 0.5
  %v137 = vmul.f32 %v129, 0.044715
  %v138 = vmul.f32 %v132, 0.044715
  %v139 = vmul.f32 %v137, %v129
  %v140 = vmul.f32 %v138, %v132
  %v141 = vmul.f32 %v139, %v129
  %v142 = vmul.f32 %v140, %v132
  %v143 = vadd.f32 %v129, %v141
  %v144 = vadd.f32 %v132, %v142
  %v145 = vmul.f32 %v143, 0.7978846
  %v146 = vmul.f32 %v144, 0.7978846
  %v147 = vtanh.pop %v145
  %v148 = vtanh.pop %v146
  %v149 = vadd.f32 %v147, 1.0
  %v150 = vadd.f32 %v148, 1.0
  %v151 = vmul.f32 %v135, %v149
  %v152 = vmul.f32 %v136, %v150
  %v153 = vpack.c.bf16 %v152, %v151
  %v155 = vunpack.c.l.b16 %v153
  %v156 = vunpack.c.h.b16 %v153
  %v157 = vpack.c.b16 %v155, %v155
  %v158 = vpack.c.b16 %v156, %v156
  %161 = vst [vmem:[%s3] sm:$0xf] %v157
  %162 = vst [vmem:[%s3 + $0x4] sm:$0xf] %v158
  // Predicated region
  $region14: #{_lambda_.38} parent=0 // pred_check
    _
  $region15: #{_lambda_.38} parent=0 // pred_check_branch
    %164 = sbr.rel (0) target = $region17
  $region16: #{_lambda_.38} parent=0 // pred_region
    _
  $region17: #{_lambda_.38} parent=0 // pred_fallthru
    _
  // Predicated region
  $region18: #{_lambda_.38} parent=0 // pred_check
    _
  $region19: #{_lambda_.38} parent=0 // pred_check_branch
    %166 = sbr.rel (0) target = $region21
  $region20: #{_lambda_.38} parent=0 // pred_region
    _
  $region21: #{_lambda_.38} parent=0 // pred_fallthru
    _

// kernel: _lambda_.46
$region0: #{_lambda_.46}
  #allocation0 [shape = 'u32[]', space=smem, size = 0x4, offset = 0x4, fixed_abs, tag = 'smem constant byte address 0x4 - core index']
  #allocation1 [shape = 'u32[144,128]{1,0:T(1,128)}', space=vmem, size = 0x12000, scoped, tag = 'internal scratch']
  %s0 = inlined_call_operand.vmem [shape: bf16[2,8,96], index: 0, kind: input, shape index: {}]
  %s1 = inlined_call_operand.vmem [shape: f32[2,1,8], index: 1, kind: input, shape index: {}]
  %s2 = inlined_call_operand.vmem [shape: bf16[2,8,32], index: 2, kind: output, shape index: {}]
  %s3 = sld [smem:[#allocation0]]
  $region41: #{_lambda_.46} parent=0
    _
  %s5 = ssub.s32 1, %s3
  %s6 = scalar_select 0, %s5, %s3
  loop: start=0, step=1, limit=4
  $region2: #{_lambda_.46} parent=0 // loop_pre_header
    _
  $region3: #{_lambda_.46} parent=0 // loop_header
    %s8 = sphi 0, %s12
    %p9 = scmp.ge.s32.totalorder %s8, 4
    %s18 = sphi 0, %s20
    %s21 = sphi 0, %s18
    %s22 = sphi 0, %s21
    %s38 = sphi 0, %s22
    %s44 = sphi 0, %s46
    %s47 = sphi 0, %s44
    %s48 = sphi 0, %s47
    %s64 = sphi 0, %s48
    %s70 = sphi 0, %s72
    %s73 = sphi 0, %s70
    %s74 = sphi 0, %s73
    %s90 = sphi 0, %s74
  $region4: #{_lambda_.46} parent=0 // loop_header_branch
    %11 = sbr.rel (%p9) target = $region8
  $region5: #{_lambda_.46} parent=0 // loop_body
    %s13 = ssub.s32 %s8, 1
    %s14 = ssub.s32 %s8, 2
    %s15 = sadd.s32 %s8, 1
    %s16 = ssub.s32 %s8, %s15
    %p17 = scmp.eq.s32.totalorder %s16, 0
    %s19 = sadd.s32 %s18, 1
    %s20 = scalar_select %p17, %s18, %s19
    %p23 = pneg %p17
    %p24 = scmp.eq.s32.totalorder %s8, 1
    %p25 = por %p23, %p24
    %p26 = scmp.ne.s32.totalorder %s18, %s21
    %p27 = scmp.eq.s32.totalorder %s8, 0
    %p28 = por %p26, %p27
    %p29 = scmp.ne.s32.totalorder %s18, %s21
    %p30 = scmp.eq.s32.totalorder %s13, 1
    %p31 = por %p29, %p30
    %p32 = scmp.ne.s32.totalorder %s21, %s22
    %p33 = scmp.eq.s32.totalorder %s13, 0
    %p34 = por %p32, %p33
    %p35 = scmp.ne.s32.totalorder %s21, %s22
    %p36 = scmp.eq.s32.totalorder %s14, 1
    %p37 = por %p35, %p36
    %p39 = scmp.ne.s32.totalorder %s22, %s38
    %p40 = scmp.eq.s32.totalorder %s14, 0
    %p41 = por %p39, %p40
    %s42 = ssub.s32 %s8, %s15
    %p43 = scmp.eq.s32.totalorder %s42, 0
    %s45 = sadd.s32 %s44, 1
    %s46 = scalar_select %p43, %s44, %s45
    %p49 = pneg %p43
    %p50 = scmp.eq.s32.totalorder %s8, 1
    %p51 = por %p49, %p50
    %p52 = scmp.ne.s32.totalorder %s44, %s47
    %p53 = scmp.eq.s32.totalorder %s8, 0
    %p54 = por %p52, %p53
    %p55 = scmp.ne.s32.totalorder %s44, %s47
    %p56 = scmp.eq.s32.totalorder %s13, 1
    %p57 = por %p55, %p56
    %p58 = scmp.ne.s32.totalorder %s47, %s48
    %p59 = scmp.eq.s32.totalorder %s13, 0
    %p60 = por %p58, %p59
    %p61 = scmp.ne.s32.totalorder %s47, %s48
    %p62 = scmp.eq.s32.totalorder %s14, 1
    %p63 = por %p61, %p62
    %p65 = scmp.ne.s32.totalorder %s48, %s64
    %p66 = scmp.eq.s32.totalorder %s14, 0
    %p67 = por %p65, %p66
    %s68 = ssub.s32 %s8, %s15
    %p69 = scmp.eq.s32.totalorder %s68, 0
    %s71 = sadd.s32 %s70, 1
    %s72 = scalar_select %p69, %s70, %s71
    %p75 = pneg %p69
    %p76 = scmp.eq.s32.totalorder %s8, 1
    %p77 = por %p75, %p76
    %p78 = scmp.ne.s32.totalorder %s70, %s73
    %p79 = scmp.eq.s32.totalorder %s8, 0
    %p80 = por %p78, %p79
    %p81 = scmp.ne.s32.totalorder %s70, %s73
    %p82 = scmp.eq.s32.totalorder %s13, 1
    %p83 = por %p81, %p82
    %p84 = scmp.ne.s32.totalorder %s73, %s74
    %p85 = scmp.eq.s32.totalorder %s13, 0
    %p86 = por %p84, %p85
    %p87 = scmp.ne.s32.totalorder %s73, %s74
    %p88 = scmp.eq.s32.totalorder %s14, 1
    %p89 = por %p87, %p88
    %p91 = scmp.ne.s32.totalorder %s74, %s90
    %p92 = scmp.eq.s32.totalorder %s14, 0
    %p93 = por %p91, %p92
    %p94 = scmp.le.s32.totalorder 1, %s8
    %p95 = scmp.lt.s32.totalorder %s8, 3
    %p96 = pnand %p94, %p95
    %p97 = pneg %p96
    // Predicated region
    $region9: #{_lambda_.46} parent=5 // pred_check
      _
    $region10: #{_lambda_.46} parent=5 // pred_check_branch
      %99 = sbr.rel (%p96) target = $region12
    $region11: #{_lambda_.46} parent=5 // pred_region
      %s100 = ssub.s32 %s8, 1
    $region12: #{_lambda_.46} parent=5 // pred_fallthru
      _
    %p101 = scmp.lt.s32.totalorder %s8, 2
    // Predicated region
    $region13: #{_lambda_.46} parent=5 // pred_check
      %p102 = pneg %p101
    $region14: #{_lambda_.46} parent=5 // pred_check_branch
      %104 = sbr.rel (%p102) target = $region16
    $region15: #{_lambda_.46} parent=5 // pred_region
      // Predicated region
      $region17: #{_lambda_.46} parent=15 // pred_check
        %p105 = pneg %p28
      $region18: #{_lambda_.46} parent=15 // pred_check_branch
        %107 = sbr.rel (%p105) target = $region20
      $region19: #{_lambda_.46} parent=15 // pred_region
        %p108 = scmp.lt.s32.totalorder %s8, 1
        %s109 = scalar_select %p108, %s8, 1
        %s110 = smul.addr %s109, 4
        %s111 = scalar_lea.vmem %s0, %s110
      $region20: #{_lambda_.46} parent=15 // pred_fallthru
        _
      // Predicated region
      $region21: #{_lambda_.46} parent=15 // pred_check
        %p112 = pneg %p54
      $region22: #{_lambda_.46} parent=15 // pred_check_branch
        %114 = sbr.rel (%p112) target = $region24
      $region23: #{_lambda_.46} parent=15 // pred_region
        %p115 = scmp.lt.s32.totalorder %s8, 1
        %s116 = scalar_select %p115, %s8, 1
        %s117 = scalar_lea.vmem %s1, %s116
      $region24: #{_lambda_.46} parent=15 // pred_fallthru
        _
    $region16: #{_lambda_.46} parent=5 // pred_fallthru
      _
    %p118 = scmp.le.s32.totalorder 1, %s8
    %p119 = scmp.lt.s32.totalorder %s8, 3
    %p120 = pnand %p118, %p119
    %p121 = pneg %p120
    // Predicated region
    $region25: #{_lambda_.46} parent=5 // pred_check
      _
    $region26: #{_lambda_.46} parent=5 // pred_check_branch
      %123 = sbr.rel (%p120) target = $region28
    $region27: #{_lambda_.46} parent=5 // pred_region
      %s124 = ssub.s32 %s8, 1
      %p125 = scmp.lt.s32.totalorder %s13, 1
      %s126 = scalar_select %p125, %s13, 1
      %s127 = smul.addr %s126, 4
      %s128 = scalar_lea.vmem %s0, %s127
      %p129 = pneg %p34
      %p130 = pneg %p31
      %p131 = scmp.lt.s32.totalorder %s13, 1
      %s132 = scalar_select %p131, %s13, 1
      %s133 = scalar_lea.vmem %s1, %s132
      %p134 = pneg %p60
      %p135 = pneg %p57
      %p136 = pneg %p86
      %p137 = pneg %p83
      %p138 = scmp.lt.s32.totalorder %s13, 1
      %s139 = scalar_select %p138, %s13, 1
      %s140 = smul.addr %s139, 4
      %s141 = scalar_lea.vmem %s2, %s140
      %p142 = scmp.lt.s32.totalorder %s13, 1
      %s143 = scalar_select %p142, %s13, 1
      %s144 = smul.addr %s143, 4
      %s145 = scalar_lea.vmem %s0, %s144
      %p146 = scmp.lt.s32.totalorder %s13, 1
      %s147 = scalar_select %p146, %s13, 1
      %s148 = scalar_lea.vmem %s1, %s147
      %p149 = scmp.lt.s32.totalorder %s13, 1
      %s150 = scalar_select %p149, %s13, 1
      %s151 = smul.addr %s150, 4
      %s152 = scalar_lea.vmem %s2, %s151
      %v154 = vld [vmem:[%s145] sm:$0xf]
      %v155 = vlaneseq
      %v156 = vshrl.u32 %v155, 7
      %v157 = vlaneseq
      %v158 = vand.u32 %v157, 127
      %vm159 = vcmp.ge.s32.totalorder %v156, %v158
      %v160 = vsel %vm159, 0.0, -1e+09
      %v161 = vld [vmem:[%s148] sm:$0x1]
      %v163 = vlaneseq
      %v164 = vshrl.u32 %v163, 7
      %v165 = vsub.s32 0, %v164
      %v166 = vrot.slane %v161, %v165
      %v168 = vmin.f32 %v160, %v166
      %v170 = vunpack.c.l.b16 %v154
      %v171 = vpack.c.b16 %v170, %v170
      %172 = vrot.lane.b32.xlu0 %v171, 96
      %v173 = vpop.permute.xlu0 %172
      %vm174 = vcmask 130048
      %v176 = vsel %vm174, %v154, 0
      %v179 = vsel %vm174, %v173, 0
      %181 = vmatprep.subr.bf16.mxu0 0
      %182 = vmatpush1.bf16.xpose.msra.mxu0 0
      %183 = vmatprep.subr.bf16.mxu0 0
      %184 = vmatpush1.bf16.xpose.msra.mxu0 0
      %185 = vmatprep.subr.bf16.mxu0 0
      %186 = vmatpush1.bf16.xpose.msra.mxu0 0
      %187 = vmatprep.subr.bf16.mxu0 0
      %188 = vmatpush1.bf16.xpose.msra.mxu0 0
      %189 = vmatprep.subr.bf16.mxu0 0
      %190 = vmatpush1.bf16.xpose.msra.mxu0 0
      %191 = vmatprep.subr.bf16.mxu0 0
      %192 = vmatpush1.bf16.xpose.msra.mxu0 0
      %193 = vmatprep.subr.bf16.mxu0 0
      %194 = vmatpush1.bf16.xpose.msra.mxu0 0
      %195 = vmatprep.subr.bf16.mxu0 0
      %196 = vmatpush1.bf16.xpose.msra.mxu0 %v179
      %197 = vmatprep.subr.bf16.mxu0 0
      %198 = vmatpush2.bf16.xpose.msra.mxu0 0
      %199 = vmatprep.subr.bf16.mxu0 0
      %200 = vmatpush2.bf16.xpose.msra.mxu0 0
      %201 = vmatprep.subr.bf16.mxu0 0
      %202 = vmatpush2.bf16.xpose.msra.mxu0 0
      %203 = vmatprep.subr.bf16.mxu0 0
      %204 = vmatpush2.bf16.xpose.msra.mxu0 0
      %205 = vmatprep.subr.bf16.mxu0 0
      %206 = vmatpush2.bf16.xpose.msra.mxu0 0
      %207 = vmatprep.subr.bf16.mxu0 0
      %208 = vmatpush2.bf16.xpose.msra.mxu0 0
      %209 = vmatprep.subr.bf16.mxu0 0
      %210 = vmatpush2.bf16.xpose.msra.mxu0 0
      %211 = vmatprep.subr.bf16.mxu0 0
      %212 = vmatpush2.bf16.xpose.msra.mxu0 0
      %213 = vmatprep.mubr.bf16.mxu0 0
      %214 = vmatmul.mubr.bf16.gmra.mxu0 %v176
      %v215 = vpop.f32.mrf.mxu0
      %v216 = vadd.f32 0.0, %v215
      %v217 = vpop.f32.mrf.mxu0
      %v218 = vpop.f32.mrf.mxu0
      %v219 = vpop.f32.mrf.mxu0
      %220 = vdwg.mxu0
      %v221 = vmul.f32 %v216, 0.25
      %v222 = vadd.f32 %v221, %v168
      %vm223 = vcmask 64512
      %v224 = vsel %vm223, %v222, -inf
      %225 = vmax.xlane.f32.xlu0 %v224
      %v226 = vpop.xlane.xlu0 %225
      %v227 = vsub.f32 %v222, %v226
      %v228 = vmul.f32 %v227, 1.442695
      %v229 = vpow.pop %v228
      %v230 = vsel %vm223, %v229, 0.0
      %231 = vadd.xlane.f32.xlu0 %v230
      %v232 = vpop.xlane.xlu0 %231
      %v233 = vpack.c.bf16 %v229, %v229
      %234 = vrot.lane.b32.xlu0 %v171, 64
      %v235 = vpop.permute.xlu0 %234
      %v237 = vsel %vm223, %v233, 0
      %vm239 = vcmask 1043456
      %v241 = vsel %vm239, %v235, 0
      %243 = vmatprep.subr.bf16.mxu0 0
      %244 = vmatpush1.bf16.msra.mxu0 0
      %245 = vmatprep.subr.bf16.mxu0 0
      %246 = vmatpush1.bf16.msra.mxu0 0
      %247 = vmatprep.subr.bf16.mxu0 0
      %248 = vmatpush1.bf16.msra.mxu0 0
      %249 = vmatprep.subr.bf16.mxu0 0
      %250 = vmatpush1.bf16.msra.mxu0 0
      %251 = vmatprep.subr.bf16.mxu0 0
      %252 = vmatpush1.bf16.msra.mxu0 0
      %253 = vmatprep.subr.bf16.mxu0 0
      %254 = vmatpush1.bf16.msra.mxu0 0
      %255 = vmatprep.subr.bf16.mxu0 0
      %256 = vmatpush1.bf16.msra.mxu0 0
      %257 = vmatprep.subr.bf16.mxu0 0
      %258 = vmatpush1.bf16.msra.mxu0 %v241
      %259 = vmatprep.subr.bf16.mxu0 0
      %260 = vmatpush2.bf16.msra.mxu0 0
      %261 = vmatprep.subr.bf16.mxu0 0
      %262 = vmatpush2.bf16.msra.mxu0 0
      %263 = vmatprep.subr.bf16.mxu0 0
      %264 = vmatpush2.bf16.msra.mxu0 0
      %265 = vmatprep.subr.bf16.mxu0 0
      %266 = vmatpush2.bf16.msra.mxu0 0
      %267 = vmatprep.subr.bf16.mxu0 0
      %268 = vmatpush2.bf16.msra.mxu0 0
      %269 = vmatprep.subr.bf16.mxu0 0
      %270 = vmatpush2.bf16.msra.mxu0 0
      %271 = vmatprep.subr.bf16.mxu0 0
      %272 = vmatpush2.bf16.msra.mxu0 0
      %273 = vmatprep.subr.bf16.mxu0 0
      %274 = vmatpush2.bf16.msra.mxu0 0
      %275 = vmatprep.mubr.bf16.mxu0 0
      %276 = vmatmul.mubr.bf16.gmra.mxu0 %v237
      %v277 = vpop.f32.mrf.mxu0
      %v278 = vadd.f32 0.0, %v277
      %v279 = vpop.f32.mrf.mxu0
      %v280 = vpop.f32.mrf.mxu0
      %v281 = vpop.f32.mrf.mxu0
      %282 = vdwg.mxu0
      %v283 = vrcp.pop %v232
      %v284 = vmul.f32 %v278, %v283
      %v285 = vpack.c.bf16 %v284, %v284
      %vm286 = vcmask 125952
      %287 = vst.msk [vmem:[%s152] sm:$0xf] %vm286, %v285
      %288 = vrot.lane.b32.xlu0 %v171, 112
      %v289 = vpop.permute.xlu0 %288
      %290 = vrot.lane.b32.xlu0 %v171, 80
      %v291 = vpop.permute.xlu0 %290
      %v293 = vsel %vm174, %v289, 0
      %v296 = vsel %vm174, %v291, 0
      %298 = vmatprep.subr.bf16.mxu0 0
      %299 = vmatpush1.bf16.xpose.msra.mxu0 0
      %300 = vmatprep.subr.bf16.mxu0 0
      %301 = vmatpush1.bf16.xpose.msra.mxu0 0
      %302 = vmatprep.subr.bf16.mxu0 0
      %303 = vmatpush1.bf16.xpose.msra.mxu0 0
      %304 = vmatprep.subr.bf16.mxu0 0
      %305 = vmatpush1.bf16.xpose.msra.mxu0 0
      %306 = vmatprep.subr.bf16.mxu0 0
      %307 = vmatpush1.bf16.xpose.msra.mxu0 0
      %308 = vmatprep.subr.bf16.mxu0 0
      %309 = vmatpush1.bf16.xpose.msra.mxu0 0
      %310 = vmatprep.subr.bf16.mxu0 0
      %311 = vmatpush1.bf16.xpose.msra.mxu0 0
      %312 = vmatprep.subr.bf16.mxu0 0
      %313 = vmatpush1.bf16.xpose.msra.mxu0 %v296
      %314 = vmatprep.subr.bf16.mxu0 0
      %315 = vmatpush2.bf16.xpose.msra.mxu0 0
      %316 = vmatprep.subr.bf16.mxu0 0
      %317 = vmatpush2.bf16.xpose.msra.mxu0 0
      %318 = vmatprep.subr.bf16.mxu0 0
      %319 = vmatpush2.bf16.xpose.msra.mxu0 0
      %320 = vmatprep.subr.bf16.mxu0 0
      %321 = vmatpush2.bf16.xpose.msra.mxu0 0
      %322 = vmatprep.subr.bf16.mxu0 0
      %323 = vmatpush2.bf16.xpose.msra.mxu0 0
      %324 = vmatprep.subr.bf16.mxu0 0
      %325 = vmatpush2.bf16.xpose.msra.mxu0 0
      %326 = vmatprep.subr.bf16.mxu0 0
      %327 = vmatpush2.bf16.xpose.msra.mxu0 0
      %328 = vmatprep.subr.bf16.mxu0 0
      %329 = vmatpush2.bf16.xpose.msra.mxu0 0
      %330 = vmatprep.mubr.bf16.mxu0 0
      %331 = vmatmul.mubr.bf16.gmra.mxu0 %v293
      %v332 = vpop.f32.mrf.mxu0
      %v333 = vadd.f32 0.0, %v332
      %v334 = vpop.f32.mrf.mxu0
      %v335 = vpop.f32.mrf.mxu0
      %v336 = vpop.f32.mrf.mxu0
      %337 = vdwg.mxu0
      %v338 = vmul.f32 %v333, 0.25
      %v339 = vadd.f32 %v338, %v168
      %v340 = vsel %vm223, %v339, -inf
      %341 = vmax.xlane.f32.xlu0 %v340
      %v342 = vpop.xlane.xlu0 %341
      %v343 = vsub.f32 %v339, %v342
      %v344 = vmul.f32 %v343, 1.442695
      %v345 = vpow.pop %v344
      %v346 = vsel %vm223, %v345, 0.0
      %347 = vadd.xlane.f32.xlu0 %v346
      %v348 = vpop.xlane.xlu0 %347
      %v349 = vpack.c.bf16 %v345, %v345
      %350 = vrot.lane.b32.xlu0 %v171, 48
      %v351 = vpop.permute.xlu0 %350
      %v353 = vsel %vm223, %v349, 0
      %v356 = vsel %vm239, %v351, 0
      %358 = vmatprep.subr.bf16.mxu0 0
      %359 = vmatpush1.bf16.msra.mxu0 0
      %360 = vmatprep.subr.bf16.mxu0 0
      %361 = vmatpush1.bf16.msra.mxu0 0
      %362 = vmatprep.subr.bf16.mxu0 0
      %363 = vmatpush1.bf16.msra.mxu0 0
      %364 = vmatprep.subr.bf16.mxu0 0
      %365 = vmatpush1.bf16.msra.mxu0 0
      %366 = vmatprep.subr.bf16.mxu0 0
      %367 = vmatpush1.bf16.msra.mxu0 0
      %368 = vmatprep.subr.bf16.mxu0 0
      %369 = vmatpush1.bf16.msra.mxu0 0
      %370 = vmatprep.subr.bf16.mxu0 0
      %371 = vmatpush1.bf16.msra.mxu0 0
      %372 = vmatprep.subr.bf16.mxu0 0
      %373 = vmatpush1.bf16.msra.mxu0 %v356
      %374 = vmatprep.subr.bf16.mxu0 0
      %375 = vmatpush2.bf16.msra.mxu0 0
      %376 = vmatprep.subr.bf16.mxu0 0
      %377 = vmatpush2.bf16.msra.mxu0 0
      %378 = vmatprep.subr.bf16.mxu0 0
      %379 = vmatpush2.bf16.msra.mxu0 0
      %380 = vmatprep.subr.bf16.mxu0 0
      %381 = vmatpush2.bf16.msra.mxu0 0
      %382 = vmatprep.subr.bf16.mxu0 0
      %383 = vmatpush2.bf16.msra.mxu0 0
      %384 = vmatprep.subr.bf16.mxu0 0
      %385 = vmatpush2.bf16.msra.mxu0 0
      %386 = vmatprep.subr.bf16.mxu0 0
      %387 = vmatpush2.bf16.msra.mxu0 0
      %388 = vmatprep.subr.bf16.mxu0 0
      %389 = vmatpush2.bf16.msra.mxu0 0
      %390 = vmatprep.mubr.bf16.mxu0 0
      %391 = vmatmul.mubr.bf16.gmra.mxu0 %v353
      %v392 = vpop.f32.mrf.mxu0
      %v393 = vadd.f32 0.0, %v392
      %v394 = vpop.f32.mrf.mxu0
      %v395 = vpop.f32.mrf.mxu0
      %v396 = vpop.f32.mrf.mxu0
      %397 = vdwg.mxu0
      %v398 = vrcp.pop %v348
      %v399 = vmul.f32 %v393, %v398
      %v400 = vpack.c.bf16 %v399, %v399
      %v402 = vunpack.c.l.b16 %v400
      %v403 = vpack.c.b16 %v402, %v402
      %404 = vrot.lane.b32.xlu0 %v403, 16
      %v405 = vpop.permute.xlu0 %404
      %vm407 = vcmask 257152
      %408 = vst.msk [vmem:[%s152] sm:$0xf] %vm407, %v405
      %p409 = scmp.lt.s32.totalorder %s13, 1
      %s410 = scalar_select %p409, %s13, 1
      %s411 = smul.addr %s410, 4
      %s412 = scalar_lea.vmem %s2, %s411
      // Predicated region
      $region29: #{_lambda_.46} parent=27 // pred_check
        %p413 = pneg %p83
      $region30: #{_lambda_.46} parent=27 // pred_check_branch
        %415 = sbr.rel (%p413) target = $region32
      $region31: #{_lambda_.46} parent=27 // pred_region
        _
      $region32: #{_lambda_.46} parent=27 // pred_fallthru
        _
    $region28: #{_lambda_.46} parent=5 // pred_fallthru
      _
    %p416 = scmp.le.s32.totalorder 2, %s8
    // Predicated region
    $region33: #{_lambda_.46} parent=5 // pred_check
      %p417 = pneg %p416
    $region34: #{_lambda_.46} parent=5 // pred_check_branch
      %419 = sbr.rel (%p417) target = $region36
    $region35: #{_lambda_.46} parent=5 // pred_region
      %s420 = ssub.s32 %s8, 2
      // Predicated region
      $region37: #{_lambda_.46} parent=35 // pred_check
        %p421 = pneg %p89
      $region38: #{_lambda_.46} parent=35 // pred_check_branch
        %423 = sbr.rel (%p421) target = $region40
      $region39: #{_lambda_.46} parent=35 // pred_region
        %p424 = scmp.lt.s32.totalorder %s14, 1
        %s425 = scalar_select %p424, %s14, 1
        %s426 = smul.addr %s425, 4
        %s427 = scalar_lea.vmem %s2, %s426
      $region40: #{_lambda_.46} parent=35 // pred_fallthru
        _
    $region36: #{_lambda_.46} parent=5 // pred_fallthru
      _
  $region6: #{_lambda_.46} parent=0 // loop_footer
    %s12 = sadd.s32 1, %s8
  $region7: #{_lambda_.46} parent=0 // loop_footer_branch
    %7 = sbr.rel target = $region3
  $region8: #{_lambda_.46} parent=0 // loop_exit
    _

// kernel: _lambda_.50
$region0: #{_lambda_.50}
  #allocation0 [shape = 'u32[]', space=smem, size = 0x4, offset = 0x4, fixed_abs, tag = 'smem constant byte address 0x4 - core index']
  #allocation1 [shape = 'u32[144,128]{1,0:T(1,128)}', space=vmem, size = 0x12000, scoped, tag = 'internal scratch']
  %s0 = inlined_call_operand.vmem [shape: bf16[2,8,32], index: 0, kind: input, shape index: {}]
  %s1 = inlined_call_operand.vmem [shape: bf16[2,8,64], index: 1, kind: input, shape index: {}]
  %s2 = inlined_call_operand.vmem [shape: f32[2,1,8], index: 2, kind: input, shape index: {}]
  %s3 = inlined_call_operand.vmem [shape: bf16[2,8,32], index: 3, kind: output, shape index: {}]
  %s4 = sld [smem:[#allocation0]]
  $region45: #{_lambda_.50} parent=0
    _
  %s6 = ssub.s32 1, %s4
  %s7 = scalar_select 0, %s6, %s4
  loop: start=0, step=1, limit=4
  $region2: #{_lambda_.50} parent=0 // loop_pre_header
    _
  $region3: #{_lambda_.50} parent=0 // loop_header
    %s9 = sphi 0, %s13
    %p10 = scmp.ge.s32.totalorder %s9, 4
    %s19 = sphi 0, %s21
    %s22 = sphi 0, %s19
    %s23 = sphi 0, %s22
    %s39 = sphi 0, %s23
    %s45 = sphi 0, %s47
    %s48 = sphi 0, %s45
    %s49 = sphi 0, %s48
    %s65 = sphi 0, %s49
    %s71 = sphi 0, %s73
    %s74 = sphi 0, %s71
    %s75 = sphi 0, %s74
    %s91 = sphi 0, %s75
    %s97 = sphi 0, %s99
    %s100 = sphi 0, %s97
    %s101 = sphi 0, %s100
    %s117 = sphi 0, %s101
  $region4: #{_lambda_.50} parent=0 // loop_header_branch
    %12 = sbr.rel (%p10) target = $region8
  $region5: #{_lambda_.50} parent=0 // loop_body
    %s14 = ssub.s32 %s9, 1
    %s15 = ssub.s32 %s9, 2
    %s16 = sadd.s32 %s9, 1
    %s17 = ssub.s32 %s9, %s16
    %p18 = scmp.eq.s32.totalorder %s17, 0
    %s20 = sadd.s32 %s19, 1
    %s21 = scalar_select %p18, %s19, %s20
    %p24 = pneg %p18
    %p25 = scmp.eq.s32.totalorder %s9, 1
    %p26 = por %p24, %p25
    %p27 = scmp.ne.s32.totalorder %s19, %s22
    %p28 = scmp.eq.s32.totalorder %s9, 0
    %p29 = por %p27, %p28
    %p30 = scmp.ne.s32.totalorder %s19, %s22
    %p31 = scmp.eq.s32.totalorder %s14, 1
    %p32 = por %p30, %p31
    %p33 = scmp.ne.s32.totalorder %s22, %s23
    %p34 = scmp.eq.s32.totalorder %s14, 0
    %p35 = por %p33, %p34
    %p36 = scmp.ne.s32.totalorder %s22, %s23
    %p37 = scmp.eq.s32.totalorder %s15, 1
    %p38 = por %p36, %p37
    %p40 = scmp.ne.s32.totalorder %s23, %s39
    %p41 = scmp.eq.s32.totalorder %s15, 0
    %p42 = por %p40, %p41
    %s43 = ssub.s32 %s9, %s16
    %p44 = scmp.eq.s32.totalorder %s43, 0
    %s46 = sadd.s32 %s45, 1
    %s47 = scalar_select %p44, %s45, %s46
    %p50 = pneg %p44
    %p51 = scmp.eq.s32.totalorder %s9, 1
    %p52 = por %p50, %p51
    %p53 = scmp.ne.s32.totalorder %s45, %s48
    %p54 = scmp.eq.s32.totalorder %s9, 0
    %p55 = por %p53, %p54
    %p56 = scmp.ne.s32.totalorder %s45, %s48
    %p57 = scmp.eq.s32.totalorder %s14, 1
    %p58 = por %p56, %p57
    %p59 = scmp.ne.s32.totalorder %s48, %s49
    %p60 = scmp.eq.s32.totalorder %s14, 0
    %p61 = por %p59, %p60
    %p62 = scmp.ne.s32.totalorder %s48, %s49
    %p63 = scmp.eq.s32.totalorder %s15, 1
    %p64 = por %p62, %p63
    %p66 = scmp.ne.s32.totalorder %s49, %s65
    %p67 = scmp.eq.s32.totalorder %s15, 0
    %p68 = por %p66, %p67
    %s69 = ssub.s32 %s9, %s16
    %p70 = scmp.eq.s32.totalorder %s69, 0
    %s72 = sadd.s32 %s71, 1
    %s73 = scalar_select %p70, %s71, %s72
    %p76 = pneg %p70
    %p77 = scmp.eq.s32.totalorder %s9, 1
    %p78 = por %p76, %p77
    %p79 = scmp.ne.s32.totalorder %s71, %s74
    %p80 = scmp.eq.s32.totalorder %s9, 0
    %p81 = por %p79, %p80
    %p82 = scmp.ne.s32.totalorder %s71, %s74
    %p83 = scmp.eq.s32.totalorder %s14, 1
    %p84 = por %p82, %p83
    %p85 = scmp.ne.s32.totalorder %s74, %s75
    %p86 = scmp.eq.s32.totalorder %s14, 0
    %p87 = por %p85, %p86
    %p88 = scmp.ne.s32.totalorder %s74, %s75
    %p89 = scmp.eq.s32.totalorder %s15, 1
    %p90 = por %p88, %p89
    %p92 = scmp.ne.s32.totalorder %s75, %s91
    %p93 = scmp.eq.s32.totalorder %s15, 0
    %p94 = por %p92, %p93
    %s95 = ssub.s32 %s9, %s16
    %p96 = scmp.eq.s32.totalorder %s95, 0
    %s98 = sadd.s32 %s97, 1
    %s99 = scalar_select %p96, %s97, %s98
    %p102 = pneg %p96
    %p103 = scmp.eq.s32.totalorder %s9, 1
    %p104 = por %p102, %p103
    %p105 = scmp.ne.s32.totalorder %s97, %s100
    %p106 = scmp.eq.s32.totalorder %s9, 0
    %p107 = por %p105, %p106
    %p108 = scmp.ne.s32.totalorder %s97, %s100
    %p109 = scmp.eq.s32.totalorder %s14, 1
    %p110 = por %p108, %p109
    %p111 = scmp.ne.s32.totalorder %s100, %s101
    %p112 = scmp.eq.s32.totalorder %s14, 0
    %p113 = por %p111, %p112
    %p114 = scmp.ne.s32.totalorder %s100, %s101
    %p115 = scmp.eq.s32.totalorder %s15, 1
    %p116 = por %p114, %p115
    %p118 = scmp.ne.s32.totalorder %s101, %s117
    %p119 = scmp.eq.s32.totalorder %s15, 0
    %p120 = por %p118, %p119
    %p121 = scmp.le.s32.totalorder 1, %s9
    %p122 = scmp.lt.s32.totalorder %s9, 3
    %p123 = pnand %p121, %p122
    %p124 = pneg %p123
    // Predicated region
    $region9: #{_lambda_.50} parent=5 // pred_check
      _
    $region10: #{_lambda_.50} parent=5 // pred_check_branch
      %126 = sbr.rel (%p123) target = $region12
    $region11: #{_lambda_.50} parent=5 // pred_region
      %s127 = ssub.s32 %s9, 1
    $region12: #{_lambda_.50} parent=5 // pred_fallthru
      _
    %p128 = scmp.lt.s32.totalorder %s9, 2
    // Predicated region
    $region13: #{_lambda_.50} parent=5 // pred_check
      %p129 = pneg %p128
    $region14: #{_lambda_.50} parent=5 // pred_check_branch
      %131 = sbr.rel (%p129) target = $region16
    $region15: #{_lambda_.50} parent=5 // pred_region
      // Predicated region
      $region17: #{_lambda_.50} parent=15 // pred_check
        %p132 = pneg %p29
      $region18: #{_lambda_.50} parent=15 // pred_check_branch
        %134 = sbr.rel (%p132) target = $region20
      $region19: #{_lambda_.50} parent=15 // pred_region
        %p135 = scmp.lt.s32.totalorder %s9, 1
        %s136 = scalar_select %p135, %s9, 1
        %s137 = smul.addr %s136, 4
        %s138 = scalar_lea.vmem %s0, %s137
      $region20: #{_lambda_.50} parent=15 // pred_fallthru
        _
      // Predicated region
      $region21: #{_lambda_.50} parent=15 // pred_check
        %p139 = pneg %p55
      $region22: #{_lambda_.50} parent=15 // pred_check_branch
        %141 = sbr.rel (%p139) target = $region24
      $region23: #{_lambda_.50} parent=15 // pred_region
        %p142 = scmp.lt.s32.totalorder %s9, 1
        %s143 = scalar_select %p142, %s9, 1
        %s144 = smul.addr %s143, 4
        %s145 = scalar_lea.vmem %s1, %s144
      $region24: #{_lambda_.50} parent=15 // pred_fallthru
        _
      // Predicated region
      $region25: #{_lambda_.50} parent=15 // pred_check
        %p146 = pneg %p81
      $region26: #{_lambda_.50} parent=15 // pred_check_branch
        %148 = sbr.rel (%p146) target = $region28
      $region27: #{_lambda_.50} parent=15 // pred_region
        %p149 = scmp.lt.s32.totalorder %s9, 1
        %s150 = scalar_select %p149, %s9, 1
        %s151 = scalar_lea.vmem %s2, %s150
      $region28: #{_lambda_.50} parent=15 // pred_fallthru
        _
    $region16: #{_lambda_.50} parent=5 // pred_fallthru
      _
    %p152 = scmp.le.s32.totalorder 1, %s9
    %p153 = scmp.lt.s32.totalorder %s9, 3
    %p154 = pnand %p152, %p153
    %p155 = pneg %p154
    // Predicated region
    $region29: #{_lambda_.50} parent=5 // pred_check
      _
    $region30: #{_lambda_.50} parent=5 // pred_check_branch
      %157 = sbr.rel (%p154) target = $region32
    $region31: #{_lambda_.50} parent=5 // pred_region
      %s158 = ssub.s32 %s9, 1
      %p159 = scmp.lt.s32.totalorder %s14, 1
      %s160 = scalar_select %p159, %s14, 1
      %s161 = smul.addr %s160, 4
      %s162 = scalar_lea.vmem %s0, %s161
      %p163 = pneg %p35
      %p164 = pneg %p32
      %p165 = scmp.lt.s32.totalorder %s14, 1
      %s166 = scalar_select %p165, %s14, 1
      %s167 = smul.addr %s166, 4
      %s168 = scalar_lea.vmem %s1, %s167
      %p169 = pneg %p61
      %p170 = pneg %p58
      %p171 = scmp.lt.s32.totalorder %s14, 1
      %s172 = scalar_select %p171, %s14, 1
      %s173 = scalar_lea.vmem %s2, %s172
      %p174 = pneg %p87
      %p175 = pneg %p84
      %p176 = pneg %p113
      %p177 = pneg %p110
      %p178 = scmp.lt.s32.totalorder %s14, 1
      %s179 = scalar_select %p178, %s14, 1
      %s180 = smul.addr %s179, 4
      %s181 = scalar_lea.vmem %s3, %s180
      %p182 = scmp.lt.s32.totalorder %s14, 1
      %s183 = scalar_select %p182, %s14, 1
      %s184 = smul.addr %s183, 4
      %s185 = scalar_lea.vmem %s0, %s184
      %p186 = scmp.lt.s32.totalorder %s14, 1
      %s187 = scalar_select %p186, %s14, 1
      %s188 = smul.addr %s187, 4
      %s189 = scalar_lea.vmem %s1, %s188
      %p190 = scmp.lt.s32.totalorder %s14, 1
      %s191 = scalar_select %p190, %s14, 1
      %s192 = scalar_lea.vmem %s2, %s191
      %p193 = scmp.lt.s32.totalorder %s14, 1
      %s194 = scalar_select %p193, %s14, 1
      %s195 = smul.addr %s194, 4
      %s196 = scalar_lea.vmem %s3, %s195
      %v198 = vld [vmem:[%s185] sm:$0xf]
      %v199 = vld [vmem:[%s189] sm:$0xf]
      %v200 = vld [vmem:[%s192] sm:$0x1]
      %vm201 = vcmask 130048
      %v203 = vsel %vm201, %v198, 0
      %v206 = vsel %vm201, %v199, 0
      %208 = vmatprep.subr.bf16.mxu0 0
      %209 = vmatpush1.bf16.xpose.msra.mxu0 0
      %210 = vmatprep.subr.bf16.mxu0 0
      %211 = vmatpush1.bf16.xpose.msra.mxu0 0
      %212 = vmatprep.subr.bf16.mxu0 0
      %213 = vmatpush1.bf16.xpose.msra.mxu0 0
      %214 = vmatprep.subr.bf16.mxu0 0
      %215 = vmatpush1.bf16.xpose.msra.mxu0 0
      %216 = vmatprep.subr.bf16.mxu0 0
      %217 = vmatpush1.bf16.xpose.msra.mxu0 0
      %218 = vmatprep.subr.bf16.mxu0 0
      %219 = vmatpush1.bf16.xpose.msra.mxu0 0
      %220 = vmatprep.subr.bf16.mxu0 0
      %221 = vmatpush1.bf16.xpose.msra.mxu0 0
      %222 = vmatprep.subr.bf16.mxu0 0
      %223 = vmatpush1.bf16.xpose.msra.mxu0 %v206
      %224 = vmatprep.subr.bf16.mxu0 0
      %225 = vmatpush2.bf16.xpose.msra.mxu0 0
      %226 = vmatprep.subr.bf16.mxu0 0
      %227 = vmatpush2.bf16.xpose.msra.mxu0 0
      %228 = vmatprep.subr.bf16.mxu0 0
      %229 = vmatpush2.bf16.xpose.msra.mxu0 0
      %230 = vmatprep.subr.bf16.mxu0 0
      %231 = vmatpush2.bf16.xpose.msra.mxu0 0
      %232 = vmatprep.subr.bf16.mxu0 0
      %233 = vmatpush2.bf16.xpose.msra.mxu0 0
      %234 = vmatprep.subr.bf16.mxu0 0
      %235 = vmatpush2.bf16.xpose.msra.mxu0 0
      %236 = vmatprep.subr.bf16.mxu0 0
      %237 = vmatpush2.bf16.xpose.msra.mxu0 0
      %238 = vmatprep.subr.bf16.mxu0 0
      %239 = vmatpush2.bf16.xpose.msra.mxu0 0
      %240 = vmatprep.mubr.bf16.mxu0 0
      %241 = vmatmul.mubr.bf16.gmra.mxu0 %v203
      %v242 = vpop.f32.mrf.mxu0
      %v243 = vadd.f32 0.0, %v242
      %v244 = vpop.f32.mrf.mxu0
      %v245 = vpop.f32.mrf.mxu0
      %v246 = vpop.f32.mrf.mxu0
      %247 = vdwg.mxu0
      %v248 = vmul.f32 %v243, 0.25
      %v250 = vlaneseq
      %v251 = vshrl.u32 %v250, 7
      %v252 = vsub.s32 0, %v251
      %v253 = vrot.slane %v200, %v252
      %v255 = vadd.f32 %v248, %v253
      %vm256 = vcmask 64512
      %v257 = vsel %vm256, %v255, -inf
      %258 = vmax.xlane.f32.xlu0 %v257
      %v259 = vpop.xlane.xlu0 %258
      %v260 = vsub.f32 %v255, %v259
      %v261 = vmul.f32 %v260, 1.442695
      %v262 = vpow.pop %v261
      %v263 = vsel %vm256, %v262, 0.0
      %264 = vadd.xlane.f32.xlu0 %v263
      %v265 = vpop.xlane.xlu0 %264
      %v266 = vpack.c.bf16 %v262, %v262
      %v268 = vunpack.c.l.b16 %v199
      %v269 = vpack.c.b16 %v268, %v268
      %270 = vrot.lane.b32.xlu0 %v269, 96
      %v271 = vpop.permute.xlu0 %270
      %v273 = vsel %vm256, %v266, 0
      %vm275 = vcmask 1043456
      %v277 = vsel %vm275, %v271, 0
      %279 = vmatprep.subr.bf16.mxu0 0
      %280 = vmatpush1.bf16.msra.mxu0 0
      %281 = vmatprep.subr.bf16.mxu0 0
      %282 = vmatpush1.bf16.msra.mxu0 0
      %283 = vmatprep.subr.bf16.mxu0 0
      %284 = vmatpush1.bf16.msra.mxu0 0
      %285 = vmatprep.subr.bf16.mxu0 0
      %286 = vmatpush1.bf16.msra.mxu0 0
      %287 = vmatprep.subr.bf16.mxu0 0
      %288 = vmatpush1.bf16.msra.mxu0 0
      %289 = vmatprep.subr.bf16.mxu0 0
      %290 = vmatpush1.bf16.msra.mxu0 0
      %291 = vmatprep.subr.bf16.mxu0 0
      %292 = vmatpush1.bf16.msra.mxu0 0
      %293 = vmatprep.subr.bf16.mxu0 0
      %294 = vmatpush1.bf16.msra.mxu0 %v277
      %295 = vmatprep.subr.bf16.mxu0 0
      %296 = vmatpush2.bf16.msra.mxu0 0
      %297 = vmatprep.subr.bf16.mxu0 0
      %298 = vmatpush2.bf16.msra.mxu0 0
      %299 = vmatprep.subr.bf16.mxu0 0
      %300 = vmatpush2.bf16.msra.mxu0 0
      %301 = vmatprep.subr.bf16.mxu0 0
      %302 = vmatpush2.bf16.msra.mxu0 0
      %303 = vmatprep.subr.bf16.mxu0 0
      %304 = vmatpush2.bf16.msra.mxu0 0
      %305 = vmatprep.subr.bf16.mxu0 0
      %306 = vmatpush2.bf16.msra.mxu0 0
      %307 = vmatprep.subr.bf16.mxu0 0
      %308 = vmatpush2.bf16.msra.mxu0 0
      %309 = vmatprep.subr.bf16.mxu0 0
      %310 = vmatpush2.bf16.msra.mxu0 0
      %311 = vmatprep.mubr.bf16.mxu0 0
      %312 = vmatmul.mubr.bf16.gmra.mxu0 %v273
      %v313 = vpop.f32.mrf.mxu0
      %v314 = vadd.f32 0.0, %v313
      %v315 = vpop.f32.mrf.mxu0
      %v316 = vpop.f32.mrf.mxu0
      %v317 = vpop.f32.mrf.mxu0
      %318 = vdwg.mxu0
      %v319 = vrcp.pop %v265
      %v320 = vmul.f32 %v314, %v319
      %v321 = vpack.c.bf16 %v320, %v320
      %vm322 = vcmask 125952
      %323 = vst.msk [vmem:[%s196] sm:$0xf] %vm322, %v321
      %v325 = vunpack.c.l.b16 %v198
      %v326 = vpack.c.b16 %v325, %v325
      %327 = vrot.lane.b32.xlu0 %v326, 112
      %v328 = vpop.permute.xlu0 %327
      %329 = vrot.lane.b32.xlu0 %v269, 112
      %v330 = vpop.permute.xlu0 %329
      %v332 = vsel %vm201, %v328, 0
      %v335 = vsel %vm201, %v330, 0
      %337 = vmatprep.subr.bf16.mxu0 0
      %338 = vmatpush1.bf16.xpose.msra.mxu0 0
      %339 = vmatprep.subr.bf16.mxu0 0
      %340 = vmatpush1.bf16.xpose.msra.mxu0 0
      %341 = vmatprep.subr.bf16.mxu0 0
      %342 = vmatpush1.bf16.xpose.msra.mxu0 0
      %343 = vmatprep.subr.bf16.mxu0 0
      %344 = vmatpush1.bf16.xpose.msra.mxu0 0
      %345 = vmatprep.subr.bf16.mxu0 0
      %346 = vmatpush1.bf16.xpose.msra.mxu0 0
      %347 = vmatprep.subr.bf16.mxu0 0
      %348 = vmatpush1.bf16.xpose.msra.mxu0 0
      %349 = vmatprep.subr.bf16.mxu0 0
      %350 = vmatpush1.bf16.xpose.msra.mxu0 0
      %351 = vmatprep.subr.bf16.mxu0 0
      %352 = vmatpush1.bf16.xpose.msra.mxu0 %v335
      %353 = vmatprep.subr.bf16.mxu0 0
      %354 = vmatpush2.bf16.xpose.msra.mxu0 0
      %355 = vmatprep.subr.bf16.mxu0 0
      %356 = vmatpush2.bf16.xpose.msra.mxu0 0
      %357 = vmatprep.subr.bf16.mxu0 0
      %358 = vmatpush2.bf16.xpose.msra.mxu0 0
      %359 = vmatprep.subr.bf16.mxu0 0
      %360 = vmatpush2.bf16.xpose.msra.mxu0 0
      %361 = vmatprep.subr.bf16.mxu0 0
      %362 = vmatpush2.bf16.xpose.msra.mxu0 0
      %363 = vmatprep.subr.bf16.mxu0 0
      %364 = vmatpush2.bf16.xpose.msra.mxu0 0
      %365 = vmatprep.subr.bf16.mxu0 0
      %366 = vmatpush2.bf16.xpose.msra.mxu0 0
      %367 = vmatprep.subr.bf16.mxu0 0
      %368 = vmatpush2.bf16.xpose.msra.mxu0 0
      %369 = vmatprep.mubr.bf16.mxu0 0
      %370 = vmatmul.mubr.bf16.gmra.mxu0 %v332
      %v371 = vpop.f32.mrf.mxu0
      %v372 = vadd.f32 0.0, %v371
      %v373 = vpop.f32.mrf.mxu0
      %v374 = vpop.f32.mrf.mxu0
      %v375 = vpop.f32.mrf.mxu0
      %376 = vdwg.mxu0
      %v377 = vmul.f32 %v372, 0.25
      %v378 = vadd.f32 %v377, %v253
      %v379 = vsel %vm256, %v378, -inf
      %380 = vmax.xlane.f32.xlu0 %v379
      %v381 = vpop.xlane.xlu0 %380
      %v382 = vsub.f32 %v378, %v381
      %v383 = vmul.f32 %v382, 1.442695
      %v384 = vpow.pop %v383
      %v385 = vsel %vm256, %v384, 0.0
      %386 = vadd.xlane.f32.xlu0 %v385
      %v387 = vpop.xlane.xlu0 %386
      %v388 = vpack.c.bf16 %v384, %v384
      %389 = vrot.lane.b32.xlu0 %v269, 80
      %v390 = vpop.permute.xlu0 %389
      %v392 = vsel %vm256, %v388, 0
      %v395 = vsel %vm275, %v390, 0
      %397 = vmatprep.subr.bf16.mxu0 0
      %398 = vmatpush1.bf16.msra.mxu0 0
      %399 = vmatprep.subr.bf16.mxu0 0
      %400 = vmatpush1.bf16.msra.mxu0 0
      %401 = vmatprep.subr.bf16.mxu0 0
      %402 = vmatpush1.bf16.msra.mxu0 0
      %403 = vmatprep.subr.bf16.mxu0 0
      %404 = vmatpush1.bf16.msra.mxu0 0
      %405 = vmatprep.subr.bf16.mxu0 0
      %406 = vmatpush1.bf16.msra.mxu0 0
      %407 = vmatprep.subr.bf16.mxu0 0
      %408 = vmatpush1.bf16.msra.mxu0 0
      %409 = vmatprep.subr.bf16.mxu0 0
      %410 = vmatpush1.bf16.msra.mxu0 0
      %411 = vmatprep.subr.bf16.mxu0 0
      %412 = vmatpush1.bf16.msra.mxu0 %v395
      %413 = vmatprep.subr.bf16.mxu0 0
      %414 = vmatpush2.bf16.msra.mxu0 0
      %415 = vmatprep.subr.bf16.mxu0 0
      %416 = vmatpush2.bf16.msra.mxu0 0
      %417 = vmatprep.subr.bf16.mxu0 0
      %418 = vmatpush2.bf16.msra.mxu0 0
      %419 = vmatprep.subr.bf16.mxu0 0
      %420 = vmatpush2.bf16.msra.mxu0 0
      %421 = vmatprep.subr.bf16.mxu0 0
      %422 = vmatpush2.bf16.msra.mxu0 0
      %423 = vmatprep.subr.bf16.mxu0 0
      %424 = vmatpush2.bf16.msra.mxu0 0
      %425 = vmatprep.subr.bf16.mxu0 0
      %426 = vmatpush2.bf16.msra.mxu0 0
      %427 = vmatprep.subr.bf16.mxu0 0
      %428 = vmatpush2.bf16.msra.mxu0 0
      %429 = vmatprep.mubr.bf16.mxu0 0
      %430 = vmatmul.mubr.bf16.gmra.mxu0 %v392
      %v431 = vpop.f32.mrf.mxu0
      %v432 = vadd.f32 0.0, %v431
      %v433 = vpop.f32.mrf.mxu0
      %v434 = vpop.f32.mrf.mxu0
      %v435 = vpop.f32.mrf.mxu0
      %436 = vdwg.mxu0
      %v437 = vrcp.pop %v387
      %v438 = vmul.f32 %v432, %v437
      %v439 = vpack.c.bf16 %v438, %v438
      %v441 = vunpack.c.l.b16 %v439
      %v442 = vpack.c.b16 %v441, %v441
      %443 = vrot.lane.b32.xlu0 %v442, 16
      %v444 = vpop.permute.xlu0 %443
      %vm446 = vcmask 257152
      %447 = vst.msk [vmem:[%s196] sm:$0xf] %vm446, %v444
      %p448 = scmp.lt.s32.totalorder %s14, 1
      %s449 = scalar_select %p448, %s14, 1
      %s450 = smul.addr %s449, 4
      %s451 = scalar_lea.vmem %s3, %s450
      // Predicated region
      $region33: #{_lambda_.50} parent=31 // pred_check
        %p452 = pneg %p110
      $region34: #{_lambda_.50} parent=31 // pred_check_branch
        %454 = sbr.rel (%p452) target = $region36
      $region35: #{_lambda_.50} parent=31 // pred_region
        _
      $region36: #{_lambda_.50} parent=31 // pred_fallthru
        _
    $region32: #{_lambda_.50} parent=5 // pred_fallthru
      _
    %p455 = scmp.le.s32.totalorder 2, %s9
    // Predicated region
    $region37: #{_lambda_.50} parent=5 // pred_check
      %p456 = pneg %p455
    $region38: #{_lambda_.50} parent=5 // pred_check_branch
      %458 = sbr.rel (%p456) target = $region40
    $region39: #{_lambda_.50} parent=5 // pred_region
      %s459 = ssub.s32 %s9, 2
      // Predicated region
      $region41: #{_lambda_.50} parent=39 // pred_check
        %p460 = pneg %p116
      $region42: #{_lambda_.50} parent=39 // pred_check_branch
        %462 = sbr.rel (%p460) target = $region44
      $region43: #{_lambda_.50} parent=39 // pred_region
        %p463 = scmp.lt.s32.totalorder %s15, 1
        %s464 = scalar_select %p463, %s15, 1
        %s465 = smul.addr %s464, 4
        %s466 = scalar_lea.vmem %s3, %s465
      $region44: #{_lambda_.50} parent=39 // pred_fallthru
        _
    $region40: #{_lambda_.50} parent=5 // pred_fallthru
      _
  $region6: #{_lambda_.50} parent=0 // loop_footer
    %s13 = sadd.s32 1, %s9
  $region7: #{_lambda_.50} parent=0 // loop_footer_branch
    %8 = sbr.rel target = $region3
  $region8: #{_lambda_.50} parent=0 // loop_exit
    _

</llo_original>
